<compile_context>
chip_gen: v5e
topology: v5e:2x2
jax: 0.10.0
libtpu: 0.0.40
codegen_flags: <defaults>
</compile_context>

<pallas_src>
import functools

import jax
import jax.numpy as jnp
from jax.experimental import pallas as pl
from jax.experimental.pallas import tpu as pltpu


def _round_up(x, m):
    return (x + m - 1) // m * m


def _choose_tile(m, max_tile, align=16):
    """Pick (tile, padded_m) for gridding rows.

    Prefers the largest multiple-of-`align` tile <= max_tile that divides
    round_up(m, align) exactly (no padded rows).  Falls back to a full-size
    tile + zero padding when the only exact divisors are tiny (< 128), so the
    per-grid-step overhead stays amortized.
    """
    m_aligned = _round_up(m, align)
    cap = min(max_tile, m_aligned)
    cap -= cap % align
    for tm in range(cap, align - 1, -align):
        if m_aligned % tm == 0:
            if tm >= min(128, m_aligned):
                return tm, m_aligned
            break
    return cap, _round_up(m, cap)


# --------------------------------------------------------------------------
# Pallas kernel 1: fused matmul + bias + ReLU  (used by every conv layer)
# --------------------------------------------------------------------------
def _matmul_bias_relu_kernel(a_ref, w_ref, b_ref, o_ref):
    acc = jnp.dot(a_ref[...], w_ref[...], preferred_element_type=jnp.float32)
    o_ref[...] = jnp.maximum(acc + b_ref[...], 0.0).astype(o_ref.dtype)


def matmul_bias_relu(a, w, b, out_dtype=jnp.bfloat16, tile_m=256):
    """relu(a @ w + b).  a:(M,K) bf16, w:(K,N) bf16, b:(N,) f32 -> (M,N) out_dtype.

    Gridded over M only; K/N stay whole-block (tiny weights -> VMEM resident,
    constant index_map means Pallas does not re-DMA them per step).
    """
    M, K = a.shape
    N = w.shape[1]
    tm, m_pad = _choose_tile(M, tile_m)
    if m_pad != M:
        a = jnp.pad(a, ((0, m_pad - M), (0, 0)))
    out = pl.pallas_call(
        _matmul_bias_relu_kernel,
        out_shape=jax.ShapeDtypeStruct((m_pad, N), out_dtype),
        grid_spec=pltpu.PrefetchScalarGridSpec(
            num_scalar_prefetch=0,
            grid=(m_pad // tm,),
            in_specs=[
                pl.BlockSpec((tm, K), lambda i: (i, 0)),
                pl.BlockSpec((K, N), lambda i: (0, 0)),
                pl.BlockSpec((1, N), lambda i: (0, 0)),
            ],
            out_specs=pl.BlockSpec((tm, N), lambda i: (i, 0)),
        ),
        compiler_params=pltpu.CompilerParams(
            dimension_semantics=("parallel",)),
    )(a, w, b.reshape(1, N).astype(jnp.float32))
    return out[:M] if m_pad != M else out
    # TODO(synk): conv output widths (32/64 lanes) are below 128, so the final
    # stores are masked; packing 4 row-blocks into a 128-lane output slab would
    # need an in-kernel sublane->lane shuffle that is not worth it at this size.


# --------------------------------------------------------------------------
# Pallas kernel 2: fused flatten-tail = h1 (+ReLU) + actor + critic + softmax
# --------------------------------------------------------------------------
def _tail_kernel(flat_ref, w1_ref, b1_ref, wh_ref, bh_ref, out_ref, *, num_actions):
    h = jnp.dot(flat_ref[...], w1_ref[...], preferred_element_type=jnp.float32)
    h = jnp.maximum(h + b1_ref[...], 0.0)
    # single lane-dense head matmul: cols [0:A) = actor logits, col A = critic value
    z = jnp.dot(h.astype(jnp.bfloat16), wh_ref[...],
                preferred_element_type=jnp.float32) + bh_ref[...]
    col = jax.lax.broadcasted_iota(jnp.int32, z.shape, 1)
    act_mask = col < num_actions
    m = jnp.max(jnp.where(act_mask, z, -1e30), axis=1, keepdims=True)
    e = jnp.where(act_mask, jnp.exp(z - m), 0.0)
    policy = e / jnp.sum(e, axis=1, keepdims=True)          # softmax over real lanes only
    # policy is zero at lane A and beyond; stash the value in lane A -> lane-dense store
    out_ref[...] = policy + jnp.where(col == num_actions, z, 0.0)


def fused_flatten_h1_heads(flat, w1, b1, wh, bh, num_actions, tile_b=256):
    """flat:(B,1568) bf16 -> (value (B,1) f32, policy (B,A) f32)."""
    B, K = flat.shape
    H = w1.shape[1]
    P = wh.shape[1]
    tb, b_pad = _choose_tile(B, tile_b)
    if b_pad != B:
        flat = jnp.pad(flat, ((0, b_pad - B), (0, 0)))
    out = pl.pallas_call(
        functools.partial(_tail_kernel, num_actions=num_actions),
        out_shape=jax.ShapeDtypeStruct((b_pad, P), jnp.float32),
        grid_spec=pltpu.PrefetchScalarGridSpec(
            num_scalar_prefetch=0,
            grid=(b_pad // tb,),
            in_specs=[
                pl.BlockSpec((tb, K), lambda i: (i, 0)),
                pl.BlockSpec((K, H), lambda i: (0, 0)),
                pl.BlockSpec((1, H), lambda i: (0, 0)),
                pl.BlockSpec((H, P), lambda i: (0, 0)),
                pl.BlockSpec((1, P), lambda i: (0, 0)),
            ],
            out_specs=pl.BlockSpec((tb, P), lambda i: (i, 0)),
        ),
        compiler_params=pltpu.CompilerParams(
            dimension_semantics=("parallel",)),
    )(flat, w1, b1.reshape(1, H), wh, bh.reshape(1, P))
    value = out[:B, num_actions:num_actions + 1]
    policy = out[:B, :num_actions]
    return value, policy


# --------------------------------------------------------------------------
# Conv2d = NHWC im2col (transpose-free XLA glue) + Pallas matmul kernel
# --------------------------------------------------------------------------
def _im2col_nhwc(x, kh, kw, stride):
    """x:(B,H,W,C) -> patches (B*OH*OW, kh*kw*C); column order = (kh, kw, C)."""
    B, Hh, Ww, C = x.shape
    oh = (Hh - kh) // stride + 1
    ow = (Ww - kw) // stride + 1
    taps = []
    for i in range(kh):
        for j in range(kw):
            taps.append(x[:, i:i + stride * (oh - 1) + 1:stride,
                          j:j + stride * (ow - 1) + 1:stride, :])   # (B, oh, ow, C)
    p = jnp.stack(taps, axis=3)                                     # (B, oh, ow, kh*kw, C)
    return p.reshape(B * oh * ow, kh * kw * C), oh, ow
    # TODO(synk): fuse this window gather into the matmul kernel (manual strided DMA
    # over the kh*kw taps) to avoid materializing the patch matrix in HBM.


def conv2d_relu(x, wmat, b, kh, kw, stride):
    """relu(conv2d(x)) in NHWC.  wmat is the pre-flattened (kh*kw*C, OC) bf16 weight."""
    B = x.shape[0]
    OC = wmat.shape[1]
    patches, oh, ow = _im2col_nhwc(x, kh, kw, stride)
    y = matmul_bias_relu(patches, wmat, b, out_dtype=jnp.bfloat16)
    return y.reshape(B, oh, ow, OC)                                 # NHWC, no transpose


# --------------------------------------------------------------------------
# Parameters: PyTorch-layout init + one-time kernel-friendly conversion
# --------------------------------------------------------------------------
HEAD_PAD = 128   # lane-dense fused actor+critic head width


def init_params(key, input_channels, output_size):
    """Same shapes / uniform(-1/sqrt(fan_in)) init as the PyTorch module."""
    flat_size = 32 * 7 * 7

    def uinit(k, shape, fan_in):
        bound = 1.0 / float(fan_in) ** 0.5
        return jax.random.uniform(k, shape, jnp.float32, -bound, bound)

    ks = jax.random.split(key, 12)
    p = {}
    p["c1_w"] = uinit(ks[0], (32, input_channels, 8, 8), input_channels * 8 * 8)
    p["c1_b"] = uinit(ks[1], (32,), input_channels * 8 * 8)
    p["c2_w"] = uinit(ks[2], (64, 32, 4, 4), 32 * 4 * 4)
    p["c2_b"] = uinit(ks[3], (64,), 32 * 4 * 4)
    p["c3_w"] = uinit(ks[4], (32, 64, 3, 3), 64 * 3 * 3)
    p["c3_b"] = uinit(ks[5], (32,), 64 * 3 * 3)
    p["h1_w"] = uinit(ks[6], (flat_size, 512), flat_size)    # (in, out); rows in (C,H,W) order
    p["h1_b"] = uinit(ks[7], (512,), flat_size)
    p["actor_w"] = uinit(ks[8], (512, output_size), 512)
    p["actor_b"] = uinit(ks[9], (output_size,), 512)
    p["critic_w"] = uinit(ks[10], (512, 1), 512)
    p["critic_b"] = uinit(ks[11], (1,), 512)
    return p


def prepare_params(p, output_size):
    """One-time conversion: NHWC im2col weight layout, (H,W,C) h1 row order,
    fused+padded head weights, bf16 matmul operands (biases stay f32)."""
    A = output_size
    assert A + 1 <= HEAD_PAD
    num_hidden = p["h1_w"].shape[1]

    def conv_w(w):   # (OC, C, KH, KW) -> (KH*KW*C, OC), matching NHWC patch columns
        oc = w.shape[0]
        return jnp.transpose(w, (2, 3, 1, 0)).reshape(-1, oc).astype(jnp.bfloat16)

    q = {}
    q["c1_w"], q["c1_b"] = conv_w(p["c1_w"]), p["c1_b"]
    q["c2_w"], q["c2_b"] = conv_w(p["c2_w"]), p["c2_b"]
    q["c3_w"], q["c3_b"] = conv_w(p["c3_w"]), p["c3_b"]
    # PyTorch flattens NCHW -> (C,H,W)-ordered rows; our NHWC flatten is (H,W,C):
    h1 = p["h1_w"].reshape(32, 7, 7, num_hidden).transpose(1, 2, 0, 3)
    q["h1_w"] = h1.reshape(32 * 7 * 7, num_hidden).astype(jnp.bfloat16)
    q["h1_b"] = p["h1_b"]
    # fused heads: one lane-dense (512,128) matmul; cols [0:A)=actor, col A=critic, rest 0
    wh = jnp.zeros((num_hidden, HEAD_PAD), jnp.float32)
    wh = wh.at[:, :A].set(p["actor_w"]).at[:, A:A + 1].set(p["critic_w"])
    bh = jnp.zeros((HEAD_PAD,), jnp.float32)
    bh = bh.at[:A].set(p["actor_b"]).at[A].set(p["critic_b"][0])
    q["heads_w"] = wh.astype(jnp.bfloat16)
    q["heads_b"] = bh
    return q


# --------------------------------------------------------------------------
# Full forward (matches ActorCriticNet.forward)
# --------------------------------------------------------------------------
def actor_critic_forward(params, x, *, output_size):
    """x: (B, C, 84, 84) f32 NCHW -> (value (B,1), policy_dist (B, output_size))."""
    x = jnp.transpose(x, (0, 2, 3, 1)).astype(jnp.bfloat16)        # to NHWC once
    x = conv2d_relu(x, params["c1_w"], params["c1_b"], 8, 8, 4)    # (B, 20, 20, 32)
    x = conv2d_relu(x, params["c2_w"], params["c2_b"], 4, 4, 2)    # (B,  9,  9, 64)
    x = conv2d_relu(x, params["c3_w"], params["c3_b"], 3, 3, 1)    # (B,  7,  7, 32)
    flat = x.reshape(x.shape[0], -1)                               # (B, 1568), transpose-free
    value, policy = fused_flatten_h1_heads(
        flat, params["h1_w"], params["h1_b"],
        params["heads_w"], params["heads_b"], output_size)
    return value, policy
    # TODO(synk): act()/evaluate_actions() (Categorical sample / log_prob / entropy)
    # are not part of forward() and are left unimplemented.


# --------------------------------------------------------------------------
# Pure-XLA f32 reference (PyTorch semantics) for numerical verification
# --------------------------------------------------------------------------
def reference_forward(p, x, output_size):
    def conv(h, w, b, stride):
        y = jax.lax.conv_general_dilated(
            h, w, window_strides=(stride, stride), padding="VALID",
            dimension_numbers=("NCHW", "OIHW", "NCHW"))
        return jnp.maximum(y + b.reshape(1, -1, 1, 1), 0.0)

    h = conv(x, p["c1_w"], p["c1_b"], 4)
    h = conv(h, p["c2_w"], p["c2_b"], 2)
    h = conv(h, p["c3_w"], p["c3_b"], 1)
    flat = h.reshape(h.shape[0], -1)                   # NCHW flatten = (C,H,W) row order
    hid = jnp.maximum(flat @ p["h1_w"] + p["h1_b"], 0.0)
    value = hid @ p["critic_w"] + p["critic_b"]
    logits = hid @ p["actor_w"] + p["actor_b"]
    policy = jax.nn.softmax(logits, axis=1)
    return value, policy


if __name__ == "__main__":
    key = jax.random.PRNGKey(0)
    k_param, k_x = jax.random.split(key)

    input_channels = 4
    output_size = 6
    batch = 2

    pt_params = init_params(k_param, input_channels, output_size)
    params = prepare_params(pt_params, output_size)

    # 84x84 spatial is required by the module's hard-coded flat_size = 32*7*7.
    x = jax.random.normal(k_x, (batch, input_channels, 84, 84), dtype=jnp.float32)

    fwd = jax.jit(functools.partial(actor_critic_forward, output_size=output_size))
    value, policy = fwd(params, x)
    value = jax.block_until_ready(value)
    policy = jax.block_until_ready(policy)

    # structural checks
    assert value.shape == (batch, 1)
    assert policy.shape == (batch, output_size)
    assert bool(jnp.all(jnp.isfinite(value)))
    assert bool(jnp.all(policy >= 0.0))
    assert bool(jnp.allclose(jnp.sum(policy, axis=1), 1.0, atol=1e-5))

    # numerical check vs. pure-XLA f32 reference (tolerances cover bf16 operands)
    ref_value, ref_policy = jax.jit(
        functools.partial(reference_forward, output_size=output_size))(pt_params, x)
    ref_value = jax.block_until_ready(ref_value)
    ref_policy = jax.block_until_ready(ref_policy)
    assert bool(jnp.allclose(value, ref_value, atol=2e-2)), "value mismatch vs reference"
    assert bool(jnp.allclose(policy, ref_policy, atol=1e-2)), "policy mismatch vs reference"

    print("KERNEL_OK")
</pallas_src>

<mosaic_0001>
module attributes {stable_mosaic.version = 11 : i64} {
  func.func @_matmul_bias_relu_kernel(%arg0: i32, %arg1: memref<160x256xbf16, #tpu.memory_space<vmem>>, %arg2: memref<256x32xbf16, #tpu.memory_space<vmem>>, %arg3: memref<1x32xf32, #tpu.memory_space<vmem>>, %arg4: memref<160x32xbf16, #tpu.memory_space<vmem>>) attributes {dimension_semantics = [#tpu.dimension_semantics<parallel>], iteration_bounds = array<i64: 5>, scalar_prefetch = 0 : i64, scratch_operands = 0 : i64, tpu.core_type = #tpu.core_type<tc>, window_params = [{transform_indices = @transform_0, window_bounds = array<i64: 160, 256>}, {pipeline_mode = #tpu.pipeline_mode<synchronous>, transform_indices = @transform_1, window_bounds = array<i64: 256, 32>}, {pipeline_mode = #tpu.pipeline_mode<synchronous>, transform_indices = @transform_2, window_bounds = array<i64: 1, 32>}, {transform_indices = @transform_3, window_bounds = array<i64: 160, 32>}]} {
    %c0 = arith.constant 0 : index
    %c0_0 = arith.constant 0 : index
    %0 = vector.load %arg1[%c0, %c0_0] : memref<160x256xbf16, #tpu.memory_space<vmem>>, vector<160x256xbf16>
    %c0_1 = arith.constant 0 : index
    %c0_2 = arith.constant 0 : index
    %1 = vector.load %arg2[%c0_1, %c0_2] : memref<256x32xbf16, #tpu.memory_space<vmem>>, vector<256x32xbf16>
    %cst = arith.constant dense<0.000000e+00> : vector<160x32xf32>
    %2 = tpu.matmul %0, %1, %cst {dimension_numbers = #tpu.dot_dimension_numbers<[1], [0], [0], [1], [0, 0, 1, 1], [], []>} : vector<160x256xbf16>, vector<256x32xbf16>, vector<160x32xf32> -> vector<160x32xf32>
    %c0_3 = arith.constant 0 : index
    %c0_4 = arith.constant 0 : index
    %3 = vector.load %arg3[%c0_3, %c0_4] : memref<1x32xf32, #tpu.memory_space<vmem>>, vector<1x32xf32>
    %4 = vector.broadcast %3 : vector<1x32xf32> to vector<160x32xf32>
    %5 = arith.addf %2, %4 : vector<160x32xf32>
    %cst_5 = arith.constant 0.000000e+00 : f32
    %6 = vector.broadcast %cst_5 : f32 to vector<160x32xf32>
    %7 = arith.maximumf %5, %6 : vector<160x32xf32>
    %8 = arith.truncf %7 : vector<160x32xf32> to vector<160x32xbf16>
    %c0_6 = arith.constant 0 : index
    %c0_7 = arith.constant 0 : index
    %9 = vector.load %arg4[%c0_6, %c0_7] : memref<160x32xbf16, #tpu.memory_space<vmem>>, vector<160x32xbf16>
    tpu.vector_store %arg4[%c0_6, %c0_7], %8 {strides = array<i32>} : memref<160x32xbf16, #tpu.memory_space<vmem>>, vector<160x32xbf16>,
    return
  }
  func.func @transform_0(%arg0: i32) -> (i32, i32) {
    %c0_i32 = arith.constant 0 : i32
    %c0_i32_0 = arith.constant 0 : i32
    return %arg0, %c0_i32 : i32, i32
  }
  func.func @transform_1(%arg0: i32) -> (i32, i32) {
    %c0_i32 = arith.constant 0 : i32
    %c0_i32_0 = arith.constant 0 : i32
    %c0_i32_1 = arith.constant 0 : i32
    return %c0_i32, %c0_i32_0 : i32, i32
  }
  func.func @transform_2(%arg0: i32) -> (i32, i32) {
    %c0_i32 = arith.constant 0 : i32
    %c0_i32_0 = arith.constant 0 : i32
    %c0_i32_1 = arith.constant 0 : i32
    return %c0_i32, %c0_i32_0 : i32, i32
  }
  func.func @transform_3(%arg0: i32) -> (i32, i32) {
    %c0_i32 = arith.constant 0 : i32
    %c0_i32_0 = arith.constant 0 : i32
    return %arg0, %c0_i32 : i32, i32
  }
}

module attributes {stable_mosaic.version = 11 : i64} {
  func.func @_matmul_bias_relu_kernel(%arg0: i32, %arg1: memref<176x512xbf16, #tpu.memory_space<vmem>>, %arg2: memref<512x64xbf16, #tpu.memory_space<vmem>>, %arg3: memref<1x64xf32, #tpu.memory_space<vmem>>, %arg4: memref<176x64xbf16, #tpu.memory_space<vmem>>) attributes {dimension_semantics = [#tpu.dimension_semantics<parallel>], iteration_bounds = array<i64: 1>, scalar_prefetch = 0 : i64, scratch_operands = 0 : i64, tpu.core_type = #tpu.core_type<tc>, window_params = [{transform_indices = @transform_0, window_bounds = array<i64: 176, 512>}, {pipeline_mode = #tpu.pipeline_mode<synchronous>, transform_indices = @transform_1, window_bounds = array<i64: 512, 64>}, {pipeline_mode = #tpu.pipeline_mode<synchronous>, transform_indices = @transform_2, window_bounds = array<i64: 1, 64>}, {transform_indices = @transform_3, window_bounds = array<i64: 176, 64>}]} {
    %c0 = arith.constant 0 : index
    %c0_0 = arith.constant 0 : index
    %0 = vector.load %arg1[%c0, %c0_0] : memref<176x512xbf16, #tpu.memory_space<vmem>>, vector<176x512xbf16>
    %c0_1 = arith.constant 0 : index
    %c0_2 = arith.constant 0 : index
    %1 = vector.load %arg2[%c0_1, %c0_2] : memref<512x64xbf16, #tpu.memory_space<vmem>>, vector<512x64xbf16>
    %cst = arith.constant dense<0.000000e+00> : vector<176x64xf32>
    %2 = tpu.matmul %0, %1, %cst {dimension_numbers = #tpu.dot_dimension_numbers<[1], [0], [0], [1], [0, 0, 1, 1], [], []>} : vector<176x512xbf16>, vector<512x64xbf16>, vector<176x64xf32> -> vector<176x64xf32>
    %c0_3 = arith.constant 0 : index
    %c0_4 = arith.constant 0 : index
    %3 = vector.load %arg3[%c0_3, %c0_4] : memref<1x64xf32, #tpu.memory_space<vmem>>, vector<1x64xf32>
    %4 = vector.broadcast %3 : vector<1x64xf32> to vector<176x64xf32>
    %5 = arith.addf %2, %4 : vector<176x64xf32>
    %cst_5 = arith.constant 0.000000e+00 : f32
    %6 = vector.broadcast %cst_5 : f32 to vector<176x64xf32>
    %7 = arith.maximumf %5, %6 : vector<176x64xf32>
    %8 = arith.truncf %7 : vector<176x64xf32> to vector<176x64xbf16>
    %c0_6 = arith.constant 0 : index
    %c0_7 = arith.constant 0 : index
    %9 = vector.load %arg4[%c0_6, %c0_7] : memref<176x64xbf16, #tpu.memory_space<vmem>>, vector<176x64xbf16>
    tpu.vector_store %arg4[%c0_6, %c0_7], %8 {strides = array<i32>} : memref<176x64xbf16, #tpu.memory_space<vmem>>, vector<176x64xbf16>,
    return
  }
  func.func @transform_0(%arg0: i32) -> (i32, i32) {
    %c0_i32 = arith.constant 0 : i32
    %c0_i32_0 = arith.constant 0 : i32
    return %arg0, %c0_i32 : i32, i32
  }
  func.func @transform_1(%arg0: i32) -> (i32, i32) {
    %c0_i32 = arith.constant 0 : i32
    %c0_i32_0 = arith.constant 0 : i32
    %c0_i32_1 = arith.constant 0 : i32
    return %c0_i32, %c0_i32_0 : i32, i32
  }
  func.func @transform_2(%arg0: i32) -> (i32, i32) {
    %c0_i32 = arith.constant 0 : i32
    %c0_i32_0 = arith.constant 0 : i32
    %c0_i32_1 = arith.constant 0 : i32
    return %c0_i32, %c0_i32_0 : i32, i32
  }
  func.func @transform_3(%arg0: i32) -> (i32, i32) {
    %c0_i32 = arith.constant 0 : i32
    %c0_i32_0 = arith.constant 0 : i32
    return %arg0, %c0_i32 : i32, i32
  }
}

module attributes {stable_mosaic.version = 11 : i64} {
  func.func @_matmul_bias_relu_kernel(%arg0: i32, %arg1: memref<112x576xbf16, #tpu.memory_space<vmem>>, %arg2: memref<576x32xbf16, #tpu.memory_space<vmem>>, %arg3: memref<1x32xf32, #tpu.memory_space<vmem>>, %arg4: memref<112x32xbf16, #tpu.memory_space<vmem>>) attributes {dimension_semantics = [#tpu.dimension_semantics<parallel>], iteration_bounds = array<i64: 1>, scalar_prefetch = 0 : i64, scratch_operands = 0 : i64, tpu.core_type = #tpu.core_type<tc>, window_params = [{transform_indices = @transform_0, window_bounds = array<i64: 112, 576>}, {pipeline_mode = #tpu.pipeline_mode<synchronous>, transform_indices = @transform_1, window_bounds = array<i64: 576, 32>}, {pipeline_mode = #tpu.pipeline_mode<synchronous>, transform_indices = @transform_2, window_bounds = array<i64: 1, 32>}, {transform_indices = @transform_3, window_bounds = array<i64: 112, 32>}]} {
    %c0 = arith.constant 0 : index
    %c0_0 = arith.constant 0 : index
    %0 = vector.load %arg1[%c0, %c0_0] : memref<112x576xbf16, #tpu.memory_space<vmem>>, vector<112x576xbf16>
    %c0_1 = arith.constant 0 : index
    %c0_2 = arith.constant 0 : index
    %1 = vector.load %arg2[%c0_1, %c0_2] : memref<576x32xbf16, #tpu.memory_space<vmem>>, vector<576x32xbf16>
    %cst = arith.constant dense<0.000000e+00> : vector<112x32xf32>
    %2 = tpu.matmul %0, %1, %cst {dimension_numbers = #tpu.dot_dimension_numbers<[1], [0], [0], [1], [0, 0, 1, 1], [], []>} : vector<112x576xbf16>, vector<576x32xbf16>, vector<112x32xf32> -> vector<112x32xf32>
    %c0_3 = arith.constant 0 : index
    %c0_4 = arith.constant 0 : index
    %3 = vector.load %arg3[%c0_3, %c0_4] : memref<1x32xf32, #tpu.memory_space<vmem>>, vector<1x32xf32>
    %4 = vector.broadcast %3 : vector<1x32xf32> to vector<112x32xf32>
    %5 = arith.addf %2, %4 : vector<112x32xf32>
    %cst_5 = arith.constant 0.000000e+00 : f32
    %6 = vector.broadcast %cst_5 : f32 to vector<112x32xf32>
    %7 = arith.maximumf %5, %6 : vector<112x32xf32>
    %8 = arith.truncf %7 : vector<112x32xf32> to vector<112x32xbf16>
    %c0_6 = arith.constant 0 : index
    %c0_7 = arith.constant 0 : index
    %9 = vector.load %arg4[%c0_6, %c0_7] : memref<112x32xbf16, #tpu.memory_space<vmem>>, vector<112x32xbf16>
    tpu.vector_store %arg4[%c0_6, %c0_7], %8 {strides = array<i32>} : memref<112x32xbf16, #tpu.memory_space<vmem>>, vector<112x32xbf16>,
    return
  }
  func.func @transform_0(%arg0: i32) -> (i32, i32) {
    %c0_i32 = arith.constant 0 : i32
    %c0_i32_0 = arith.constant 0 : i32
    return %arg0, %c0_i32 : i32, i32
  }
  func.func @transform_1(%arg0: i32) -> (i32, i32) {
    %c0_i32 = arith.constant 0 : i32
    %c0_i32_0 = arith.constant 0 : i32
    %c0_i32_1 = arith.constant 0 : i32
    return %c0_i32, %c0_i32_0 : i32, i32
  }
  func.func @transform_2(%arg0: i32) -> (i32, i32) {
    %c0_i32 = arith.constant 0 : i32
    %c0_i32_0 = arith.constant 0 : i32
    %c0_i32_1 = arith.constant 0 : i32
    return %c0_i32, %c0_i32_0 : i32, i32
  }
  func.func @transform_3(%arg0: i32) -> (i32, i32) {
    %c0_i32 = arith.constant 0 : i32
    %c0_i32_0 = arith.constant 0 : i32
    return %arg0, %c0_i32 : i32, i32
  }
}

module attributes {stable_mosaic.version = 11 : i64} {
  func.func @_tail_kernel(%arg0: i32, %arg1: memref<16x1568xbf16, #tpu.memory_space<vmem>>, %arg2: memref<1568x512xbf16, #tpu.memory_space<vmem>>, %arg3: memref<1x512xf32, #tpu.memory_space<vmem>>, %arg4: memref<512x128xbf16, #tpu.memory_space<vmem>>, %arg5: memref<1x128xf32, #tpu.memory_space<vmem>>, %arg6: memref<16x128xf32, #tpu.memory_space<vmem>>) attributes {dimension_semantics = [#tpu.dimension_semantics<parallel>], iteration_bounds = array<i64: 1>, scalar_prefetch = 0 : i64, scratch_operands = 0 : i64, tpu.core_type = #tpu.core_type<tc>, window_params = [{transform_indices = @transform_0, window_bounds = array<i64: 16, 1568>}, {pipeline_mode = #tpu.pipeline_mode<synchronous>, transform_indices = @transform_1, window_bounds = array<i64: 1568, 512>}, {pipeline_mode = #tpu.pipeline_mode<synchronous>, transform_indices = @transform_2, window_bounds = array<i64: 1, 512>}, {pipeline_mode = #tpu.pipeline_mode<synchronous>, transform_indices = @transform_3, window_bounds = array<i64: 512, 128>}, {pipeline_mode = #tpu.pipeline_mode<synchronous>, transform_indices = @transform_4, window_bounds = array<i64: 1, 128>}, {transform_indices = @transform_5, window_bounds = array<i64: 16, 128>}]} {
    %c0 = arith.constant 0 : index
    %c0_0 = arith.constant 0 : index
    %0 = vector.load %arg1[%c0, %c0_0] : memref<16x1568xbf16, #tpu.memory_space<vmem>>, vector<16x1568xbf16>
    %c0_1 = arith.constant 0 : index
    %c0_2 = arith.constant 0 : index
    %1 = vector.load %arg2[%c0_1, %c0_2] : memref<1568x512xbf16, #tpu.memory_space<vmem>>, vector<1568x512xbf16>
    %cst = arith.constant dense<0.000000e+00> : vector<16x512xf32>
    %2 = tpu.matmul %0, %1, %cst {dimension_numbers = #tpu.dot_dimension_numbers<[1], [0], [0], [1], [0, 0, 1, 1], [], []>} : vector<16x1568xbf16>, vector<1568x512xbf16>, vector<16x512xf32> -> vector<16x512xf32>
    %c0_3 = arith.constant 0 : index
    %c0_4 = arith.constant 0 : index
    %3 = vector.load %arg3[%c0_3, %c0_4] : memref<1x512xf32, #tpu.memory_space<vmem>>, vector<1x512xf32>
    %4 = vector.broadcast %3 : vector<1x512xf32> to vector<16x512xf32>
    %5 = arith.addf %2, %4 : vector<16x512xf32>
    %cst_5 = arith.constant 0.000000e+00 : f32
    %6 = vector.broadcast %cst_5 : f32 to vector<16x512xf32>
    %7 = arith.maximumf %5, %6 : vector<16x512xf32>
    %8 = arith.truncf %7 : vector<16x512xf32> to vector<16x512xbf16>
    %c0_6 = arith.constant 0 : index
    %c0_7 = arith.constant 0 : index
    %9 = vector.load %arg4[%c0_6, %c0_7] : memref<512x128xbf16, #tpu.memory_space<vmem>>, vector<512x128xbf16>
    %cst_8 = arith.constant dense<0.000000e+00> : vector<16x128xf32>
    %10 = tpu.matmul %8, %9, %cst_8 {dimension_numbers = #tpu.dot_dimension_numbers<[1], [0], [0], [1], [0, 0, 1, 1], [], []>} : vector<16x512xbf16>, vector<512x128xbf16>, vector<16x128xf32> -> vector<16x128xf32>
    %c0_9 = arith.constant 0 : index
    %c0_10 = arith.constant 0 : index
    %11 = vector.load %arg5[%c0_9, %c0_10] : memref<1x128xf32, #tpu.memory_space<vmem>>, vector<1x128xf32>
    %12 = vector.broadcast %11 : vector<1x128xf32> to vector<16x128xf32>
    %13 = arith.addf %10, %12 : vector<16x128xf32>
    %14 = tpu.iota {dimensions = array<i32: 1>} : vector<16x128xi32>
    %c6_i32 = arith.constant 6 : i32
    %15 = vector.broadcast %c6_i32 : i32 to vector<16x128xi32>
    %16 = arith.cmpi slt, %14, %15 : vector<16x128xi32>
    %cst_11 = arith.constant -1.000000e+30 : f32
    %17 = vector.broadcast %cst_11 : f32 to vector<16x128xf32>
    %18 = arith.select %16, %13, %17 : vector<16x128xi1>, vector<16x128xf32>
    %cst_12 = arith.constant dense<0xFF800000> : vector<16xf32>
    %19 = vector.multi_reduction <maximumf>, %18, %cst_12 [1] : vector<16x128xf32> to vector<16xf32>
    %20 = vector.shape_cast %19 : vector<16xf32> to vector<16x1xf32>
    %21 = vector.broadcast %20 : vector<16x1xf32> to vector<16x128xf32>
    %22 = arith.subf %13, %21 : vector<16x128xf32>
    %23 = math.exp %22 : vector<16x128xf32>
    %cst_13 = arith.constant 0.000000e+00 : f32
    %24 = vector.broadcast %cst_13 : f32 to vector<16x128xf32>
    %25 = arith.select %16, %23, %24 : vector<16x128xi1>, vector<16x128xf32>
    %cst_14 = arith.constant dense<0.000000e+00> : vector<16xf32>
    %26 = vector.multi_reduction <add>, %25, %cst_14 [1] : vector<16x128xf32> to vector<16xf32>
    %27 = vector.shape_cast %26 : vector<16xf32> to vector<16x1xf32>
    %28 = vector.broadcast %27 : vector<16x1xf32> to vector<16x128xf32>
    %29 = arith.divf %25, %28 : vector<16x128xf32>
    %c6_i32_15 = arith.constant 6 : i32
    %30 = vector.broadcast %c6_i32_15 : i32 to vector<16x128xi32>
    %31 = arith.cmpi eq, %14, %30 : vector<16x128xi32>
    %cst_16 = arith.constant 0.000000e+00 : f32
    %32 = vector.broadcast %cst_16 : f32 to vector<16x128xf32>
    %33 = arith.select %31, %13, %32 : vector<16x128xi1>, vector<16x128xf32>
    %34 = arith.addf %29, %33 : vector<16x128xf32>
    %c0_17 = arith.constant 0 : index
    %c0_18 = arith.constant 0 : index
    %35 = vector.load %arg6[%c0_17, %c0_18] : memref<16x128xf32, #tpu.memory_space<vmem>>, vector<16x128xf32>
    tpu.vector_store %arg6[%c0_17, %c0_18], %34 {strides = array<i32>} : memref<16x128xf32, #tpu.memory_space<vmem>>, vector<16x128xf32>,
    return
  }
  func.func @transform_0(%arg0: i32) -> (i32, i32) {
    %c0_i32 = arith.constant 0 : i32
    %c0_i32_0 = arith.constant 0 : i32
    return %arg0, %c0_i32 : i32, i32
  }
  func.func @transform_1(%arg0: i32) -> (i32, i32) {
    %c0_i32 = arith.constant 0 : i32
    %c0_i32_0 = arith.constant 0 : i32
    %c0_i32_1 = arith.constant 0 : i32
    return %c0_i32, %c0_i32_0 : i32, i32
  }
  func.func @transform_2(%arg0: i32) -> (i32, i32) {
    %c0_i32 = arith.constant 0 : i32
    %c0_i32_0 = arith.constant 0 : i32
    %c0_i32_1 = arith.constant 0 : i32
    return %c0_i32, %c0_i32_0 : i32, i32
  }
  func.func @transform_3(%arg0: i32) -> (i32, i32) {
    %c0_i32 = arith.constant 0 : i32
    %c0_i32_0 = arith.constant 0 : i32
    %c0_i32_1 = arith.constant 0 : i32
    return %c0_i32, %c0_i32_0 : i32, i32
  }
  func.func @transform_4(%arg0: i32) -> (i32, i32) {
    %c0_i32 = arith.constant 0 : i32
    %c0_i32_0 = arith.constant 0 : i32
    %c0_i32_1 = arith.constant 0 : i32
    return %c0_i32, %c0_i32_0 : i32, i32
  }
  func.func @transform_5(%arg0: i32) -> (i32, i32) {
    %c0_i32 = arith.constant 0 : i32
    %c0_i32_0 = arith.constant 0 : i32
    return %arg0, %c0_i32 : i32, i32
  }
}

</mosaic_0001>

<llo_original>
// kernel: actor_critic_forward.4
$region0: #{actor_critic_forward.4}
  #allocation0 [shape = 'u32[]', space=smem, size = 0x4, offset = 0x4, fixed_abs, tag = 'smem constant byte address 0x4 - core index']
  #allocation1 [shape = 'u32[72,128]{1,0:T(1,128)}', space=vmem, size = 0x9000, scoped, tag = 'internal scratch']
  %s0 = inlined_call_operand.vmem [shape: bf16[800,256], index: 0, kind: input, shape index: {}]
  %s1 = inlined_call_operand.vmem [shape: bf16[256,32], index: 1, kind: input, shape index: {}]
  %s2 = inlined_call_operand.vmem [shape: f32[1,32], index: 2, kind: input, shape index: {}]
  %s3 = inlined_call_operand.vmem [shape: bf16[800,32], index: 3, kind: output, shape index: {}]
  %s4 = sld [smem:[#allocation0]]
  $region45: #{actor_critic_forward.4} parent=0
    _
  %s6 = ssub.s32 1, %s4
  %s7 = scalar_select 0, %s6, %s4
  loop: start=0, step=1, limit=7
  $region2: #{actor_critic_forward.4} parent=0 // loop_pre_header
    _
  $region3: #{actor_critic_forward.4} parent=0 // loop_header
    %s9 = sphi 0, %s13
    %p10 = scmp.ge.s32.totalorder %s9, 7
    %s19 = sphi 0, %s21
    %s22 = sphi 0, %s19
    %s23 = sphi 0, %s22
    %s39 = sphi 0, %s23
    %s43 = sphi 0, %s43
    %s45 = sphi 0, %s43
    %s46 = sphi 0, %s45
    %s60 = sphi 0, %s46
    %s64 = sphi 0, %s64
    %s66 = sphi 0, %s64
    %s67 = sphi 0, %s66
    %s81 = sphi 0, %s67
    %s87 = sphi 0, %s89
    %s90 = sphi 0, %s87
    %s91 = sphi 0, %s90
    %s107 = sphi 0, %s91
  $region4: #{actor_critic_forward.4} parent=0 // loop_header_branch
    %12 = sbr.rel (%p10) target = $region8
  $region5: #{actor_critic_forward.4} parent=0 // loop_body
    %s14 = ssub.s32 %s9, 1
    %s15 = ssub.s32 %s9, 2
    %s16 = sadd.s32 %s9, 1
    %s17 = ssub.s32 %s9, %s16
    %p18 = scmp.eq.s32.totalorder %s17, 0
    %s20 = sadd.s32 %s19, 1
    %s21 = scalar_select %p18, %s19, %s20
    %p24 = pneg %p18
    %p25 = scmp.eq.s32.totalorder %s9, 4
    %p26 = por %p24, %p25
    %p27 = scmp.ne.s32.totalorder %s19, %s22
    %p28 = scmp.eq.s32.totalorder %s9, 0
    %p29 = por %p27, %p28
    %p30 = scmp.ne.s32.totalorder %s19, %s22
    %p31 = scmp.eq.s32.totalorder %s14, 4
    %p32 = por %p30, %p31
    %p33 = scmp.ne.s32.totalorder %s22, %s23
    %p34 = scmp.eq.s32.totalorder %s14, 0
    %p35 = por %p33, %p34
    %p36 = scmp.ne.s32.totalorder %s22, %s23
    %p37 = scmp.eq.s32.totalorder %s15, 4
    %p38 = por %p36, %p37
    %p40 = scmp.ne.s32.totalorder %s23, %s39
    %p41 = scmp.eq.s32.totalorder %s15, 0
    %p42 = por %p40, %p41
    %s44 = sadd.s32 %s43, 1
    %p47 = scmp.eq.s32.totalorder %s9, 4
    %p48 = scmp.ne.s32.totalorder %s43, %s45
    %p49 = scmp.eq.s32.totalorder %s9, 0
    %p50 = por %p48, %p49
    %p51 = scmp.ne.s32.totalorder %s43, %s45
    %p52 = scmp.eq.s32.totalorder %s14, 4
    %p53 = por %p51, %p52
    %p54 = scmp.ne.s32.totalorder %s45, %s46
    %p55 = scmp.eq.s32.totalorder %s14, 0
    %p56 = por %p54, %p55
    %p57 = scmp.ne.s32.totalorder %s45, %s46
    %p58 = scmp.eq.s32.totalorder %s15, 4
    %p59 = por %p57, %p58
    %p61 = scmp.ne.s32.totalorder %s46, %s60
    %p62 = scmp.eq.s32.totalorder %s15, 0
    %p63 = por %p61, %p62
    %s65 = sadd.s32 %s64, 1
    %p68 = scmp.eq.s32.totalorder %s9, 4
    %p69 = scmp.ne.s32.totalorder %s64, %s66
    %p70 = scmp.eq.s32.totalorder %s9, 0
    %p71 = por %p69, %p70
    %p72 = scmp.ne.s32.totalorder %s64, %s66
    %p73 = scmp.eq.s32.totalorder %s14, 4
    %p74 = por %p72, %p73
    %p75 = scmp.ne.s32.totalorder %s66, %s67
    %p76 = scmp.eq.s32.totalorder %s14, 0
    %p77 = por %p75, %p76
    %p78 = scmp.ne.s32.totalorder %s66, %s67
    %p79 = scmp.eq.s32.totalorder %s15, 4
    %p80 = por %p78, %p79
    %p82 = scmp.ne.s32.totalorder %s67, %s81
    %p83 = scmp.eq.s32.totalorder %s15, 0
    %p84 = por %p82, %p83
    %s85 = ssub.s32 %s9, %s16
    %p86 = scmp.eq.s32.totalorder %s85, 0
    %s88 = sadd.s32 %s87, 1
    %s89 = scalar_select %p86, %s87, %s88
    %p92 = pneg %p86
    %p93 = scmp.eq.s32.totalorder %s9, 4
    %p94 = por %p92, %p93
    %p95 = scmp.ne.s32.totalorder %s87, %s90
    %p96 = scmp.eq.s32.totalorder %s9, 0
    %p97 = por %p95, %p96
    %p98 = scmp.ne.s32.totalorder %s87, %s90
    %p99 = scmp.eq.s32.totalorder %s14, 4
    %p100 = por %p98, %p99
    %p101 = scmp.ne.s32.totalorder %s90, %s91
    %p102 = scmp.eq.s32.totalorder %s14, 0
    %p103 = por %p101, %p102
    %p104 = scmp.ne.s32.totalorder %s90, %s91
    %p105 = scmp.eq.s32.totalorder %s15, 4
    %p106 = por %p104, %p105
    %p108 = scmp.ne.s32.totalorder %s91, %s107
    %p109 = scmp.eq.s32.totalorder %s15, 0
    %p110 = por %p108, %p109
    %p111 = scmp.le.s32.totalorder 1, %s9
    %p112 = scmp.lt.s32.totalorder %s9, 6
    %p113 = pnand %p111, %p112
    %p114 = pneg %p113
    // Predicated region
    $region9: #{actor_critic_forward.4} parent=5 // pred_check
      _
    $region10: #{actor_critic_forward.4} parent=5 // pred_check_branch
      %116 = sbr.rel (%p113) target = $region12
    $region11: #{actor_critic_forward.4} parent=5 // pred_region
      %s117 = ssub.s32 %s9, 1
      // Predicated region
      $region13: #{actor_critic_forward.4} parent=11 // pred_check
        %p118 = pneg %p56
      $region14: #{actor_critic_forward.4} parent=11 // pred_check_branch
        %120 = sbr.rel (%p118) target = $region16
      $region15: #{actor_critic_forward.4} parent=11 // pred_region
        _
      $region16: #{actor_critic_forward.4} parent=11 // pred_fallthru
        _
      // Predicated region
      $region17: #{actor_critic_forward.4} parent=11 // pred_check
        %p121 = pneg %p77
      $region18: #{actor_critic_forward.4} parent=11 // pred_check_branch
        %123 = sbr.rel (%p121) target = $region20
      $region19: #{actor_critic_forward.4} parent=11 // pred_region
        _
      $region20: #{actor_critic_forward.4} parent=11 // pred_fallthru
        _
    $region12: #{actor_critic_forward.4} parent=5 // pred_fallthru
      _
    %p124 = scmp.lt.s32.totalorder %s9, 5
    // Predicated region
    $region21: #{actor_critic_forward.4} parent=5 // pred_check
      %p125 = pneg %p124
    $region22: #{actor_critic_forward.4} parent=5 // pred_check_branch
      %127 = sbr.rel (%p125) target = $region24
    $region23: #{actor_critic_forward.4} parent=5 // pred_region
      // Predicated region
      $region25: #{actor_critic_forward.4} parent=23 // pred_check
        %p128 = pneg %p29
      $region26: #{actor_critic_forward.4} parent=23 // pred_check_branch
        %130 = sbr.rel (%p128) target = $region28
      $region27: #{actor_critic_forward.4} parent=23 // pred_region
        %s131 = smul.u32 20, %s9
        %p132 = scmp.lt.s32.totalorder %s131, 99
        %s133 = scalar_select %p132, %s131, 99
        %s134 = smul.addr %s133, 2
        %s135 = smul.addr %s134, 4
        %s136 = scalar_lea.vmem %s0, %s135
        %s137 = smul.u32 20, %s9
      $region28: #{actor_critic_forward.4} parent=23 // pred_fallthru
        _
    $region24: #{actor_critic_forward.4} parent=5 // pred_fallthru
      _
    %p138 = scmp.le.s32.totalorder 1, %s9
    %p139 = scmp.lt.s32.totalorder %s9, 6
    %p140 = pnand %p138, %p139
    %p141 = pneg %p140
    // Predicated region
    $region29: #{actor_critic_forward.4} parent=5 // pred_check
      _
    $region30: #{actor_critic_forward.4} parent=5 // pred_check_branch
      %143 = sbr.rel (%p140) target = $region32
    $region31: #{actor_critic_forward.4} parent=5 // pred_region
      %s144 = ssub.s32 %s9, 1
      %s145 = smul.u32 20, %s14
      %p146 = scmp.lt.s32.totalorder %s145, 99
      %s147 = scalar_select %p146, %s145, 99
      %s148 = smul.addr %s147, 2
      %s149 = smul.addr %s148, 4
      %s150 = scalar_lea.vmem %s0, %s149
      %p151 = pneg %p35
      %p152 = pneg %p32
      %p153 = pneg %p56
      %p154 = pneg %p53
      %p155 = pneg %p77
      %p156 = pneg %p74
      %p157 = pneg %p103
      %p158 = pneg %p100
      %s159 = smul.u32 20, %s14
      %p160 = scmp.lt.s32.totalorder %s159, 99
      %s161 = scalar_select %p160, %s159, 99
      %s162 = smul.addr %s161, 4
      %s163 = scalar_lea.vmem %s3, %s162
      %s164 = smul.u32 20, %s14
      %p165 = scmp.lt.s32.totalorder %s164, 99
      %s166 = scalar_select %p165, %s164, 99
      %s167 = smul.addr %s166, 2
      %s168 = smul.addr %s167, 4
      %s169 = scalar_lea.vmem %s0, %s168
      %s170 = smul.u32 20, %s14
      %s171 = smul.u32 20, %s14
      %p172 = scmp.lt.s32.totalorder %s171, 99
      %s173 = scalar_select %p172, %s171, 99
      %s174 = smul.addr %s173, 4
      %s175 = scalar_lea.vmem %s3, %s174
      %s176 = smul.u32 20, %s14
      %v177 = vld [vmem:[%s169] sm:$0xff]
      %v178 = vld [vmem:[%s169 + $0x8] sm:$0xff]
      %v179 = vld [vmem:[%s169 + $0x10] sm:$0xff]
      %v180 = vld [vmem:[%s169 + $0x18] sm:$0xff]
      %v181 = vld [vmem:[%s169 + $0x20] sm:$0xff]
      %v182 = vld [vmem:[%s169 + $0x28] sm:$0xff]
      %v183 = vld [vmem:[%s169 + $0x30] sm:$0xff]
      %v184 = vld [vmem:[%s169 + $0x38] sm:$0xff]
      %v185 = vld [vmem:[%s169 + $0x40] sm:$0xff]
      %v186 = vld [vmem:[%s169 + $0x48] sm:$0xff]
      %v187 = vld [vmem:[%s169 + $0x50] sm:$0xff]
      %v188 = vld [vmem:[%s169 + $0x58] sm:$0xff]
      %v189 = vld [vmem:[%s169 + $0x60] sm:$0xff]
      %v190 = vld [vmem:[%s169 + $0x68] sm:$0xff]
      %v191 = vld [vmem:[%s169 + $0x70] sm:$0xff]
      %v192 = vld [vmem:[%s169 + $0x78] sm:$0xff]
      %v193 = vld [vmem:[%s169 + $0x80] sm:$0xff]
      %v194 = vld [vmem:[%s169 + $0x88] sm:$0xff]
      %v195 = vld [vmem:[%s169 + $0x90] sm:$0xff]
      %v196 = vld [vmem:[%s169 + $0x98] sm:$0xff]
      %v197 = vld [vmem:[%s1] sm:$0xf]
      %v198 = vld [vmem:[%s1 + $0x4] sm:$0xf]
      %v199 = vld [vmem:[%s1 + $0x8] sm:$0xf]
      %v200 = vld [vmem:[%s1 + $0xc] sm:$0xf]
      %v201 = vld [vmem:[%s1 + $0x10] sm:$0xf]
      %v202 = vld [vmem:[%s1 + $0x14] sm:$0xf]
      %v203 = vld [vmem:[%s1 + $0x18] sm:$0xf]
      %v204 = vld [vmem:[%s1 + $0x1c] sm:$0xf]
      %v205 = vld [vmem:[%s1 + $0x20] sm:$0xf]
      %v206 = vld [vmem:[%s1 + $0x24] sm:$0xf]
      %v207 = vld [vmem:[%s1 + $0x28] sm:$0xf]
      %v208 = vld [vmem:[%s1 + $0x2c] sm:$0xf]
      %v209 = vld [vmem:[%s1 + $0x30] sm:$0xf]
      %v210 = vld [vmem:[%s1 + $0x34] sm:$0xf]
      %v211 = vld [vmem:[%s1 + $0x38] sm:$0xf]
      %v212 = vld [vmem:[%s1 + $0x3c] sm:$0xf]
      %v213 = vld [vmem:[%s1 + $0x40] sm:$0xf]
      %v214 = vld [vmem:[%s1 + $0x44] sm:$0xf]
      %v215 = vld [vmem:[%s1 + $0x48] sm:$0xf]
      %v216 = vld [vmem:[%s1 + $0x4c] sm:$0xf]
      %v217 = vld [vmem:[%s1 + $0x50] sm:$0xf]
      %v218 = vld [vmem:[%s1 + $0x54] sm:$0xf]
      %v219 = vld [vmem:[%s1 + $0x58] sm:$0xf]
      %v220 = vld [vmem:[%s1 + $0x5c] sm:$0xf]
      %v221 = vld [vmem:[%s1 + $0x60] sm:$0xf]
      %v222 = vld [vmem:[%s1 + $0x64] sm:$0xf]
      %v223 = vld [vmem:[%s1 + $0x68] sm:$0xf]
      %v224 = vld [vmem:[%s1 + $0x6c] sm:$0xf]
      %v225 = vld [vmem:[%s1 + $0x70] sm:$0xf]
      %v226 = vld [vmem:[%s1 + $0x74] sm:$0xf]
      %v227 = vld [vmem:[%s1 + $0x78] sm:$0xf]
      %v228 = vld [vmem:[%s1 + $0x7c] sm:$0xf]
      %v229 = vld [vmem:[%s2] sm:$0x1]
      %v231 = vperm.slane %v229, 0
      %v253 = vunpack.c.l.b16 %v177
      %v254 = vunpack.c.h.b16 %v177
      %v255 = vunpack.c.l.b16 %v178
      %v256 = vunpack.c.h.b16 %v178
      %v257 = vunpack.c.l.b16 %v179
      %v258 = vunpack.c.h.b16 %v179
      %v259 = vunpack.c.l.b16 %v180
      %v260 = vunpack.c.h.b16 %v180
      %v261 = vunpack.c.l.b16 %v181
      %v262 = vunpack.c.h.b16 %v181
      %v263 = vunpack.c.l.b16 %v182
      %v264 = vunpack.c.h.b16 %v182
      %v265 = vunpack.c.l.b16 %v183
      %v266 = vunpack.c.h.b16 %v183
      %v267 = vunpack.c.l.b16 %v184
      %v268 = vunpack.c.h.b16 %v184
      %v269 = vunpack.c.l.b16 %v185
      %v270 = vunpack.c.h.b16 %v185
      %v271 = vunpack.c.l.b16 %v186
      %v272 = vunpack.c.h.b16 %v186
      %v273 = vunpack.c.l.b16 %v187
      %v274 = vunpack.c.h.b16 %v187
      %v275 = vunpack.c.l.b16 %v188
      %v276 = vunpack.c.h.b16 %v188
      %v277 = vunpack.c.l.b16 %v189
      %v278 = vunpack.c.h.b16 %v189
      %v279 = vunpack.c.l.b16 %v190
      %v280 = vunpack.c.h.b16 %v190
      %v281 = vunpack.c.l.b16 %v191
      %v282 = vunpack.c.h.b16 %v191
      %v283 = vunpack.c.l.b16 %v192
      %v284 = vunpack.c.h.b16 %v192
      %v285 = vunpack.c.l.b16 %v193
      %v286 = vunpack.c.h.b16 %v193
      %v287 = vunpack.c.l.b16 %v194
      %v288 = vunpack.c.h.b16 %v194
      %v289 = vunpack.c.l.b16 %v195
      %v290 = vunpack.c.h.b16 %v195
      %v291 = vunpack.c.l.b16 %v196
      %v292 = vunpack.c.h.b16 %v196
      %v293 = vpack.c.b16 %v255, %v253
      %v294 = vpack.c.b16 %v256, %v254
      %v295 = vpack.c.b16 %v259, %v257
      %v296 = vpack.c.b16 %v260, %v258
      %v297 = vpack.c.b16 %v263, %v261
      %v298 = vpack.c.b16 %v264, %v262
      %v299 = vpack.c.b16 %v267, %v265
      %v300 = vpack.c.b16 %v268, %v266
      %v301 = vpack.c.b16 %v271, %v269
      %v302 = vpack.c.b16 %v272, %v270
      %v303 = vpack.c.b16 %v275, %v273
      %v304 = vpack.c.b16 %v276, %v274
      %v305 = vpack.c.b16 %v279, %v277
      %v306 = vpack.c.b16 %v280, %v278
      %v307 = vpack.c.b16 %v283, %v281
      %v308 = vpack.c.b16 %v284, %v282
      %v309 = vpack.c.b16 %v287, %v285
      %v310 = vpack.c.b16 %v288, %v286
      %v311 = vpack.c.b16 %v291, %v289
      %v312 = vpack.c.b16 %v292, %v290
      %v365 = vunpack.c.l.b16 %v197
      %v366 = vunpack.c.l.b16 %v198
      %v367 = vunpack.c.l.b16 %v199
      %v368 = vunpack.c.l.b16 %v200
      %v369 = vunpack.c.l.b16 %v201
      %v370 = vunpack.c.l.b16 %v202
      %v371 = vunpack.c.l.b16 %v203
      %v372 = vunpack.c.l.b16 %v204
      %v373 = vunpack.c.l.b16 %v205
      %v374 = vunpack.c.l.b16 %v206
      %v375 = vunpack.c.l.b16 %v207
      %v376 = vunpack.c.l.b16 %v208
      %v377 = vunpack.c.l.b16 %v209
      %v378 = vunpack.c.l.b16 %v210
      %v379 = vunpack.c.l.b16 %v211
      %v380 = vunpack.c.l.b16 %v212
      %v381 = vunpack.c.l.b16 %v213
      %v382 = vunpack.c.l.b16 %v214
      %v383 = vunpack.c.l.b16 %v215
      %v384 = vunpack.c.l.b16 %v216
      %v385 = vunpack.c.l.b16 %v217
      %v386 = vunpack.c.l.b16 %v218
      %v387 = vunpack.c.l.b16 %v219
      %v388 = vunpack.c.l.b16 %v220
      %v389 = vunpack.c.l.b16 %v221
      %v390 = vunpack.c.l.b16 %v222
      %v391 = vunpack.c.l.b16 %v223
      %v392 = vunpack.c.l.b16 %v224
      %v393 = vunpack.c.l.b16 %v225
      %v394 = vunpack.c.l.b16 %v226
      %v395 = vunpack.c.l.b16 %v227
      %v396 = vunpack.c.l.b16 %v228
      %v397 = vpack.c.b16 %v366, %v365
      %v398 = vpack.c.b16 %v368, %v367
      %v399 = vpack.c.b16 %v370, %v369
      %v400 = vpack.c.b16 %v372, %v371
      %v401 = vpack.c.b16 %v374, %v373
      %v402 = vpack.c.b16 %v376, %v375
      %v403 = vpack.c.b16 %v378, %v377
      %v404 = vpack.c.b16 %v380, %v379
      %v405 = vpack.c.b16 %v382, %v381
      %v406 = vpack.c.b16 %v384, %v383
      %v407 = vpack.c.b16 %v386, %v385
      %v408 = vpack.c.b16 %v388, %v387
      %v409 = vpack.c.b16 %v390, %v389
      %v410 = vpack.c.b16 %v392, %v391
      %v411 = vpack.c.b16 %v394, %v393
      %v412 = vpack.c.b16 %v396, %v395
      %429 = vmatpush.bf16.msra.mxu0 %v404
      %430 = vmatpush.bf16.msra.mxu0 %v403
      %431 = vmatpush.bf16.msra.mxu0 %v402
      %432 = vmatpush.bf16.msra.mxu0 %v401
      %433 = vmatpush.bf16.msra.mxu0 %v400
      %434 = vmatpush.bf16.msra.mxu0 %v399
      %435 = vmatpush.bf16.msra.mxu0 %v398
      %436 = vmatpush.bf16.msra.mxu0 %v397
      %437 = vmatmul.bf16.gmra.mxu0 %v293
      %v438 = vpop.f32.mrf.mxu0
      %v439 = vadd.f32 %v231, %v438
      %v440 = vpop.f32.mrf.mxu0
      %v441 = vadd.f32 %v231, %v440
      %442 = vmatmul.bf16.gmra.mxu0 %v295
      %v443 = vpop.f32.mrf.mxu0
      %v444 = vadd.f32 %v231, %v443
      %v445 = vpop.f32.mrf.mxu0
      %v446 = vadd.f32 %v231, %v445
      %447 = vmatmul.bf16.gmra.mxu0 %v297
      %v448 = vpop.f32.mrf.mxu0
      %v449 = vadd.f32 %v231, %v448
      %v450 = vpop.f32.mrf.mxu0
      %v451 = vadd.f32 %v231, %v450
      %452 = vmatmul.bf16.gmra.mxu0 %v299
      %v453 = vpop.f32.mrf.mxu0
      %v454 = vadd.f32 %v231, %v453
      %v455 = vpop.f32.mrf.mxu0
      %v456 = vadd.f32 %v231, %v455
      %457 = vmatmul.bf16.gmra.mxu0 %v301
      %v458 = vpop.f32.mrf.mxu0
      %v459 = vadd.f32 %v231, %v458
      %v460 = vpop.f32.mrf.mxu0
      %v461 = vadd.f32 %v231, %v460
      %462 = vmatmul.bf16.gmra.mxu0 %v303
      %v463 = vpop.f32.mrf.mxu0
      %v464 = vadd.f32 %v231, %v463
      %v465 = vpop.f32.mrf.mxu0
      %v466 = vadd.f32 %v231, %v465
      %467 = vmatmul.bf16.gmra.mxu0 %v305
      %v468 = vpop.f32.mrf.mxu0
      %v469 = vadd.f32 %v231, %v468
      %v470 = vpop.f32.mrf.mxu0
      %v471 = vadd.f32 %v231, %v470
      %472 = vmatmul.bf16.gmra.mxu0 %v307
      %v473 = vpop.f32.mrf.mxu0
      %v474 = vadd.f32 %v231, %v473
      %v475 = vpop.f32.mrf.mxu0
      %v476 = vadd.f32 %v231, %v475
      %477 = vmatmul.bf16.gmra.mxu0 %v309
      %v478 = vpop.f32.mrf.mxu0
      %v479 = vadd.f32 %v231, %v478
      %v480 = vpop.f32.mrf.mxu0
      %v481 = vadd.f32 %v231, %v480
      %482 = vmatmul.bf16.gmra.mxu0 %v311
      %v483 = vpop.f32.mrf.mxu0
      %v484 = vadd.f32 %v231, %v483
      %v485 = vpop.f32.mrf.mxu0
      %v486 = vadd.f32 %v231, %v485
      %487 = vdwg.mxu0
      %488 = vmatpush.bf16.msra.mxu0 %v412
      %489 = vmatpush.bf16.msra.mxu0 %v411
      %490 = vmatpush.bf16.msra.mxu0 %v410
      %491 = vmatpush.bf16.msra.mxu0 %v409
      %492 = vmatpush.bf16.msra.mxu0 %v408
      %493 = vmatpush.bf16.msra.mxu0 %v407
      %494 = vmatpush.bf16.msra.mxu0 %v406
      %495 = vmatpush.bf16.msra.mxu0 %v405
      %496 = vmatmul.bf16.gmra.mxu0 %v294
      %v497 = vpop.f32.mrf.mxu0
      %v498 = vadd.f32 %v439, %v497
      %v499 = vpop.f32.mrf.mxu0
      %v500 = vadd.f32 %v441, %v499
      %501 = vmatmul.bf16.gmra.mxu0 %v296
      %v502 = vpop.f32.mrf.mxu0
      %v503 = vadd.f32 %v444, %v502
      %v504 = vpop.f32.mrf.mxu0
      %v505 = vadd.f32 %v446, %v504
      %506 = vmatmul.bf16.gmra.mxu0 %v298
      %v507 = vpop.f32.mrf.mxu0
      %v508 = vadd.f32 %v449, %v507
      %v509 = vpop.f32.mrf.mxu0
      %v510 = vadd.f32 %v451, %v509
      %511 = vmatmul.bf16.gmra.mxu0 %v300
      %v512 = vpop.f32.mrf.mxu0
      %v513 = vadd.f32 %v454, %v512
      %v514 = vpop.f32.mrf.mxu0
      %v515 = vadd.f32 %v456, %v514
      %516 = vmatmul.bf16.gmra.mxu0 %v302
      %v517 = vpop.f32.mrf.mxu0
      %v518 = vadd.f32 %v459, %v517
      %v519 = vpop.f32.mrf.mxu0
      %v520 = vadd.f32 %v461, %v519
      %521 = vmatmul.bf16.gmra.mxu0 %v304
      %v522 = vpop.f32.mrf.mxu0
      %v523 = vadd.f32 %v464, %v522
      %v524 = vpop.f32.mrf.mxu0
      %v525 = vadd.f32 %v466, %v524
      %526 = vmatmul.bf16.gmra.mxu0 %v306
      %v527 = vpop.f32.mrf.mxu0
      %v528 = vadd.f32 %v469, %v527
      %v529 = vpop.f32.mrf.mxu0
      %v530 = vadd.f32 %v471, %v529
      %531 = vmatmul.bf16.gmra.mxu0 %v308
      %v532 = vpop.f32.mrf.mxu0
      %v533 = vadd.f32 %v474, %v532
      %v534 = vpop.f32.mrf.mxu0
      %v535 = vadd.f32 %v476, %v534
      %536 = vmatmul.bf16.gmra.mxu0 %v310
      %v537 = vpop.f32.mrf.mxu0
      %v538 = vadd.f32 %v479, %v537
      %v539 = vpop.f32.mrf.mxu0
      %v540 = vadd.f32 %v481, %v539
      %541 = vmatmul.bf16.gmra.mxu0 %v312
      %v542 = vpop.f32.mrf.mxu0
      %v543 = vadd.f32 %v484, %v542
      %v544 = vpop.f32.mrf.mxu0
      %v545 = vadd.f32 %v486, %v544
      %546 = vdwg.mxu0
      %v547 = vmax.f32 %v498, 0.0
      %v548 = vmax.f32 %v500, 0.0
      %v549 = vmax.f32 %v503, 0.0
      %v550 = vmax.f32 %v505, 0.0
      %v551 = vmax.f32 %v508, 0.0
      %v552 = vmax.f32 %v510, 0.0
      %v553 = vmax.f32 %v513, 0.0
      %v554 = vmax.f32 %v515, 0.0
      %v555 = vmax.f32 %v518, 0.0
      %v556 = vmax.f32 %v520, 0.0
      %v557 = vmax.f32 %v523, 0.0
      %v558 = vmax.f32 %v525, 0.0
      %v559 = vmax.f32 %v528, 0.0
      %v560 = vmax.f32 %v530, 0.0
      %v561 = vmax.f32 %v533, 0.0
      %v562 = vmax.f32 %v535, 0.0
      %v563 = vmax.f32 %v538, 0.0
      %v564 = vmax.f32 %v540, 0.0
      %v565 = vmax.f32 %v543, 0.0
      %v566 = vmax.f32 %v545, 0.0
      %v567 = vpack.c.bf16 %v547, %v547
      %v568 = vpack.c.bf16 %v548, %v548
      %v569 = vpack.c.bf16 %v549, %v549
      %v570 = vpack.c.bf16 %v550, %v550
      %v571 = vpack.c.bf16 %v551, %v551
      %v572 = vpack.c.bf16 %v552, %v552
      %v573 = vpack.c.bf16 %v553, %v553
      %v574 = vpack.c.bf16 %v554, %v554
      %v575 = vpack.c.bf16 %v555, %v555
      %v576 = vpack.c.bf16 %v556, %v556
      %v577 = vpack.c.bf16 %v557, %v557
      %v578 = vpack.c.bf16 %v558, %v558
      %v579 = vpack.c.bf16 %v559, %v559
      %v580 = vpack.c.bf16 %v560, %v560
      %v581 = vpack.c.bf16 %v561, %v561
      %v582 = vpack.c.bf16 %v562, %v562
      %v583 = vpack.c.bf16 %v563, %v563
      %v584 = vpack.c.bf16 %v564, %v564
      %v585 = vpack.c.bf16 %v565, %v565
      %v586 = vpack.c.bf16 %v566, %v566
      %vm587 = vcmask 257024
      %588 = vst.msk [vmem:[%s175] sm:$0xf] %vm587, %v567
      %589 = vst.msk [vmem:[%s175 + $0x4] sm:$0xf] %vm587, %v568
      %590 = vst.msk [vmem:[%s175 + $0x8] sm:$0xf] %vm587, %v569
      %591 = vst.msk [vmem:[%s175 + $0xc] sm:$0xf] %vm587, %v570
      %592 = vst.msk [vmem:[%s175 + $0x10] sm:$0xf] %vm587, %v571
      %593 = vst.msk [vmem:[%s175 + $0x14] sm:$0xf] %vm587, %v572
      %594 = vst.msk [vmem:[%s175 + $0x18] sm:$0xf] %vm587, %v573
      %595 = vst.msk [vmem:[%s175 + $0x1c] sm:$0xf] %vm587, %v574
      %596 = vst.msk [vmem:[%s175 + $0x20] sm:$0xf] %vm587, %v575
      %597 = vst.msk [vmem:[%s175 + $0x24] sm:$0xf] %vm587, %v576
      %598 = vst.msk [vmem:[%s175 + $0x28] sm:$0xf] %vm587, %v577
      %599 = vst.msk [vmem:[%s175 + $0x2c] sm:$0xf] %vm587, %v578
      %600 = vst.msk [vmem:[%s175 + $0x30] sm:$0xf] %vm587, %v579
      %601 = vst.msk [vmem:[%s175 + $0x34] sm:$0xf] %vm587, %v580
      %602 = vst.msk [vmem:[%s175 + $0x38] sm:$0xf] %vm587, %v581
      %603 = vst.msk [vmem:[%s175 + $0x3c] sm:$0xf] %vm587, %v582
      %604 = vst.msk [vmem:[%s175 + $0x40] sm:$0xf] %vm587, %v583
      %605 = vst.msk [vmem:[%s175 + $0x44] sm:$0xf] %vm587, %v584
      %606 = vst.msk [vmem:[%s175 + $0x48] sm:$0xf] %vm587, %v585
      %607 = vst.msk [vmem:[%s175 + $0x4c] sm:$0xf] %vm587, %v586
      %s608 = smul.u32 20, %s14
      %p609 = scmp.lt.s32.totalorder %s608, 99
      %s610 = scalar_select %p609, %s608, 99
      %s611 = smul.addr %s610, 4
      %s612 = scalar_lea.vmem %s3, %s611
      // Predicated region
      $region33: #{actor_critic_forward.4} parent=31 // pred_check
        %p613 = pneg %p100
      $region34: #{actor_critic_forward.4} parent=31 // pred_check_branch
        %615 = sbr.rel (%p613) target = $region36
      $region35: #{actor_critic_forward.4} parent=31 // pred_region
        %s616 = smul.u32 20, %s14
      $region36: #{actor_critic_forward.4} parent=31 // pred_fallthru
        _
    $region32: #{actor_critic_forward.4} parent=5 // pred_fallthru
      _
    %p617 = scmp.le.s32.totalorder 2, %s9
    // Predicated region
    $region37: #{actor_critic_forward.4} parent=5 // pred_check
      %p618 = pneg %p617
    $region38: #{actor_critic_forward.4} parent=5 // pred_check_branch
      %620 = sbr.rel (%p618) target = $region40
    $region39: #{actor_critic_forward.4} parent=5 // pred_region
      %s621 = ssub.s32 %s9, 2
      // Predicated region
      $region41: #{actor_critic_forward.4} parent=39 // pred_check
        %p622 = pneg %p106
      $region42: #{actor_critic_forward.4} parent=39 // pred_check_branch
        %624 = sbr.rel (%p622) target = $region44
      $region43: #{actor_critic_forward.4} parent=39 // pred_region
        %s625 = smul.u32 20, %s15
        %p626 = scmp.lt.s32.totalorder %s625, 99
        %s627 = scalar_select %p626, %s625, 99
        %s628 = smul.addr %s627, 4
        %s629 = scalar_lea.vmem %s3, %s628
      $region44: #{actor_critic_forward.4} parent=39 // pred_fallthru
        _
    $region40: #{actor_critic_forward.4} parent=5 // pred_fallthru
      _
  $region6: #{actor_critic_forward.4} parent=0 // loop_footer
    %s13 = sadd.s32 1, %s9
  $region7: #{actor_critic_forward.4} parent=0 // loop_footer_branch
    %8 = sbr.rel target = $region3
  $region8: #{actor_critic_forward.4} parent=0 // loop_exit
    _

// kernel: actor_critic_forward.5
$region0: #{actor_critic_forward.5}
  #allocation0 [shape = 'u32[]', space=smem, size = 0x4, offset = 0x4, fixed_abs, tag = 'smem constant byte address 0x4 - core index']
  #allocation1 [shape = 'u32[72,128]{1,0:T(1,128)}', space=vmem, size = 0x9000, scoped, tag = 'internal scratch']
  %s0 = inlined_call_operand.vmem [shape: bf16[176,512], index: 0, kind: input, shape index: {}]
  %s1 = inlined_call_operand.vmem [shape: bf16[512,64], index: 1, kind: input, shape index: {}]
  %s2 = inlined_call_operand.vmem [shape: f32[1,64], index: 2, kind: input, shape index: {}]
  %s3 = inlined_call_operand.vmem [shape: bf16[176,64], index: 3, kind: output, shape index: {}]
  %s4 = sld [smem:[#allocation0]]
  $region22: #{actor_critic_forward.5} parent=0
    _
  %s6 = ssub.s32 1, %s4
  %s7 = scalar_select 0, %s6, %s4
  // Predicated region
  $region2: #{actor_critic_forward.5} parent=0 // pred_check
    _
  $region3: #{actor_critic_forward.5} parent=0 // pred_check_branch
    %9 = sbr.rel (0) target = $region5
  $region4: #{actor_critic_forward.5} parent=0 // pred_region
    _
  $region5: #{actor_critic_forward.5} parent=0 // pred_fallthru
    _
  // Predicated region
  $region6: #{actor_critic_forward.5} parent=0 // pred_check
    _
  $region7: #{actor_critic_forward.5} parent=0 // pred_check_branch
    %11 = sbr.rel (0) target = $region9
  $region8: #{actor_critic_forward.5} parent=0 // pred_region
    _
  $region9: #{actor_critic_forward.5} parent=0 // pred_fallthru
    _
  // Predicated region
  $region10: #{actor_critic_forward.5} parent=0 // pred_check
    _
  $region11: #{actor_critic_forward.5} parent=0 // pred_check_branch
    %13 = sbr.rel (0) target = $region13
  $region12: #{actor_critic_forward.5} parent=0 // pred_region
    _
  $region13: #{actor_critic_forward.5} parent=0 // pred_fallthru
    _
  %v14 = vld [vmem:[%s0] sm:$0xff]
  %v15 = vld [vmem:[%s0 + $0x8] sm:$0xff]
  %v16 = vld [vmem:[%s0 + $0x10] sm:$0xff]
  %v17 = vld [vmem:[%s0 + $0x18] sm:$0xff]
  %v18 = vld [vmem:[%s0 + $0x20] sm:$0xff]
  %v19 = vld [vmem:[%s0 + $0x28] sm:$0xff]
  %v20 = vld [vmem:[%s0 + $0x30] sm:$0xff]
  %v21 = vld [vmem:[%s0 + $0x38] sm:$0xff]
  %v22 = vld [vmem:[%s0 + $0x40] sm:$0xff]
  %v23 = vld [vmem:[%s0 + $0x48] sm:$0xff]
  %v24 = vld [vmem:[%s0 + $0x50] sm:$0xff]
  %v25 = vld [vmem:[%s0 + $0x58] sm:$0xff]
  %v26 = vld [vmem:[%s0 + $0x60] sm:$0xff]
  %v27 = vld [vmem:[%s0 + $0x68] sm:$0xff]
  %v28 = vld [vmem:[%s0 + $0x70] sm:$0xff]
  %v29 = vld [vmem:[%s0 + $0x78] sm:$0xff]
  %v30 = vld [vmem:[%s0 + $0x80] sm:$0xff]
  %v31 = vld [vmem:[%s0 + $0x88] sm:$0xff]
  %v32 = vld [vmem:[%s0 + $0x90] sm:$0xff]
  %v33 = vld [vmem:[%s0 + $0x98] sm:$0xff]
  %v34 = vld [vmem:[%s0 + $0xa0] sm:$0xff]
  %v35 = vld [vmem:[%s0 + $0xa8] sm:$0xff]
  %v36 = vld [vmem:[%s0 + $0xb0] sm:$0xff]
  %v37 = vld [vmem:[%s0 + $0xb8] sm:$0xff]
  %v38 = vld [vmem:[%s0 + $0xc0] sm:$0xff]
  %v39 = vld [vmem:[%s0 + $0xc8] sm:$0xff]
  %v40 = vld [vmem:[%s0 + $0xd0] sm:$0xff]
  %v41 = vld [vmem:[%s0 + $0xd8] sm:$0xff]
  %v42 = vld [vmem:[%s0 + $0xe0] sm:$0xff]
  %v43 = vld [vmem:[%s0 + $0xe8] sm:$0xff]
  %v44 = vld [vmem:[%s0 + $0xf0] sm:$0xff]
  %v45 = vld [vmem:[%s0 + $0xf8] sm:$0xff]
  %v46 = vld [vmem:[%s0 + $0x100] sm:$0xff]
  %v47 = vld [vmem:[%s0 + $0x108] sm:$0xff]
  %v48 = vld [vmem:[%s0 + $0x110] sm:$0xff]
  %v49 = vld [vmem:[%s0 + $0x118] sm:$0xff]
  %v50 = vld [vmem:[%s0 + $0x120] sm:$0xff]
  %v51 = vld [vmem:[%s0 + $0x128] sm:$0xff]
  %v52 = vld [vmem:[%s0 + $0x130] sm:$0xff]
  %v53 = vld [vmem:[%s0 + $0x138] sm:$0xff]
  %v54 = vld [vmem:[%s0 + $0x140] sm:$0xff]
  %v55 = vld [vmem:[%s0 + $0x148] sm:$0xff]
  %v56 = vld [vmem:[%s0 + $0x150] sm:$0xff]
  %v57 = vld [vmem:[%s0 + $0x158] sm:$0xff]
  %v58 = vld [vmem:[%s1] sm:$0xf]
  %v59 = vld [vmem:[%s1 + $0x4] sm:$0xf]
  %v60 = vld [vmem:[%s1 + $0x8] sm:$0xf]
  %v61 = vld [vmem:[%s1 + $0xc] sm:$0xf]
  %v62 = vld [vmem:[%s1 + $0x10] sm:$0xf]
  %v63 = vld [vmem:[%s1 + $0x14] sm:$0xf]
  %v64 = vld [vmem:[%s1 + $0x18] sm:$0xf]
  %v65 = vld [vmem:[%s1 + $0x1c] sm:$0xf]
  %v66 = vld [vmem:[%s1 + $0x20] sm:$0xf]
  %v67 = vld [vmem:[%s1 + $0x24] sm:$0xf]
  %v68 = vld [vmem:[%s1 + $0x28] sm:$0xf]
  %v69 = vld [vmem:[%s1 + $0x2c] sm:$0xf]
  %v70 = vld [vmem:[%s1 + $0x30] sm:$0xf]
  %v71 = vld [vmem:[%s1 + $0x34] sm:$0xf]
  %v72 = vld [vmem:[%s1 + $0x38] sm:$0xf]
  %v73 = vld [vmem:[%s1 + $0x3c] sm:$0xf]
  %v74 = vld [vmem:[%s1 + $0x40] sm:$0xf]
  %v75 = vld [vmem:[%s1 + $0x44] sm:$0xf]
  %v76 = vld [vmem:[%s1 + $0x48] sm:$0xf]
  %v77 = vld [vmem:[%s1 + $0x4c] sm:$0xf]
  %v78 = vld [vmem:[%s1 + $0x50] sm:$0xf]
  %v79 = vld [vmem:[%s1 + $0x54] sm:$0xf]
  %v80 = vld [vmem:[%s1 + $0x58] sm:$0xf]
  %v81 = vld [vmem:[%s1 + $0x5c] sm:$0xf]
  %v82 = vld [vmem:[%s1 + $0x60] sm:$0xf]
  %v83 = vld [vmem:[%s1 + $0x64] sm:$0xf]
  %v84 = vld [vmem:[%s1 + $0x68] sm:$0xf]
  %v85 = vld [vmem:[%s1 + $0x6c] sm:$0xf]
  %v86 = vld [vmem:[%s1 + $0x70] sm:$0xf]
  %v87 = vld [vmem:[%s1 + $0x74] sm:$0xf]
  %v88 = vld [vmem:[%s1 + $0x78] sm:$0xf]
  %v89 = vld [vmem:[%s1 + $0x7c] sm:$0xf]
  %v90 = vld [vmem:[%s1 + $0x80] sm:$0xf]
  %v91 = vld [vmem:[%s1 + $0x84] sm:$0xf]
  %v92 = vld [vmem:[%s1 + $0x88] sm:$0xf]
  %v93 = vld [vmem:[%s1 + $0x8c] sm:$0xf]
  %v94 = vld [vmem:[%s1 + $0x90] sm:$0xf]
  %v95 = vld [vmem:[%s1 + $0x94] sm:$0xf]
  %v96 = vld [vmem:[%s1 + $0x98] sm:$0xf]
  %v97 = vld [vmem:[%s1 + $0x9c] sm:$0xf]
  %v98 = vld [vmem:[%s1 + $0xa0] sm:$0xf]
  %v99 = vld [vmem:[%s1 + $0xa4] sm:$0xf]
  %v100 = vld [vmem:[%s1 + $0xa8] sm:$0xf]
  %v101 = vld [vmem:[%s1 + $0xac] sm:$0xf]
  %v102 = vld [vmem:[%s1 + $0xb0] sm:$0xf]
  %v103 = vld [vmem:[%s1 + $0xb4] sm:$0xf]
  %v104 = vld [vmem:[%s1 + $0xb8] sm:$0xf]
  %v105 = vld [vmem:[%s1 + $0xbc] sm:$0xf]
  %v106 = vld [vmem:[%s1 + $0xc0] sm:$0xf]
  %v107 = vld [vmem:[%s1 + $0xc4] sm:$0xf]
  %v108 = vld [vmem:[%s1 + $0xc8] sm:$0xf]
  %v109 = vld [vmem:[%s1 + $0xcc] sm:$0xf]
  %v110 = vld [vmem:[%s1 + $0xd0] sm:$0xf]
  %v111 = vld [vmem:[%s1 + $0xd4] sm:$0xf]
  %v112 = vld [vmem:[%s1 + $0xd8] sm:$0xf]
  %v113 = vld [vmem:[%s1 + $0xdc] sm:$0xf]
  %v114 = vld [vmem:[%s1 + $0xe0] sm:$0xf]
  %v115 = vld [vmem:[%s1 + $0xe4] sm:$0xf]
  %v116 = vld [vmem:[%s1 + $0xe8] sm:$0xf]
  %v117 = vld [vmem:[%s1 + $0xec] sm:$0xf]
  %v118 = vld [vmem:[%s1 + $0xf0] sm:$0xf]
  %v119 = vld [vmem:[%s1 + $0xf4] sm:$0xf]
  %v120 = vld [vmem:[%s1 + $0xf8] sm:$0xf]
  %v121 = vld [vmem:[%s1 + $0xfc] sm:$0xf]
  %v122 = vld [vmem:[%s2] sm:$0x1]
  %v124 = vperm.slane %v122, 0
  %v170 = vunpack.c.l.b16 %v14
  %v171 = vunpack.c.h.b16 %v14
  %v172 = vunpack.c.l.b16 %v15
  %v173 = vunpack.c.h.b16 %v15
  %v174 = vunpack.c.l.b16 %v16
  %v175 = vunpack.c.h.b16 %v16
  %v176 = vunpack.c.l.b16 %v17
  %v177 = vunpack.c.h.b16 %v17
  %v178 = vunpack.c.l.b16 %v18
  %v179 = vunpack.c.h.b16 %v18
  %v180 = vunpack.c.l.b16 %v19
  %v181 = vunpack.c.h.b16 %v19
  %v182 = vunpack.c.l.b16 %v20
  %v183 = vunpack.c.h.b16 %v20
  %v184 = vunpack.c.l.b16 %v21
  %v185 = vunpack.c.h.b16 %v21
  %v186 = vunpack.c.l.b16 %v22
  %v187 = vunpack.c.h.b16 %v22
  %v188 = vunpack.c.l.b16 %v23
  %v189 = vunpack.c.h.b16 %v23
  %v190 = vunpack.c.l.b16 %v24
  %v191 = vunpack.c.h.b16 %v24
  %v192 = vunpack.c.l.b16 %v25
  %v193 = vunpack.c.h.b16 %v25
  %v194 = vunpack.c.l.b16 %v26
  %v195 = vunpack.c.h.b16 %v26
  %v196 = vunpack.c.l.b16 %v27
  %v197 = vunpack.c.h.b16 %v27
  %v198 = vunpack.c.l.b16 %v28
  %v199 = vunpack.c.h.b16 %v28
  %v200 = vunpack.c.l.b16 %v29
  %v201 = vunpack.c.h.b16 %v29
  %v202 = vunpack.c.l.b16 %v30
  %v203 = vunpack.c.h.b16 %v30
  %v204 = vunpack.c.l.b16 %v31
  %v205 = vunpack.c.h.b16 %v31
  %v206 = vunpack.c.l.b16 %v32
  %v207 = vunpack.c.h.b16 %v32
  %v208 = vunpack.c.l.b16 %v33
  %v209 = vunpack.c.h.b16 %v33
  %v210 = vunpack.c.l.b16 %v34
  %v211 = vunpack.c.h.b16 %v34
  %v212 = vunpack.c.l.b16 %v35
  %v213 = vunpack.c.h.b16 %v35
  %v214 = vunpack.c.l.b16 %v36
  %v215 = vunpack.c.h.b16 %v36
  %v216 = vunpack.c.l.b16 %v37
  %v217 = vunpack.c.h.b16 %v37
  %v218 = vunpack.c.l.b16 %v38
  %v219 = vunpack.c.h.b16 %v38
  %v220 = vunpack.c.l.b16 %v39
  %v221 = vunpack.c.h.b16 %v39
  %v222 = vunpack.c.l.b16 %v40
  %v223 = vunpack.c.h.b16 %v40
  %v224 = vunpack.c.l.b16 %v41
  %v225 = vunpack.c.h.b16 %v41
  %v226 = vunpack.c.l.b16 %v42
  %v227 = vunpack.c.h.b16 %v42
  %v228 = vunpack.c.l.b16 %v43
  %v229 = vunpack.c.h.b16 %v43
  %v230 = vunpack.c.l.b16 %v44
  %v231 = vunpack.c.h.b16 %v44
  %v232 = vunpack.c.l.b16 %v45
  %v233 = vunpack.c.h.b16 %v45
  %v234 = vunpack.c.l.b16 %v46
  %v235 = vunpack.c.h.b16 %v46
  %v236 = vunpack.c.l.b16 %v47
  %v237 = vunpack.c.h.b16 %v47
  %v238 = vunpack.c.l.b16 %v48
  %v239 = vunpack.c.h.b16 %v48
  %v240 = vunpack.c.l.b16 %v49
  %v241 = vunpack.c.h.b16 %v49
  %v242 = vunpack.c.l.b16 %v50
  %v243 = vunpack.c.h.b16 %v50
  %v244 = vunpack.c.l.b16 %v51
  %v245 = vunpack.c.h.b16 %v51
  %v246 = vunpack.c.l.b16 %v52
  %v247 = vunpack.c.h.b16 %v52
  %v248 = vunpack.c.l.b16 %v53
  %v249 = vunpack.c.h.b16 %v53
  %v250 = vunpack.c.l.b16 %v54
  %v251 = vunpack.c.h.b16 %v54
  %v252 = vunpack.c.l.b16 %v55
  %v253 = vunpack.c.h.b16 %v55
  %v254 = vunpack.c.l.b16 %v56
  %v255 = vunpack.c.h.b16 %v56
  %v256 = vunpack.c.l.b16 %v57
  %v257 = vunpack.c.h.b16 %v57
  %v258 = vpack.c.b16 %v174, %v170
  %v259 = vpack.c.b16 %v175, %v171
  %v260 = vpack.c.b16 %v176, %v172
  %v261 = vpack.c.b16 %v177, %v173
  %v262 = vpack.c.b16 %v182, %v178
  %v263 = vpack.c.b16 %v183, %v179
  %v264 = vpack.c.b16 %v184, %v180
  %v265 = vpack.c.b16 %v185, %v181
  %v266 = vpack.c.b16 %v190, %v186
  %v267 = vpack.c.b16 %v191, %v187
  %v268 = vpack.c.b16 %v192, %v188
  %v269 = vpack.c.b16 %v193, %v189
  %v270 = vpack.c.b16 %v198, %v194
  %v271 = vpack.c.b16 %v199, %v195
  %v272 = vpack.c.b16 %v200, %v196
  %v273 = vpack.c.b16 %v201, %v197
  %v274 = vpack.c.b16 %v206, %v202
  %v275 = vpack.c.b16 %v207, %v203
  %v276 = vpack.c.b16 %v208, %v204
  %v277 = vpack.c.b16 %v209, %v205
  %v278 = vpack.c.b16 %v214, %v210
  %v279 = vpack.c.b16 %v215, %v211
  %v280 = vpack.c.b16 %v216, %v212
  %v281 = vpack.c.b16 %v217, %v213
  %v282 = vpack.c.b16 %v222, %v218
  %v283 = vpack.c.b16 %v223, %v219
  %v284 = vpack.c.b16 %v224, %v220
  %v285 = vpack.c.b16 %v225, %v221
  %v286 = vpack.c.b16 %v230, %v226
  %v287 = vpack.c.b16 %v231, %v227
  %v288 = vpack.c.b16 %v232, %v228
  %v289 = vpack.c.b16 %v233, %v229
  %v290 = vpack.c.b16 %v238, %v234
  %v291 = vpack.c.b16 %v239, %v235
  %v292 = vpack.c.b16 %v240, %v236
  %v293 = vpack.c.b16 %v241, %v237
  %v294 = vpack.c.b16 %v246, %v242
  %v295 = vpack.c.b16 %v247, %v243
  %v296 = vpack.c.b16 %v248, %v244
  %v297 = vpack.c.b16 %v249, %v245
  %v298 = vpack.c.b16 %v254, %v250
  %v299 = vpack.c.b16 %v255, %v251
  %v300 = vpack.c.b16 %v256, %v252
  %v301 = vpack.c.b16 %v257, %v253
  %v410 = vunpack.c.l.b16 %v58
  %v411 = vunpack.c.l.b16 %v59
  %v412 = vunpack.c.l.b16 %v60
  %v413 = vunpack.c.l.b16 %v61
  %v414 = vunpack.c.l.b16 %v62
  %v415 = vunpack.c.l.b16 %v63
  %v416 = vunpack.c.l.b16 %v64
  %v417 = vunpack.c.l.b16 %v65
  %v418 = vunpack.c.l.b16 %v66
  %v419 = vunpack.c.l.b16 %v67
  %v420 = vunpack.c.l.b16 %v68
  %v421 = vunpack.c.l.b16 %v69
  %v422 = vunpack.c.l.b16 %v70
  %v423 = vunpack.c.l.b16 %v71
  %v424 = vunpack.c.l.b16 %v72
  %v425 = vunpack.c.l.b16 %v73
  %v426 = vunpack.c.l.b16 %v74
  %v427 = vunpack.c.l.b16 %v75
  %v428 = vunpack.c.l.b16 %v76
  %v429 = vunpack.c.l.b16 %v77
  %v430 = vunpack.c.l.b16 %v78
  %v431 = vunpack.c.l.b16 %v79
  %v432 = vunpack.c.l.b16 %v80
  %v433 = vunpack.c.l.b16 %v81
  %v434 = vunpack.c.l.b16 %v82
  %v435 = vunpack.c.l.b16 %v83
  %v436 = vunpack.c.l.b16 %v84
  %v437 = vunpack.c.l.b16 %v85
  %v438 = vunpack.c.l.b16 %v86
  %v439 = vunpack.c.l.b16 %v87
  %v440 = vunpack.c.l.b16 %v88
  %v441 = vunpack.c.l.b16 %v89
  %v442 = vunpack.c.l.b16 %v90
  %v443 = vunpack.c.l.b16 %v91
  %v444 = vunpack.c.l.b16 %v92
  %v445 = vunpack.c.l.b16 %v93
  %v446 = vunpack.c.l.b16 %v94
  %v447 = vunpack.c.l.b16 %v95
  %v448 = vunpack.c.l.b16 %v96
  %v449 = vunpack.c.l.b16 %v97
  %v450 = vunpack.c.l.b16 %v98
  %v451 = vunpack.c.l.b16 %v99
  %v452 = vunpack.c.l.b16 %v100
  %v453 = vunpack.c.l.b16 %v101
  %v454 = vunpack.c.l.b16 %v102
  %v455 = vunpack.c.l.b16 %v103
  %v456 = vunpack.c.l.b16 %v104
  %v457 = vunpack.c.l.b16 %v105
  %v458 = vunpack.c.l.b16 %v106
  %v459 = vunpack.c.l.b16 %v107
  %v460 = vunpack.c.l.b16 %v108
  %v461 = vunpack.c.l.b16 %v109
  %v462 = vunpack.c.l.b16 %v110
  %v463 = vunpack.c.l.b16 %v111
  %v464 = vunpack.c.l.b16 %v112
  %v465 = vunpack.c.l.b16 %v113
  %v466 = vunpack.c.l.b16 %v114
  %v467 = vunpack.c.l.b16 %v115
  %v468 = vunpack.c.l.b16 %v116
  %v469 = vunpack.c.l.b16 %v117
  %v470 = vunpack.c.l.b16 %v118
  %v471 = vunpack.c.l.b16 %v119
  %v472 = vunpack.c.l.b16 %v120
  %v473 = vunpack.c.l.b16 %v121
  %v474 = vpack.c.b16 %v411, %v410
  %v475 = vpack.c.b16 %v413, %v412
  %v476 = vpack.c.b16 %v415, %v414
  %v477 = vpack.c.b16 %v417, %v416
  %v478 = vpack.c.b16 %v419, %v418
  %v479 = vpack.c.b16 %v421, %v420
  %v480 = vpack.c.b16 %v423, %v422
  %v481 = vpack.c.b16 %v425, %v424
  %v482 = vpack.c.b16 %v427, %v426
  %v483 = vpack.c.b16 %v429, %v428
  %v484 = vpack.c.b16 %v431, %v430
  %v485 = vpack.c.b16 %v433, %v432
  %v486 = vpack.c.b16 %v435, %v434
  %v487 = vpack.c.b16 %v437, %v436
  %v488 = vpack.c.b16 %v439, %v438
  %v489 = vpack.c.b16 %v441, %v440
  %v490 = vpack.c.b16 %v443, %v442
  %v491 = vpack.c.b16 %v445, %v444
  %v492 = vpack.c.b16 %v447, %v446
  %v493 = vpack.c.b16 %v449, %v448
  %v494 = vpack.c.b16 %v451, %v450
  %v495 = vpack.c.b16 %v453, %v452
  %v496 = vpack.c.b16 %v455, %v454
  %v497 = vpack.c.b16 %v457, %v456
  %v498 = vpack.c.b16 %v459, %v458
  %v499 = vpack.c.b16 %v461, %v460
  %v500 = vpack.c.b16 %v463, %v462
  %v501 = vpack.c.b16 %v465, %v464
  %v502 = vpack.c.b16 %v467, %v466
  %v503 = vpack.c.b16 %v469, %v468
  %v504 = vpack.c.b16 %v471, %v470
  %v505 = vpack.c.b16 %v473, %v472
  %538 = vmatpush.bf16.msra.mxu0 %v481
  %539 = vmatpush.bf16.msra.mxu0 %v480
  %540 = vmatpush.bf16.msra.mxu0 %v479
  %541 = vmatpush.bf16.msra.mxu0 %v478
  %542 = vmatpush.bf16.msra.mxu0 %v477
  %543 = vmatpush.bf16.msra.mxu0 %v476
  %544 = vmatpush.bf16.msra.mxu0 %v475
  %545 = vmatpush.bf16.msra.mxu0 %v474
  %546 = vmatmul.bf16.gmra.mxu0 %v258
  %v547 = vpop.f32.mrf.mxu0
  %v548 = vadd.f32 %v124, %v547
  %v549 = vpop.f32.mrf.mxu0
  %v550 = vadd.f32 %v124, %v549
  %551 = vmatmul.bf16.gmra.mxu0 %v262
  %v552 = vpop.f32.mrf.mxu0
  %v553 = vadd.f32 %v124, %v552
  %v554 = vpop.f32.mrf.mxu0
  %v555 = vadd.f32 %v124, %v554
  %556 = vmatmul.bf16.gmra.mxu0 %v266
  %v557 = vpop.f32.mrf.mxu0
  %v558 = vadd.f32 %v124, %v557
  %v559 = vpop.f32.mrf.mxu0
  %v560 = vadd.f32 %v124, %v559
  %561 = vmatmul.bf16.gmra.mxu0 %v270
  %v562 = vpop.f32.mrf.mxu0
  %v563 = vadd.f32 %v124, %v562
  %v564 = vpop.f32.mrf.mxu0
  %v565 = vadd.f32 %v124, %v564
  %566 = vmatmul.bf16.gmra.mxu0 %v274
  %v567 = vpop.f32.mrf.mxu0
  %v568 = vadd.f32 %v124, %v567
  %v569 = vpop.f32.mrf.mxu0
  %v570 = vadd.f32 %v124, %v569
  %571 = vmatmul.bf16.gmra.mxu0 %v278
  %v572 = vpop.f32.mrf.mxu0
  %v573 = vadd.f32 %v124, %v572
  %v574 = vpop.f32.mrf.mxu0
  %v575 = vadd.f32 %v124, %v574
  %576 = vmatmul.bf16.gmra.mxu0 %v282
  %v577 = vpop.f32.mrf.mxu0
  %v578 = vadd.f32 %v124, %v577
  %v579 = vpop.f32.mrf.mxu0
  %v580 = vadd.f32 %v124, %v579
  %581 = vmatmul.bf16.gmra.mxu0 %v286
  %v582 = vpop.f32.mrf.mxu0
  %v583 = vadd.f32 %v124, %v582
  %v584 = vpop.f32.mrf.mxu0
  %v585 = vadd.f32 %v124, %v584
  %586 = vmatmul.bf16.gmra.mxu0 %v290
  %v587 = vpop.f32.mrf.mxu0
  %v588 = vadd.f32 %v124, %v587
  %v589 = vpop.f32.mrf.mxu0
  %v590 = vadd.f32 %v124, %v589
  %591 = vmatmul.bf16.gmra.mxu0 %v294
  %v592 = vpop.f32.mrf.mxu0
  %v593 = vadd.f32 %v124, %v592
  %v594 = vpop.f32.mrf.mxu0
  %v595 = vadd.f32 %v124, %v594
  %596 = vmatmul.bf16.gmra.mxu0 %v298
  %v597 = vpop.f32.mrf.mxu0
  %v598 = vadd.f32 %v124, %v597
  %v599 = vpop.f32.mrf.mxu0
  %v600 = vadd.f32 %v124, %v599
  %601 = vdwg.mxu0
  %602 = vmatpush.bf16.msra.mxu0 %v489
  %603 = vmatpush.bf16.msra.mxu0 %v488
  %604 = vmatpush.bf16.msra.mxu0 %v487
  %605 = vmatpush.bf16.msra.mxu0 %v486
  %606 = vmatpush.bf16.msra.mxu0 %v485
  %607 = vmatpush.bf16.msra.mxu0 %v484
  %608 = vmatpush.bf16.msra.mxu0 %v483
  %609 = vmatpush.bf16.msra.mxu0 %v482
  %610 = vmatmul.bf16.gmra.mxu0 %v259
  %v611 = vpop.f32.mrf.mxu0
  %v612 = vadd.f32 %v548, %v611
  %v613 = vpop.f32.mrf.mxu0
  %v614 = vadd.f32 %v550, %v613
  %615 = vmatmul.bf16.gmra.mxu0 %v263
  %v616 = vpop.f32.mrf.mxu0
  %v617 = vadd.f32 %v553, %v616
  %v618 = vpop.f32.mrf.mxu0
  %v619 = vadd.f32 %v555, %v618
  %620 = vmatmul.bf16.gmra.mxu0 %v267
  %v621 = vpop.f32.mrf.mxu0
  %v622 = vadd.f32 %v558, %v621
  %v623 = vpop.f32.mrf.mxu0
  %v624 = vadd.f32 %v560, %v623
  %625 = vmatmul.bf16.gmra.mxu0 %v271
  %v626 = vpop.f32.mrf.mxu0
  %v627 = vadd.f32 %v563, %v626
  %v628 = vpop.f32.mrf.mxu0
  %v629 = vadd.f32 %v565, %v628
  %630 = vmatmul.bf16.gmra.mxu0 %v275
  %v631 = vpop.f32.mrf.mxu0
  %v632 = vadd.f32 %v568, %v631
  %v633 = vpop.f32.mrf.mxu0
  %v634 = vadd.f32 %v570, %v633
  %635 = vmatmul.bf16.gmra.mxu0 %v279
  %v636 = vpop.f32.mrf.mxu0
  %v637 = vadd.f32 %v573, %v636
  %v638 = vpop.f32.mrf.mxu0
  %v639 = vadd.f32 %v575, %v638
  %640 = vmatmul.bf16.gmra.mxu0 %v283
  %v641 = vpop.f32.mrf.mxu0
  %v642 = vadd.f32 %v578, %v641
  %v643 = vpop.f32.mrf.mxu0
  %v644 = vadd.f32 %v580, %v643
  %645 = vmatmul.bf16.gmra.mxu0 %v287
  %v646 = vpop.f32.mrf.mxu0
  %v647 = vadd.f32 %v583, %v646
  %v648 = vpop.f32.mrf.mxu0
  %v649 = vadd.f32 %v585, %v648
  %650 = vmatmul.bf16.gmra.mxu0 %v291
  %v651 = vpop.f32.mrf.mxu0
  %v652 = vadd.f32 %v588, %v651
  %v653 = vpop.f32.mrf.mxu0
  %v654 = vadd.f32 %v590, %v653
  %655 = vmatmul.bf16.gmra.mxu0 %v295
  %v656 = vpop.f32.mrf.mxu0
  %v657 = vadd.f32 %v593, %v656
  %v658 = vpop.f32.mrf.mxu0
  %v659 = vadd.f32 %v595, %v658
  %660 = vmatmul.bf16.gmra.mxu0 %v299
  %v661 = vpop.f32.mrf.mxu0
  %v662 = vadd.f32 %v598, %v661
  %v663 = vpop.f32.mrf.mxu0
  %v664 = vadd.f32 %v600, %v663
  %665 = vdwg.mxu0
  %666 = vmatpush.bf16.msra.mxu0 %v497
  %667 = vmatpush.bf16.msra.mxu0 %v496
  %668 = vmatpush.bf16.msra.mxu0 %v495
  %669 = vmatpush.bf16.msra.mxu0 %v494
  %670 = vmatpush.bf16.msra.mxu0 %v493
  %671 = vmatpush.bf16.msra.mxu0 %v492
  %672 = vmatpush.bf16.msra.mxu0 %v491
  %673 = vmatpush.bf16.msra.mxu0 %v490
  %674 = vmatmul.bf16.gmra.mxu0 %v260
  %v675 = vpop.f32.mrf.mxu0
  %v676 = vadd.f32 %v612, %v675
  %v677 = vpop.f32.mrf.mxu0
  %v678 = vadd.f32 %v614, %v677
  %679 = vmatmul.bf16.gmra.mxu0 %v264
  %v680 = vpop.f32.mrf.mxu0
  %v681 = vadd.f32 %v617, %v680
  %v682 = vpop.f32.mrf.mxu0
  %v683 = vadd.f32 %v619, %v682
  %684 = vmatmul.bf16.gmra.mxu0 %v268
  %v685 = vpop.f32.mrf.mxu0
  %v686 = vadd.f32 %v622, %v685
  %v687 = vpop.f32.mrf.mxu0
  %v688 = vadd.f32 %v624, %v687
  %689 = vmatmul.bf16.gmra.mxu0 %v272
  %v690 = vpop.f32.mrf.mxu0
  %v691 = vadd.f32 %v627, %v690
  %v692 = vpop.f32.mrf.mxu0
  %v693 = vadd.f32 %v629, %v692
  %694 = vmatmul.bf16.gmra.mxu0 %v276
  %v695 = vpop.f32.mrf.mxu0
  %v696 = vadd.f32 %v632, %v695
  %v697 = vpop.f32.mrf.mxu0
  %v698 = vadd.f32 %v634, %v697
  %699 = vmatmul.bf16.gmra.mxu0 %v280
  %v700 = vpop.f32.mrf.mxu0
  %v701 = vadd.f32 %v637, %v700
  %v702 = vpop.f32.mrf.mxu0
  %v703 = vadd.f32 %v639, %v702
  %704 = vmatmul.bf16.gmra.mxu0 %v284
  %v705 = vpop.f32.mrf.mxu0
  %v706 = vadd.f32 %v642, %v705
  %v707 = vpop.f32.mrf.mxu0
  %v708 = vadd.f32 %v644, %v707
  %709 = vmatmul.bf16.gmra.mxu0 %v288
  %v710 = vpop.f32.mrf.mxu0
  %v711 = vadd.f32 %v647, %v710
  %v712 = vpop.f32.mrf.mxu0
  %v713 = vadd.f32 %v649, %v712
  %714 = vmatmul.bf16.gmra.mxu0 %v292
  %v715 = vpop.f32.mrf.mxu0
  %v716 = vadd.f32 %v652, %v715
  %v717 = vpop.f32.mrf.mxu0
  %v718 = vadd.f32 %v654, %v717
  %719 = vmatmul.bf16.gmra.mxu0 %v296
  %v720 = vpop.f32.mrf.mxu0
  %v721 = vadd.f32 %v657, %v720
  %v722 = vpop.f32.mrf.mxu0
  %v723 = vadd.f32 %v659, %v722
  %724 = vmatmul.bf16.gmra.mxu0 %v300
  %v725 = vpop.f32.mrf.mxu0
  %v726 = vadd.f32 %v662, %v725
  %v727 = vpop.f32.mrf.mxu0
  %v728 = vadd.f32 %v664, %v727
  %729 = vdwg.mxu0
  %730 = vmatpush.bf16.msra.mxu0 %v505
  %731 = vmatpush.bf16.msra.mxu0 %v504
  %732 = vmatpush.bf16.msra.mxu0 %v503
  %733 = vmatpush.bf16.msra.mxu0 %v502
  %734 = vmatpush.bf16.msra.mxu0 %v501
  %735 = vmatpush.bf16.msra.mxu0 %v500
  %736 = vmatpush.bf16.msra.mxu0 %v499
  %737 = vmatpush.bf16.msra.mxu0 %v498
  %738 = vmatmul.bf16.gmra.mxu0 %v261
  %v739 = vpop.f32.mrf.mxu0
  %v740 = vadd.f32 %v676, %v739
  %v741 = vpop.f32.mrf.mxu0
  %v742 = vadd.f32 %v678, %v741
  %743 = vmatmul.bf16.gmra.mxu0 %v265
  %v744 = vpop.f32.mrf.mxu0
  %v745 = vadd.f32 %v681, %v744
  %v746 = vpop.f32.mrf.mxu0
  %v747 = vadd.f32 %v683, %v746
  %748 = vmatmul.bf16.gmra.mxu0 %v269
  %v749 = vpop.f32.mrf.mxu0
  %v750 = vadd.f32 %v686, %v749
  %v751 = vpop.f32.mrf.mxu0
  %v752 = vadd.f32 %v688, %v751
  %753 = vmatmul.bf16.gmra.mxu0 %v273
  %v754 = vpop.f32.mrf.mxu0
  %v755 = vadd.f32 %v691, %v754
  %v756 = vpop.f32.mrf.mxu0
  %v757 = vadd.f32 %v693, %v756
  %758 = vmatmul.bf16.gmra.mxu0 %v277
  %v759 = vpop.f32.mrf.mxu0
  %v760 = vadd.f32 %v696, %v759
  %v761 = vpop.f32.mrf.mxu0
  %v762 = vadd.f32 %v698, %v761
  %763 = vmatmul.bf16.gmra.mxu0 %v281
  %v764 = vpop.f32.mrf.mxu0
  %v765 = vadd.f32 %v701, %v764
  %v766 = vpop.f32.mrf.mxu0
  %v767 = vadd.f32 %v703, %v766
  %768 = vmatmul.bf16.gmra.mxu0 %v285
  %v769 = vpop.f32.mrf.mxu0
  %v770 = vadd.f32 %v706, %v769
  %v771 = vpop.f32.mrf.mxu0
  %v772 = vadd.f32 %v708, %v771
  %773 = vmatmul.bf16.gmra.mxu0 %v289
  %v774 = vpop.f32.mrf.mxu0
  %v775 = vadd.f32 %v711, %v774
  %v776 = vpop.f32.mrf.mxu0
  %v777 = vadd.f32 %v713, %v776
  %778 = vmatmul.bf16.gmra.mxu0 %v293
  %v779 = vpop.f32.mrf.mxu0
  %v780 = vadd.f32 %v716, %v779
  %v781 = vpop.f32.mrf.mxu0
  %v782 = vadd.f32 %v718, %v781
  %783 = vmatmul.bf16.gmra.mxu0 %v297
  %v784 = vpop.f32.mrf.mxu0
  %v785 = vadd.f32 %v721, %v784
  %v786 = vpop.f32.mrf.mxu0
  %v787 = vadd.f32 %v723, %v786
  %788 = vmatmul.bf16.gmra.mxu0 %v301
  %v789 = vpop.f32.mrf.mxu0
  %v790 = vadd.f32 %v726, %v789
  %v791 = vpop.f32.mrf.mxu0
  %v792 = vadd.f32 %v728, %v791
  %793 = vdwg.mxu0
  %v794 = vmax.f32 %v740, 0.0
  %v795 = vmax.f32 %v742, 0.0
  %v796 = vmax.f32 %v745, 0.0
  %v797 = vmax.f32 %v747, 0.0
  %v798 = vmax.f32 %v750, 0.0
  %v799 = vmax.f32 %v752, 0.0
  %v800 = vmax.f32 %v755, 0.0
  %v801 = vmax.f32 %v757, 0.0
  %v802 = vmax.f32 %v760, 0.0
  %v803 = vmax.f32 %v762, 0.0
  %v804 = vmax.f32 %v765, 0.0
  %v805 = vmax.f32 %v767, 0.0
  %v806 = vmax.f32 %v770, 0.0
  %v807 = vmax.f32 %v772, 0.0
  %v808 = vmax.f32 %v775, 0.0
  %v809 = vmax.f32 %v777, 0.0
  %v810 = vmax.f32 %v780, 0.0
  %v811 = vmax.f32 %v782, 0.0
  %v812 = vmax.f32 %v785, 0.0
  %v813 = vmax.f32 %v787, 0.0
  %v814 = vmax.f32 %v790, 0.0
  %v815 = vmax.f32 %v792, 0.0
  %v816 = vpack.c.bf16 %v794, %v794
  %v817 = vpack.c.bf16 %v795, %v795
  %v818 = vpack.c.bf16 %v796, %v796
  %v819 = vpack.c.bf16 %v797, %v797
  %v820 = vpack.c.bf16 %v798, %v798
  %v821 = vpack.c.bf16 %v799, %v799
  %v822 = vpack.c.bf16 %v800, %v800
  %v823 = vpack.c.bf16 %v801, %v801
  %v824 = vpack.c.bf16 %v802, %v802
  %v825 = vpack.c.bf16 %v803, %v803
  %v826 = vpack.c.bf16 %v804, %v804
  %v827 = vpack.c.bf16 %v805, %v805
  %v828 = vpack.c.bf16 %v806, %v806
  %v829 = vpack.c.bf16 %v807, %v807
  %v830 = vpack.c.bf16 %v808, %v808
  %v831 = vpack.c.bf16 %v809, %v809
  %v832 = vpack.c.bf16 %v810, %v810
  %v833 = vpack.c.bf16 %v811, %v811
  %v834 = vpack.c.bf16 %v812, %v812
  %v835 = vpack.c.bf16 %v813, %v813
  %v836 = vpack.c.bf16 %v814, %v814
  %v837 = vpack.c.bf16 %v815, %v815
  %vm838 = vcmask 519168
  %839 = vst.msk [vmem:[%s3] sm:$0xf] %vm838, %v816
  %840 = vst.msk [vmem:[%s3 + $0x4] sm:$0xf] %vm838, %v817
  %841 = vst.msk [vmem:[%s3 + $0x8] sm:$0xf] %vm838, %v818
  %842 = vst.msk [vmem:[%s3 + $0xc] sm:$0xf] %vm838, %v819
  %843 = vst.msk [vmem:[%s3 + $0x10] sm:$0xf] %vm838, %v820
  %844 = vst.msk [vmem:[%s3 + $0x14] sm:$0xf] %vm838, %v821
  %845 = vst.msk [vmem:[%s3 + $0x18] sm:$0xf] %vm838, %v822
  %846 = vst.msk [vmem:[%s3 + $0x1c] sm:$0xf] %vm838, %v823
  %847 = vst.msk [vmem:[%s3 + $0x20] sm:$0xf] %vm838, %v824
  %848 = vst.msk [vmem:[%s3 + $0x24] sm:$0xf] %vm838, %v825
  %849 = vst.msk [vmem:[%s3 + $0x28] sm:$0xf] %vm838, %v826
  %850 = vst.msk [vmem:[%s3 + $0x2c] sm:$0xf] %vm838, %v827
  %851 = vst.msk [vmem:[%s3 + $0x30] sm:$0xf] %vm838, %v828
  %852 = vst.msk [vmem:[%s3 + $0x34] sm:$0xf] %vm838, %v829
  %853 = vst.msk [vmem:[%s3 + $0x38] sm:$0xf] %vm838, %v830
  %854 = vst.msk [vmem:[%s3 + $0x3c] sm:$0xf] %vm838, %v831
  %855 = vst.msk [vmem:[%s3 + $0x40] sm:$0xf] %vm838, %v832
  %856 = vst.msk [vmem:[%s3 + $0x44] sm:$0xf] %vm838, %v833
  %857 = vst.msk [vmem:[%s3 + $0x48] sm:$0xf] %vm838, %v834
  %858 = vst.msk [vmem:[%s3 + $0x4c] sm:$0xf] %vm838, %v835
  %859 = vst.msk [vmem:[%s3 + $0x50] sm:$0xf] %vm838, %v836
  %860 = vst.msk [vmem:[%s3 + $0x54] sm:$0xf] %vm838, %v837
  // Predicated region
  $region14: #{actor_critic_forward.5} parent=0 // pred_check
    _
  $region15: #{actor_critic_forward.5} parent=0 // pred_check_branch
    %862 = sbr.rel (0) target = $region17
  $region16: #{actor_critic_forward.5} parent=0 // pred_region
    _
  $region17: #{actor_critic_forward.5} parent=0 // pred_fallthru
    _
  // Predicated region
  $region18: #{actor_critic_forward.5} parent=0 // pred_check
    _
  $region19: #{actor_critic_forward.5} parent=0 // pred_check_branch
    %864 = sbr.rel (0) target = $region21
  $region20: #{actor_critic_forward.5} parent=0 // pred_region
    _
  $region21: #{actor_critic_forward.5} parent=0 // pred_fallthru
    _

// kernel: actor_critic_forward.6
$region0: #{actor_critic_forward.6}
  #allocation0 [shape = 'u32[]', space=smem, size = 0x4, offset = 0x4, fixed_abs, tag = 'smem constant byte address 0x4 - core index']
  #allocation1 [shape = 'u32[72,128]{1,0:T(1,128)}', space=vmem, size = 0x9000, scoped, tag = 'internal scratch']
  %s0 = inlined_call_operand.vmem [shape: bf16[112,576], index: 0, kind: input, shape index: {}]
  %s1 = inlined_call_operand.vmem [shape: bf16[576,32], index: 1, kind: input, shape index: {}]
  %s2 = inlined_call_operand.vmem [shape: f32[1,32], index: 2, kind: input, shape index: {}]
  %s3 = inlined_call_operand.vmem [shape: bf16[112,32], index: 3, kind: output, shape index: {}]
  %s4 = sld [smem:[#allocation0]]
  $region22: #{actor_critic_forward.6} parent=0
    _
  %s6 = ssub.s32 1, %s4
  %s7 = scalar_select 0, %s6, %s4
  // Predicated region
  $region2: #{actor_critic_forward.6} parent=0 // pred_check
    _
  $region3: #{actor_critic_forward.6} parent=0 // pred_check_branch
    %9 = sbr.rel (0) target = $region5
  $region4: #{actor_critic_forward.6} parent=0 // pred_region
    _
  $region5: #{actor_critic_forward.6} parent=0 // pred_fallthru
    _
  // Predicated region
  $region6: #{actor_critic_forward.6} parent=0 // pred_check
    _
  $region7: #{actor_critic_forward.6} parent=0 // pred_check_branch
    %11 = sbr.rel (0) target = $region9
  $region8: #{actor_critic_forward.6} parent=0 // pred_region
    _
  $region9: #{actor_critic_forward.6} parent=0 // pred_fallthru
    _
  // Predicated region
  $region10: #{actor_critic_forward.6} parent=0 // pred_check
    _
  $region11: #{actor_critic_forward.6} parent=0 // pred_check_branch
    %13 = sbr.rel (0) target = $region13
  $region12: #{actor_critic_forward.6} parent=0 // pred_region
    _
  $region13: #{actor_critic_forward.6} parent=0 // pred_fallthru
    _
  %v15 = vld [vmem:[%s0] sm:$0xff]
  %v16 = vld [vmem:[%s0 + $0x8] sm:$0xff]
  %v17 = vld [vmem:[%s0 + $0x10] sm:$0xf]
  %v18 = vld [vmem:[%s0 + $0x14] sm:$0xff]
  %v19 = vld [vmem:[%s0 + $0x1c] sm:$0xff]
  %v20 = vld [vmem:[%s0 + $0x24] sm:$0xf]
  %v21 = vld [vmem:[%s0 + $0x28] sm:$0xff]
  %v22 = vld [vmem:[%s0 + $0x30] sm:$0xff]
  %v23 = vld [vmem:[%s0 + $0x38] sm:$0xf]
  %v24 = vld [vmem:[%s0 + $0x3c] sm:$0xff]
  %v25 = vld [vmem:[%s0 + $0x44] sm:$0xff]
  %v26 = vld [vmem:[%s0 + $0x4c] sm:$0xf]
  %v27 = vld [vmem:[%s0 + $0x50] sm:$0xff]
  %v28 = vld [vmem:[%s0 + $0x58] sm:$0xff]
  %v29 = vld [vmem:[%s0 + $0x60] sm:$0xf]
  %v30 = vld [vmem:[%s0 + $0x64] sm:$0xff]
  %v31 = vld [vmem:[%s0 + $0x6c] sm:$0xff]
  %v32 = vld [vmem:[%s0 + $0x74] sm:$0xf]
  %v33 = vld [vmem:[%s0 + $0x78] sm:$0xff]
  %v34 = vld [vmem:[%s0 + $0x80] sm:$0xff]
  %v35 = vld [vmem:[%s0 + $0x88] sm:$0xf]
  %v36 = vld [vmem:[%s0 + $0x8c] sm:$0xff]
  %v37 = vld [vmem:[%s0 + $0x94] sm:$0xff]
  %v38 = vld [vmem:[%s0 + $0x9c] sm:$0xf]
  %v39 = vld [vmem:[%s0 + $0xa0] sm:$0xff]
  %v40 = vld [vmem:[%s0 + $0xa8] sm:$0xff]
  %v41 = vld [vmem:[%s0 + $0xb0] sm:$0xf]
  %v42 = vld [vmem:[%s0 + $0xb4] sm:$0xff]
  %v43 = vld [vmem:[%s0 + $0xbc] sm:$0xff]
  %v44 = vld [vmem:[%s0 + $0xc4] sm:$0xf]
  %v45 = vld [vmem:[%s0 + $0xc8] sm:$0xff]
  %v46 = vld [vmem:[%s0 + $0xd0] sm:$0xff]
  %v47 = vld [vmem:[%s0 + $0xd8] sm:$0xf]
  %v48 = vld [vmem:[%s0 + $0xdc] sm:$0xff]
  %v49 = vld [vmem:[%s0 + $0xe4] sm:$0xff]
  %v50 = vld [vmem:[%s0 + $0xec] sm:$0xf]
  %v51 = vld [vmem:[%s0 + $0xf0] sm:$0xff]
  %v52 = vld [vmem:[%s0 + $0xf8] sm:$0xff]
  %v53 = vld [vmem:[%s0 + $0x100] sm:$0xf]
  %v54 = vld [vmem:[%s0 + $0x104] sm:$0xff]
  %v55 = vld [vmem:[%s0 + $0x10c] sm:$0xff]
  %v56 = vld [vmem:[%s0 + $0x114] sm:$0xf]
  %v57 = vld [vmem:[%s1] sm:$0xf]
  %v58 = vld [vmem:[%s1 + $0x4] sm:$0xf]
  %v59 = vld [vmem:[%s1 + $0x8] sm:$0xf]
  %v60 = vld [vmem:[%s1 + $0xc] sm:$0xf]
  %v61 = vld [vmem:[%s1 + $0x10] sm:$0xf]
  %v62 = vld [vmem:[%s1 + $0x14] sm:$0xf]
  %v63 = vld [vmem:[%s1 + $0x18] sm:$0xf]
  %v64 = vld [vmem:[%s1 + $0x1c] sm:$0xf]
  %v65 = vld [vmem:[%s1 + $0x20] sm:$0xf]
  %v66 = vld [vmem:[%s1 + $0x24] sm:$0xf]
  %v67 = vld [vmem:[%s1 + $0x28] sm:$0xf]
  %v68 = vld [vmem:[%s1 + $0x2c] sm:$0xf]
  %v69 = vld [vmem:[%s1 + $0x30] sm:$0xf]
  %v70 = vld [vmem:[%s1 + $0x34] sm:$0xf]
  %v71 = vld [vmem:[%s1 + $0x38] sm:$0xf]
  %v72 = vld [vmem:[%s1 + $0x3c] sm:$0xf]
  %v73 = vld [vmem:[%s1 + $0x40] sm:$0xf]
  %v74 = vld [vmem:[%s1 + $0x44] sm:$0xf]
  %v75 = vld [vmem:[%s1 + $0x48] sm:$0xf]
  %v76 = vld [vmem:[%s1 + $0x4c] sm:$0xf]
  %v77 = vld [vmem:[%s1 + $0x50] sm:$0xf]
  %v78 = vld [vmem:[%s1 + $0x54] sm:$0xf]
  %v79 = vld [vmem:[%s1 + $0x58] sm:$0xf]
  %v80 = vld [vmem:[%s1 + $0x5c] sm:$0xf]
  %v81 = vld [vmem:[%s1 + $0x60] sm:$0xf]
  %v82 = vld [vmem:[%s1 + $0x64] sm:$0xf]
  %v83 = vld [vmem:[%s1 + $0x68] sm:$0xf]
  %v84 = vld [vmem:[%s1 + $0x6c] sm:$0xf]
  %v85 = vld [vmem:[%s1 + $0x70] sm:$0xf]
  %v86 = vld [vmem:[%s1 + $0x74] sm:$0xf]
  %v87 = vld [vmem:[%s1 + $0x78] sm:$0xf]
  %v88 = vld [vmem:[%s1 + $0x7c] sm:$0xf]
  %v89 = vld [vmem:[%s1 + $0x80] sm:$0xf]
  %v90 = vld [vmem:[%s1 + $0x84] sm:$0xf]
  %v91 = vld [vmem:[%s1 + $0x88] sm:$0xf]
  %v92 = vld [vmem:[%s1 + $0x8c] sm:$0xf]
  %v93 = vld [vmem:[%s1 + $0x90] sm:$0xf]
  %v94 = vld [vmem:[%s1 + $0x94] sm:$0xf]
  %v95 = vld [vmem:[%s1 + $0x98] sm:$0xf]
  %v96 = vld [vmem:[%s1 + $0x9c] sm:$0xf]
  %v97 = vld [vmem:[%s1 + $0xa0] sm:$0xf]
  %v98 = vld [vmem:[%s1 + $0xa4] sm:$0xf]
  %v99 = vld [vmem:[%s1 + $0xa8] sm:$0xf]
  %v100 = vld [vmem:[%s1 + $0xac] sm:$0xf]
  %v101 = vld [vmem:[%s1 + $0xb0] sm:$0xf]
  %v102 = vld [vmem:[%s1 + $0xb4] sm:$0xf]
  %v103 = vld [vmem:[%s1 + $0xb8] sm:$0xf]
  %v104 = vld [vmem:[%s1 + $0xbc] sm:$0xf]
  %v105 = vld [vmem:[%s1 + $0xc0] sm:$0xf]
  %v106 = vld [vmem:[%s1 + $0xc4] sm:$0xf]
  %v107 = vld [vmem:[%s1 + $0xc8] sm:$0xf]
  %v108 = vld [vmem:[%s1 + $0xcc] sm:$0xf]
  %v109 = vld [vmem:[%s1 + $0xd0] sm:$0xf]
  %v110 = vld [vmem:[%s1 + $0xd4] sm:$0xf]
  %v111 = vld [vmem:[%s1 + $0xd8] sm:$0xf]
  %v112 = vld [vmem:[%s1 + $0xdc] sm:$0xf]
  %v113 = vld [vmem:[%s1 + $0xe0] sm:$0xf]
  %v114 = vld [vmem:[%s1 + $0xe4] sm:$0xf]
  %v115 = vld [vmem:[%s1 + $0xe8] sm:$0xf]
  %v116 = vld [vmem:[%s1 + $0xec] sm:$0xf]
  %v117 = vld [vmem:[%s1 + $0xf0] sm:$0xf]
  %v118 = vld [vmem:[%s1 + $0xf4] sm:$0xf]
  %v119 = vld [vmem:[%s1 + $0xf8] sm:$0xf]
  %v120 = vld [vmem:[%s1 + $0xfc] sm:$0xf]
  %v121 = vld [vmem:[%s1 + $0x100] sm:$0xf]
  %v122 = vld [vmem:[%s1 + $0x104] sm:$0xf]
  %v123 = vld [vmem:[%s1 + $0x108] sm:$0xf]
  %v124 = vld [vmem:[%s1 + $0x10c] sm:$0xf]
  %v125 = vld [vmem:[%s1 + $0x110] sm:$0xf]
  %v126 = vld [vmem:[%s1 + $0x114] sm:$0xf]
  %v127 = vld [vmem:[%s1 + $0x118] sm:$0xf]
  %v128 = vld [vmem:[%s1 + $0x11c] sm:$0xf]
  %v129 = vld [vmem:[%s2] sm:$0x1]
  %v131 = vperm.slane %v129, 0
  %v175 = vunpack.c.l.b16 %v15
  %v176 = vunpack.c.h.b16 %v15
  %v177 = vunpack.c.l.b16 %v16
  %v178 = vunpack.c.h.b16 %v16
  %v179 = vunpack.c.l.b16 %v17
  %v180 = vunpack.c.l.b16 %v18
  %v181 = vunpack.c.h.b16 %v18
  %v182 = vunpack.c.l.b16 %v19
  %v183 = vunpack.c.h.b16 %v19
  %v184 = vunpack.c.l.b16 %v20
  %v185 = vunpack.c.l.b16 %v21
  %v186 = vunpack.c.h.b16 %v21
  %v187 = vunpack.c.l.b16 %v22
  %v188 = vunpack.c.h.b16 %v22
  %v189 = vunpack.c.l.b16 %v23
  %v190 = vunpack.c.l.b16 %v24
  %v191 = vunpack.c.h.b16 %v24
  %v192 = vunpack.c.l.b16 %v25
  %v193 = vunpack.c.h.b16 %v25
  %v194 = vunpack.c.l.b16 %v26
  %v195 = vunpack.c.l.b16 %v27
  %v196 = vunpack.c.h.b16 %v27
  %v197 = vunpack.c.l.b16 %v28
  %v198 = vunpack.c.h.b16 %v28
  %v199 = vunpack.c.l.b16 %v29
  %v200 = vunpack.c.l.b16 %v30
  %v201 = vunpack.c.h.b16 %v30
  %v202 = vunpack.c.l.b16 %v31
  %v203 = vunpack.c.h.b16 %v31
  %v204 = vunpack.c.l.b16 %v32
  %v205 = vunpack.c.l.b16 %v33
  %v206 = vunpack.c.h.b16 %v33
  %v207 = vunpack.c.l.b16 %v34
  %v208 = vunpack.c.h.b16 %v34
  %v209 = vunpack.c.l.b16 %v35
  %v210 = vunpack.c.l.b16 %v36
  %v211 = vunpack.c.h.b16 %v36
  %v212 = vunpack.c.l.b16 %v37
  %v213 = vunpack.c.h.b16 %v37
  %v214 = vunpack.c.l.b16 %v38
  %v215 = vunpack.c.l.b16 %v39
  %v216 = vunpack.c.h.b16 %v39
  %v217 = vunpack.c.l.b16 %v40
  %v218 = vunpack.c.h.b16 %v40
  %v219 = vunpack.c.l.b16 %v41
  %v220 = vunpack.c.l.b16 %v42
  %v221 = vunpack.c.h.b16 %v42
  %v222 = vunpack.c.l.b16 %v43
  %v223 = vunpack.c.h.b16 %v43
  %v224 = vunpack.c.l.b16 %v44
  %v225 = vunpack.c.l.b16 %v45
  %v226 = vunpack.c.h.b16 %v45
  %v227 = vunpack.c.l.b16 %v46
  %v228 = vunpack.c.h.b16 %v46
  %v229 = vunpack.c.l.b16 %v47
  %v230 = vunpack.c.l.b16 %v48
  %v231 = vunpack.c.h.b16 %v48
  %v232 = vunpack.c.l.b16 %v49
  %v233 = vunpack.c.h.b16 %v49
  %v234 = vunpack.c.l.b16 %v50
  %v235 = vunpack.c.l.b16 %v51
  %v236 = vunpack.c.h.b16 %v51
  %v237 = vunpack.c.l.b16 %v52
  %v238 = vunpack.c.h.b16 %v52
  %v239 = vunpack.c.l.b16 %v53
  %v240 = vunpack.c.l.b16 %v54
  %v241 = vunpack.c.h.b16 %v54
  %v242 = vunpack.c.l.b16 %v55
  %v243 = vunpack.c.h.b16 %v55
  %v244 = vunpack.c.l.b16 %v56
  %v245 = vpack.c.b16 %v180, %v175
  %v246 = vpack.c.b16 %v181, %v176
  %v247 = vpack.c.b16 %v182, %v177
  %v248 = vpack.c.b16 %v183, %v178
  %v249 = vpack.c.b16 %v184, %v179
  %v250 = vpack.c.b16 %v190, %v185
  %v251 = vpack.c.b16 %v191, %v186
  %v252 = vpack.c.b16 %v192, %v187
  %v253 = vpack.c.b16 %v193, %v188
  %v254 = vpack.c.b16 %v194, %v189
  %v255 = vpack.c.b16 %v200, %v195
  %v256 = vpack.c.b16 %v201, %v196
  %v257 = vpack.c.b16 %v202, %v197
  %v258 = vpack.c.b16 %v203, %v198
  %v259 = vpack.c.b16 %v204, %v199
  %v260 = vpack.c.b16 %v210, %v205
  %v261 = vpack.c.b16 %v211, %v206
  %v262 = vpack.c.b16 %v212, %v207
  %v263 = vpack.c.b16 %v213, %v208
  %v264 = vpack.c.b16 %v214, %v209
  %v265 = vpack.c.b16 %v220, %v215
  %v266 = vpack.c.b16 %v221, %v216
  %v267 = vpack.c.b16 %v222, %v217
  %v268 = vpack.c.b16 %v223, %v218
  %v269 = vpack.c.b16 %v224, %v219
  %v270 = vpack.c.b16 %v230, %v225
  %v271 = vpack.c.b16 %v231, %v226
  %v272 = vpack.c.b16 %v232, %v227
  %v273 = vpack.c.b16 %v233, %v228
  %v274 = vpack.c.b16 %v234, %v229
  %v275 = vpack.c.b16 %v240, %v235
  %v276 = vpack.c.b16 %v241, %v236
  %v277 = vpack.c.b16 %v242, %v237
  %v278 = vpack.c.b16 %v243, %v238
  %v279 = vpack.c.b16 %v244, %v239
  %v380 = vunpack.c.l.b16 %v57
  %v381 = vunpack.c.l.b16 %v58
  %v382 = vunpack.c.l.b16 %v59
  %v383 = vunpack.c.l.b16 %v60
  %v384 = vunpack.c.l.b16 %v61
  %v385 = vunpack.c.l.b16 %v62
  %v386 = vunpack.c.l.b16 %v63
  %v387 = vunpack.c.l.b16 %v64
  %v388 = vunpack.c.l.b16 %v65
  %v389 = vunpack.c.l.b16 %v66
  %v390 = vunpack.c.l.b16 %v67
  %v391 = vunpack.c.l.b16 %v68
  %v392 = vunpack.c.l.b16 %v69
  %v393 = vunpack.c.l.b16 %v70
  %v394 = vunpack.c.l.b16 %v71
  %v395 = vunpack.c.l.b16 %v72
  %v396 = vunpack.c.l.b16 %v73
  %v397 = vunpack.c.l.b16 %v74
  %v398 = vunpack.c.l.b16 %v75
  %v399 = vunpack.c.l.b16 %v76
  %v400 = vunpack.c.l.b16 %v77
  %v401 = vunpack.c.l.b16 %v78
  %v402 = vunpack.c.l.b16 %v79
  %v403 = vunpack.c.l.b16 %v80
  %v404 = vunpack.c.l.b16 %v81
  %v405 = vunpack.c.l.b16 %v82
  %v406 = vunpack.c.l.b16 %v83
  %v407 = vunpack.c.l.b16 %v84
  %v408 = vunpack.c.l.b16 %v85
  %v409 = vunpack.c.l.b16 %v86
  %v410 = vunpack.c.l.b16 %v87
  %v411 = vunpack.c.l.b16 %v88
  %v412 = vunpack.c.l.b16 %v89
  %v413 = vunpack.c.l.b16 %v90
  %v414 = vunpack.c.l.b16 %v91
  %v415 = vunpack.c.l.b16 %v92
  %v416 = vunpack.c.l.b16 %v93
  %v417 = vunpack.c.l.b16 %v94
  %v418 = vunpack.c.l.b16 %v95
  %v419 = vunpack.c.l.b16 %v96
  %v420 = vunpack.c.l.b16 %v97
  %v421 = vunpack.c.l.b16 %v98
  %v422 = vunpack.c.l.b16 %v99
  %v423 = vunpack.c.l.b16 %v100
  %v424 = vunpack.c.l.b16 %v101
  %v425 = vunpack.c.l.b16 %v102
  %v426 = vunpack.c.l.b16 %v103
  %v427 = vunpack.c.l.b16 %v104
  %v428 = vunpack.c.l.b16 %v105
  %v429 = vunpack.c.l.b16 %v106
  %v430 = vunpack.c.l.b16 %v107
  %v431 = vunpack.c.l.b16 %v108
  %v432 = vunpack.c.l.b16 %v109
  %v433 = vunpack.c.l.b16 %v110
  %v434 = vunpack.c.l.b16 %v111
  %v435 = vunpack.c.l.b16 %v112
  %v436 = vunpack.c.l.b16 %v113
  %v437 = vunpack.c.l.b16 %v114
  %v438 = vunpack.c.l.b16 %v115
  %v439 = vunpack.c.l.b16 %v116
  %v440 = vunpack.c.l.b16 %v117
  %v441 = vunpack.c.l.b16 %v118
  %v442 = vunpack.c.l.b16 %v119
  %v443 = vunpack.c.l.b16 %v120
  %v444 = vunpack.c.l.b16 %v121
  %v445 = vunpack.c.l.b16 %v122
  %v446 = vunpack.c.l.b16 %v123
  %v447 = vunpack.c.l.b16 %v124
  %v448 = vunpack.c.l.b16 %v125
  %v449 = vunpack.c.l.b16 %v126
  %v450 = vunpack.c.l.b16 %v127
  %v451 = vunpack.c.l.b16 %v128
  %v452 = vpack.c.b16 %v381, %v380
  %v453 = vpack.c.b16 %v383, %v382
  %v454 = vpack.c.b16 %v385, %v384
  %v455 = vpack.c.b16 %v387, %v386
  %v456 = vpack.c.b16 %v389, %v388
  %v457 = vpack.c.b16 %v391, %v390
  %v458 = vpack.c.b16 %v393, %v392
  %v459 = vpack.c.b16 %v395, %v394
  %v460 = vpack.c.b16 %v397, %v396
  %v461 = vpack.c.b16 %v399, %v398
  %v462 = vpack.c.b16 %v401, %v400
  %v463 = vpack.c.b16 %v403, %v402
  %v464 = vpack.c.b16 %v405, %v404
  %v465 = vpack.c.b16 %v407, %v406
  %v466 = vpack.c.b16 %v409, %v408
  %v467 = vpack.c.b16 %v411, %v410
  %v468 = vpack.c.b16 %v413, %v412
  %v469 = vpack.c.b16 %v415, %v414
  %v470 = vpack.c.b16 %v417, %v416
  %v471 = vpack.c.b16 %v419, %v418
  %v472 = vpack.c.b16 %v421, %v420
  %v473 = vpack.c.b16 %v423, %v422
  %v474 = vpack.c.b16 %v425, %v424
  %v475 = vpack.c.b16 %v427, %v426
  %v476 = vpack.c.b16 %v429, %v428
  %v477 = vpack.c.b16 %v431, %v430
  %v478 = vpack.c.b16 %v433, %v432
  %v479 = vpack.c.b16 %v435, %v434
  %v480 = vpack.c.b16 %v437, %v436
  %v481 = vpack.c.b16 %v439, %v438
  %v482 = vpack.c.b16 %v441, %v440
  %v483 = vpack.c.b16 %v443, %v442
  %v484 = vpack.c.b16 %v445, %v444
  %v485 = vpack.c.b16 %v447, %v446
  %v486 = vpack.c.b16 %v449, %v448
  %v487 = vpack.c.b16 %v451, %v450
  %vm524 = vcmask 523264
  %v526 = vsel %vm524, %v249, 0
  %v529 = vsel %vm524, %v254, 0
  %v532 = vsel %vm524, %v259, 0
  %v535 = vsel %vm524, %v264, 0
  %v538 = vsel %vm524, %v269, 0
  %v541 = vsel %vm524, %v274, 0
  %v544 = vsel %vm524, %v279, 0
  %546 = vmatpush.bf16.msra.mxu0 %v459
  %547 = vmatpush.bf16.msra.mxu0 %v458
  %548 = vmatpush.bf16.msra.mxu0 %v457
  %549 = vmatpush.bf16.msra.mxu0 %v456
  %550 = vmatpush.bf16.msra.mxu0 %v455
  %551 = vmatpush.bf16.msra.mxu0 %v454
  %552 = vmatpush.bf16.msra.mxu0 %v453
  %553 = vmatpush.bf16.msra.mxu0 %v452
  %554 = vmatmul.bf16.gmra.mxu0 %v245
  %v555 = vpop.f32.mrf.mxu0
  %v556 = vadd.f32 %v131, %v555
  %v557 = vpop.f32.mrf.mxu0
  %v558 = vadd.f32 %v131, %v557
  %559 = vmatmul.bf16.gmra.mxu0 %v250
  %v560 = vpop.f32.mrf.mxu0
  %v561 = vadd.f32 %v131, %v560
  %v562 = vpop.f32.mrf.mxu0
  %v563 = vadd.f32 %v131, %v562
  %564 = vmatmul.bf16.gmra.mxu0 %v255
  %v565 = vpop.f32.mrf.mxu0
  %v566 = vadd.f32 %v131, %v565
  %v567 = vpop.f32.mrf.mxu0
  %v568 = vadd.f32 %v131, %v567
  %569 = vmatmul.bf16.gmra.mxu0 %v260
  %v570 = vpop.f32.mrf.mxu0
  %v571 = vadd.f32 %v131, %v570
  %v572 = vpop.f32.mrf.mxu0
  %v573 = vadd.f32 %v131, %v572
  %574 = vmatmul.bf16.gmra.mxu0 %v265
  %v575 = vpop.f32.mrf.mxu0
  %v576 = vadd.f32 %v131, %v575
  %v577 = vpop.f32.mrf.mxu0
  %v578 = vadd.f32 %v131, %v577
  %579 = vmatmul.bf16.gmra.mxu0 %v270
  %v580 = vpop.f32.mrf.mxu0
  %v581 = vadd.f32 %v131, %v580
  %v582 = vpop.f32.mrf.mxu0
  %v583 = vadd.f32 %v131, %v582
  %584 = vmatmul.bf16.gmra.mxu0 %v275
  %v585 = vpop.f32.mrf.mxu0
  %v586 = vadd.f32 %v131, %v585
  %v587 = vpop.f32.mrf.mxu0
  %v588 = vadd.f32 %v131, %v587
  %589 = vdwg.mxu0
  %590 = vmatpush.bf16.msra.mxu0 %v467
  %591 = vmatpush.bf16.msra.mxu0 %v466
  %592 = vmatpush.bf16.msra.mxu0 %v465
  %593 = vmatpush.bf16.msra.mxu0 %v464
  %594 = vmatpush.bf16.msra.mxu0 %v463
  %595 = vmatpush.bf16.msra.mxu0 %v462
  %596 = vmatpush.bf16.msra.mxu0 %v461
  %597 = vmatpush.bf16.msra.mxu0 %v460
  %598 = vmatmul.bf16.gmra.mxu0 %v246
  %v599 = vpop.f32.mrf.mxu0
  %v600 = vadd.f32 %v556, %v599
  %v601 = vpop.f32.mrf.mxu0
  %v602 = vadd.f32 %v558, %v601
  %603 = vmatmul.bf16.gmra.mxu0 %v251
  %v604 = vpop.f32.mrf.mxu0
  %v605 = vadd.f32 %v561, %v604
  %v606 = vpop.f32.mrf.mxu0
  %v607 = vadd.f32 %v563, %v606
  %608 = vmatmul.bf16.gmra.mxu0 %v256
  %v609 = vpop.f32.mrf.mxu0
  %v610 = vadd.f32 %v566, %v609
  %v611 = vpop.f32.mrf.mxu0
  %v612 = vadd.f32 %v568, %v611
  %613 = vmatmul.bf16.gmra.mxu0 %v261
  %v614 = vpop.f32.mrf.mxu0
  %v615 = vadd.f32 %v571, %v614
  %v616 = vpop.f32.mrf.mxu0
  %v617 = vadd.f32 %v573, %v616
  %618 = vmatmul.bf16.gmra.mxu0 %v266
  %v619 = vpop.f32.mrf.mxu0
  %v620 = vadd.f32 %v576, %v619
  %v621 = vpop.f32.mrf.mxu0
  %v622 = vadd.f32 %v578, %v621
  %623 = vmatmul.bf16.gmra.mxu0 %v271
  %v624 = vpop.f32.mrf.mxu0
  %v625 = vadd.f32 %v581, %v624
  %v626 = vpop.f32.mrf.mxu0
  %v627 = vadd.f32 %v583, %v626
  %628 = vmatmul.bf16.gmra.mxu0 %v276
  %v629 = vpop.f32.mrf.mxu0
  %v630 = vadd.f32 %v586, %v629
  %v631 = vpop.f32.mrf.mxu0
  %v632 = vadd.f32 %v588, %v631
  %633 = vdwg.mxu0
  %634 = vmatpush.bf16.msra.mxu0 %v475
  %635 = vmatpush.bf16.msra.mxu0 %v474
  %636 = vmatpush.bf16.msra.mxu0 %v473
  %637 = vmatpush.bf16.msra.mxu0 %v472
  %638 = vmatpush.bf16.msra.mxu0 %v471
  %639 = vmatpush.bf16.msra.mxu0 %v470
  %640 = vmatpush.bf16.msra.mxu0 %v469
  %641 = vmatpush.bf16.msra.mxu0 %v468
  %642 = vmatmul.bf16.gmra.mxu0 %v247
  %v643 = vpop.f32.mrf.mxu0
  %v644 = vadd.f32 %v600, %v643
  %v645 = vpop.f32.mrf.mxu0
  %v646 = vadd.f32 %v602, %v645
  %647 = vmatmul.bf16.gmra.mxu0 %v252
  %v648 = vpop.f32.mrf.mxu0
  %v649 = vadd.f32 %v605, %v648
  %v650 = vpop.f32.mrf.mxu0
  %v651 = vadd.f32 %v607, %v650
  %652 = vmatmul.bf16.gmra.mxu0 %v257
  %v653 = vpop.f32.mrf.mxu0
  %v654 = vadd.f32 %v610, %v653
  %v655 = vpop.f32.mrf.mxu0
  %v656 = vadd.f32 %v612, %v655
  %657 = vmatmul.bf16.gmra.mxu0 %v262
  %v658 = vpop.f32.mrf.mxu0
  %v659 = vadd.f32 %v615, %v658
  %v660 = vpop.f32.mrf.mxu0
  %v661 = vadd.f32 %v617, %v660
  %662 = vmatmul.bf16.gmra.mxu0 %v267
  %v663 = vpop.f32.mrf.mxu0
  %v664 = vadd.f32 %v620, %v663
  %v665 = vpop.f32.mrf.mxu0
  %v666 = vadd.f32 %v622, %v665
  %667 = vmatmul.bf16.gmra.mxu0 %v272
  %v668 = vpop.f32.mrf.mxu0
  %v669 = vadd.f32 %v625, %v668
  %v670 = vpop.f32.mrf.mxu0
  %v671 = vadd.f32 %v627, %v670
  %672 = vmatmul.bf16.gmra.mxu0 %v277
  %v673 = vpop.f32.mrf.mxu0
  %v674 = vadd.f32 %v630, %v673
  %v675 = vpop.f32.mrf.mxu0
  %v676 = vadd.f32 %v632, %v675
  %677 = vdwg.mxu0
  %678 = vmatpush.bf16.msra.mxu0 %v483
  %679 = vmatpush.bf16.msra.mxu0 %v482
  %680 = vmatpush.bf16.msra.mxu0 %v481
  %681 = vmatpush.bf16.msra.mxu0 %v480
  %682 = vmatpush.bf16.msra.mxu0 %v479
  %683 = vmatpush.bf16.msra.mxu0 %v478
  %684 = vmatpush.bf16.msra.mxu0 %v477
  %685 = vmatpush.bf16.msra.mxu0 %v476
  %686 = vmatmul.bf16.gmra.mxu0 %v248
  %v687 = vpop.f32.mrf.mxu0
  %v688 = vadd.f32 %v644, %v687
  %v689 = vpop.f32.mrf.mxu0
  %v690 = vadd.f32 %v646, %v689
  %691 = vmatmul.bf16.gmra.mxu0 %v253
  %v692 = vpop.f32.mrf.mxu0
  %v693 = vadd.f32 %v649, %v692
  %v694 = vpop.f32.mrf.mxu0
  %v695 = vadd.f32 %v651, %v694
  %696 = vmatmul.bf16.gmra.mxu0 %v258
  %v697 = vpop.f32.mrf.mxu0
  %v698 = vadd.f32 %v654, %v697
  %v699 = vpop.f32.mrf.mxu0
  %v700 = vadd.f32 %v656, %v699
  %701 = vmatmul.bf16.gmra.mxu0 %v263
  %v702 = vpop.f32.mrf.mxu0
  %v703 = vadd.f32 %v659, %v702
  %v704 = vpop.f32.mrf.mxu0
  %v705 = vadd.f32 %v661, %v704
  %706 = vmatmul.bf16.gmra.mxu0 %v268
  %v707 = vpop.f32.mrf.mxu0
  %v708 = vadd.f32 %v664, %v707
  %v709 = vpop.f32.mrf.mxu0
  %v710 = vadd.f32 %v666, %v709
  %711 = vmatmul.bf16.gmra.mxu0 %v273
  %v712 = vpop.f32.mrf.mxu0
  %v713 = vadd.f32 %v669, %v712
  %v714 = vpop.f32.mrf.mxu0
  %v715 = vadd.f32 %v671, %v714
  %716 = vmatmul.bf16.gmra.mxu0 %v278
  %v717 = vpop.f32.mrf.mxu0
  %v718 = vadd.f32 %v674, %v717
  %v719 = vpop.f32.mrf.mxu0
  %v720 = vadd.f32 %v676, %v719
  %721 = vdwg.mxu0
  %722 = vmatpush.bf16.msra.mxu0 0
  %723 = vmatpush.bf16.msra.mxu0 0
  %724 = vmatpush.bf16.msra.mxu0 0
  %725 = vmatpush.bf16.msra.mxu0 0
  %726 = vmatpush.bf16.msra.mxu0 %v487
  %727 = vmatpush.bf16.msra.mxu0 %v486
  %728 = vmatpush.bf16.msra.mxu0 %v485
  %729 = vmatpush.bf16.msra.mxu0 %v484
  %730 = vmatmul.bf16.gmra.mxu0 %v526
  %v731 = vpop.f32.mrf.mxu0
  %v732 = vadd.f32 %v688, %v731
  %v733 = vpop.f32.mrf.mxu0
  %v734 = vadd.f32 %v690, %v733
  %735 = vmatmul.bf16.gmra.mxu0 %v529
  %v736 = vpop.f32.mrf.mxu0
  %v737 = vadd.f32 %v693, %v736
  %v738 = vpop.f32.mrf.mxu0
  %v739 = vadd.f32 %v695, %v738
  %740 = vmatmul.bf16.gmra.mxu0 %v532
  %v741 = vpop.f32.mrf.mxu0
  %v742 = vadd.f32 %v698, %v741
  %v743 = vpop.f32.mrf.mxu0
  %v744 = vadd.f32 %v700, %v743
  %745 = vmatmul.bf16.gmra.mxu0 %v535
  %v746 = vpop.f32.mrf.mxu0
  %v747 = vadd.f32 %v703, %v746
  %v748 = vpop.f32.mrf.mxu0
  %v749 = vadd.f32 %v705, %v748
  %750 = vmatmul.bf16.gmra.mxu0 %v538
  %v751 = vpop.f32.mrf.mxu0
  %v752 = vadd.f32 %v708, %v751
  %v753 = vpop.f32.mrf.mxu0
  %v754 = vadd.f32 %v710, %v753
  %755 = vmatmul.bf16.gmra.mxu0 %v541
  %v756 = vpop.f32.mrf.mxu0
  %v757 = vadd.f32 %v713, %v756
  %v758 = vpop.f32.mrf.mxu0
  %v759 = vadd.f32 %v715, %v758
  %760 = vmatmul.bf16.gmra.mxu0 %v544
  %v761 = vpop.f32.mrf.mxu0
  %v762 = vadd.f32 %v718, %v761
  %v763 = vpop.f32.mrf.mxu0
  %v764 = vadd.f32 %v720, %v763
  %765 = vdwg.mxu0
  %v766 = vmax.f32 %v732, 0.0
  %v767 = vmax.f32 %v734, 0.0
  %v768 = vmax.f32 %v737, 0.0
  %v769 = vmax.f32 %v739, 0.0
  %v770 = vmax.f32 %v742, 0.0
  %v771 = vmax.f32 %v744, 0.0
  %v772 = vmax.f32 %v747, 0.0
  %v773 = vmax.f32 %v749, 0.0
  %v774 = vmax.f32 %v752, 0.0
  %v775 = vmax.f32 %v754, 0.0
  %v776 = vmax.f32 %v757, 0.0
  %v777 = vmax.f32 %v759, 0.0
  %v778 = vmax.f32 %v762, 0.0
  %v779 = vmax.f32 %v764, 0.0
  %v780 = vpack.c.bf16 %v766, %v766
  %v781 = vpack.c.bf16 %v767, %v767
  %v782 = vpack.c.bf16 %v768, %v768
  %v783 = vpack.c.bf16 %v769, %v769
  %v784 = vpack.c.bf16 %v770, %v770
  %v785 = vpack.c.bf16 %v771, %v771
  %v786 = vpack.c.bf16 %v772, %v772
  %v787 = vpack.c.bf16 %v773, %v773
  %v788 = vpack.c.bf16 %v774, %v774
  %v789 = vpack.c.bf16 %v775, %v775
  %v790 = vpack.c.bf16 %v776, %v776
  %v791 = vpack.c.bf16 %v777, %v777
  %v792 = vpack.c.bf16 %v778, %v778
  %v793 = vpack.c.bf16 %v779, %v779
  %vm794 = vcmask 257024
  %795 = vst.msk [vmem:[%s3] sm:$0xf] %vm794, %v780
  %796 = vst.msk [vmem:[%s3 + $0x4] sm:$0xf] %vm794, %v781
  %797 = vst.msk [vmem:[%s3 + $0x8] sm:$0xf] %vm794, %v782
  %798 = vst.msk [vmem:[%s3 + $0xc] sm:$0xf] %vm794, %v783
  %799 = vst.msk [vmem:[%s3 + $0x10] sm:$0xf] %vm794, %v784
  %800 = vst.msk [vmem:[%s3 + $0x14] sm:$0xf] %vm794, %v785
  %801 = vst.msk [vmem:[%s3 + $0x18] sm:$0xf] %vm794, %v786
  %802 = vst.msk [vmem:[%s3 + $0x1c] sm:$0xf] %vm794, %v787
  %803 = vst.msk [vmem:[%s3 + $0x20] sm:$0xf] %vm794, %v788
  %804 = vst.msk [vmem:[%s3 + $0x24] sm:$0xf] %vm794, %v789
  %805 = vst.msk [vmem:[%s3 + $0x28] sm:$0xf] %vm794, %v790
  %806 = vst.msk [vmem:[%s3 + $0x2c] sm:$0xf] %vm794, %v791
  %807 = vst.msk [vmem:[%s3 + $0x30] sm:$0xf] %vm794, %v792
  %808 = vst.msk [vmem:[%s3 + $0x34] sm:$0xf] %vm794, %v793
  // Predicated region
  $region14: #{actor_critic_forward.6} parent=0 // pred_check
    _
  $region15: #{actor_critic_forward.6} parent=0 // pred_check_branch
    %810 = sbr.rel (0) target = $region17
  $region16: #{actor_critic_forward.6} parent=0 // pred_region
    _
  $region17: #{actor_critic_forward.6} parent=0 // pred_fallthru
    _
  // Predicated region
  $region18: #{actor_critic_forward.6} parent=0 // pred_check
    _
  $region19: #{actor_critic_forward.6} parent=0 // pred_check_branch
    %812 = sbr.rel (0) target = $region21
  $region20: #{actor_critic_forward.6} parent=0 // pred_region
    _
  $region21: #{actor_critic_forward.6} parent=0 // pred_fallthru
    _

// kernel: actor_critic_forward.7
$region0: #{actor_critic_forward.7}
  #allocation0 [shape = 'u32[]', space=smem, size = 0x4, offset = 0x4, fixed_abs, tag = 'smem constant byte address 0x4 - core index']
  #allocation1 [shape = 'u32[72,128]{1,0:T(1,128)}', space=vmem, size = 0x9000, scoped, tag = 'internal scratch']
  %s0 = inlined_call_operand.vmem [shape: bf16[16,1568], index: 0, kind: input, shape index: {}]
  %s1 = inlined_call_operand.vmem [shape: bf16[1568,512], index: 1, kind: input, shape index: {}]
  %s2 = inlined_call_operand.vmem [shape: f32[1,512], index: 2, kind: input, shape index: {}]
  %s3 = inlined_call_operand.vmem [shape: bf16[512,128], index: 3, kind: input, shape index: {}]
  %s4 = inlined_call_operand.vmem [shape: f32[1,128], index: 4, kind: input, shape index: {}]
  %s5 = inlined_call_operand.vmem [shape: f32[16,128], index: 5, kind: output, shape index: {}]
  %s6 = sld [smem:[#allocation0]]
  $region30: #{actor_critic_forward.7} parent=0
    _
  %s8 = ssub.s32 1, %s6
  %s9 = scalar_select 0, %s8, %s6
  // Predicated region
  $region2: #{actor_critic_forward.7} parent=0 // pred_check
    _
  $region3: #{actor_critic_forward.7} parent=0 // pred_check_branch
    %11 = sbr.rel (0) target = $region5
  $region4: #{actor_critic_forward.7} parent=0 // pred_region
    _
  $region5: #{actor_critic_forward.7} parent=0 // pred_fallthru
    _
  // Predicated region
  $region6: #{actor_critic_forward.7} parent=0 // pred_check
    _
  $region7: #{actor_critic_forward.7} parent=0 // pred_check_branch
    %13 = sbr.rel (0) target = $region9
  $region8: #{actor_critic_forward.7} parent=0 // pred_region
    _
  $region9: #{actor_critic_forward.7} parent=0 // pred_fallthru
    _
  // Predicated region
  $region10: #{actor_critic_forward.7} parent=0 // pred_check
    _
  $region11: #{actor_critic_forward.7} parent=0 // pred_check_branch
    %15 = sbr.rel (0) target = $region13
  $region12: #{actor_critic_forward.7} parent=0 // pred_region
    _
  $region13: #{actor_critic_forward.7} parent=0 // pred_fallthru
    _
  // Predicated region
  $region14: #{actor_critic_forward.7} parent=0 // pred_check
    _
  $region15: #{actor_critic_forward.7} parent=0 // pred_check_branch
    %17 = sbr.rel (0) target = $region17
  $region16: #{actor_critic_forward.7} parent=0 // pred_region
    _
  $region17: #{actor_critic_forward.7} parent=0 // pred_fallthru
    _
  // Predicated region
  $region18: #{actor_critic_forward.7} parent=0 // pred_check
    _
  $region19: #{actor_critic_forward.7} parent=0 // pred_check_branch
    %19 = sbr.rel (0) target = $region21
  $region20: #{actor_critic_forward.7} parent=0 // pred_region
    _
  $region21: #{actor_critic_forward.7} parent=0 // pred_fallthru
    _
  %v21 = vld [vmem:[%s0] sm:$0xff]
  %v22 = vld [vmem:[%s0 + $0x8] sm:$0xff]
  %v23 = vld [vmem:[%s0 + $0x10] sm:$0xff]
  %v24 = vld [vmem:[%s0 + $0x18] sm:$0xff]
  %v25 = vld [vmem:[%s0 + $0x20] sm:$0xff]
  %v26 = vld [vmem:[%s0 + $0x28] sm:$0xff]
  %v27 = vld [vmem:[%s0 + $0x30] sm:$0xf]
  %v28 = vld [vmem:[%s0 + $0x34] sm:$0xff]
  %v29 = vld [vmem:[%s0 + $0x3c] sm:$0xff]
  %v30 = vld [vmem:[%s0 + $0x44] sm:$0xff]
  %v31 = vld [vmem:[%s0 + $0x4c] sm:$0xff]
  %v32 = vld [vmem:[%s0 + $0x54] sm:$0xff]
  %v33 = vld [vmem:[%s0 + $0x5c] sm:$0xff]
  %v34 = vld [vmem:[%s0 + $0x64] sm:$0xf]
  %v35 = vld [vmem:[%s1] sm:$0xff]
  %v36 = vld [vmem:[%s1 + $0x8] sm:$0xff]
  %v37 = vld [vmem:[%s1 + $0x10] sm:$0xff]
  %v38 = vld [vmem:[%s1 + $0x18] sm:$0xff]
  %v39 = vld [vmem:[%s1 + $0x20] sm:$0xff]
  %v40 = vld [vmem:[%s1 + $0x28] sm:$0xff]
  %v41 = vld [vmem:[%s1 + $0x30] sm:$0xff]
  %v42 = vld [vmem:[%s1 + $0x38] sm:$0xff]
  %v43 = vld [vmem:[%s1 + $0x40] sm:$0xff]
  %v44 = vld [vmem:[%s1 + $0x48] sm:$0xff]
  %v45 = vld [vmem:[%s1 + $0x50] sm:$0xff]
  %v46 = vld [vmem:[%s1 + $0x58] sm:$0xff]
  %v47 = vld [vmem:[%s1 + $0x60] sm:$0xff]
  %v48 = vld [vmem:[%s1 + $0x68] sm:$0xff]
  %v49 = vld [vmem:[%s1 + $0x70] sm:$0xff]
  %v50 = vld [vmem:[%s1 + $0x78] sm:$0xff]
  %v51 = vld [vmem:[%s1 + $0x80] sm:$0xff]
  %v52 = vld [vmem:[%s1 + $0x88] sm:$0xff]
  %v53 = vld [vmem:[%s1 + $0x90] sm:$0xff]
  %v54 = vld [vmem:[%s1 + $0x98] sm:$0xff]
  %v55 = vld [vmem:[%s1 + $0xa0] sm:$0xff]
  %v56 = vld [vmem:[%s1 + $0xa8] sm:$0xff]
  %v57 = vld [vmem:[%s1 + $0xb0] sm:$0xff]
  %v58 = vld [vmem:[%s1 + $0xb8] sm:$0xff]
  %v59 = vld [vmem:[%s1 + $0xc0] sm:$0xff]
  %v60 = vld [vmem:[%s1 + $0xc8] sm:$0xff]
  %v61 = vld [vmem:[%s1 + $0xd0] sm:$0xff]
  %v62 = vld [vmem:[%s1 + $0xd8] sm:$0xff]
  %v63 = vld [vmem:[%s1 + $0xe0] sm:$0xff]
  %v64 = vld [vmem:[%s1 + $0xe8] sm:$0xff]
  %v65 = vld [vmem:[%s1 + $0xf0] sm:$0xff]
  %v66 = vld [vmem:[%s1 + $0xf8] sm:$0xff]
  %v67 = vld [vmem:[%s1 + $0x100] sm:$0xff]
  %v68 = vld [vmem:[%s1 + $0x108] sm:$0xff]
  %v69 = vld [vmem:[%s1 + $0x110] sm:$0xff]
  %v70 = vld [vmem:[%s1 + $0x118] sm:$0xff]
  %v71 = vld [vmem:[%s1 + $0x120] sm:$0xff]
  %v72 = vld [vmem:[%s1 + $0x128] sm:$0xff]
  %v73 = vld [vmem:[%s1 + $0x130] sm:$0xff]
  %v74 = vld [vmem:[%s1 + $0x138] sm:$0xff]
  %v75 = vld [vmem:[%s1 + $0x140] sm:$0xff]
  %v76 = vld [vmem:[%s1 + $0x148] sm:$0xff]
  %v77 = vld [vmem:[%s1 + $0x150] sm:$0xff]
  %v78 = vld [vmem:[%s1 + $0x158] sm:$0xff]
  %v79 = vld [vmem:[%s1 + $0x160] sm:$0xff]
  %v80 = vld [vmem:[%s1 + $0x168] sm:$0xff]
  %v81 = vld [vmem:[%s1 + $0x170] sm:$0xff]
  %v82 = vld [vmem:[%s1 + $0x178] sm:$0xff]
  %v83 = vld [vmem:[%s1 + $0x180] sm:$0xff]
  %v84 = vld [vmem:[%s1 + $0x188] sm:$0xff]
  %v85 = vld [vmem:[%s1 + $0x190] sm:$0xff]
  %v86 = vld [vmem:[%s1 + $0x198] sm:$0xff]
  %v87 = vld [vmem:[%s1 + $0x1a0] sm:$0xff]
  %v88 = vld [vmem:[%s1 + $0x1a8] sm:$0xff]
  %v89 = vld [vmem:[%s1 + $0x1b0] sm:$0xff]
  %v90 = vld [vmem:[%s1 + $0x1b8] sm:$0xff]
  %v91 = vld [vmem:[%s1 + $0x1c0] sm:$0xff]
  %v92 = vld [vmem:[%s1 + $0x1c8] sm:$0xff]
  %v93 = vld [vmem:[%s1 + $0x1d0] sm:$0xff]
  %v94 = vld [vmem:[%s1 + $0x1d8] sm:$0xff]
  %v95 = vld [vmem:[%s1 + $0x1e0] sm:$0xff]
  %v96 = vld [vmem:[%s1 + $0x1e8] sm:$0xff]
  %v97 = vld [vmem:[%s1 + $0x1f0] sm:$0xff]
  %v98 = vld [vmem:[%s1 + $0x1f8] sm:$0xff]
  %v99 = vld [vmem:[%s1 + $0x200] sm:$0xff]
  %v100 = vld [vmem:[%s1 + $0x208] sm:$0xff]
  %v101 = vld [vmem:[%s1 + $0x210] sm:$0xff]
  %v102 = vld [vmem:[%s1 + $0x218] sm:$0xff]
  %v103 = vld [vmem:[%s1 + $0x220] sm:$0xff]
  %v104 = vld [vmem:[%s1 + $0x228] sm:$0xff]
  %v105 = vld [vmem:[%s1 + $0x230] sm:$0xff]
  %v106 = vld [vmem:[%s1 + $0x238] sm:$0xff]
  %v107 = vld [vmem:[%s1 + $0x240] sm:$0xff]
  %v108 = vld [vmem:[%s1 + $0x248] sm:$0xff]
  %v109 = vld [vmem:[%s1 + $0x250] sm:$0xff]
  %v110 = vld [vmem:[%s1 + $0x258] sm:$0xff]
  %v111 = vld [vmem:[%s1 + $0x260] sm:$0xff]
  %v112 = vld [vmem:[%s1 + $0x268] sm:$0xff]
  %v113 = vld [vmem:[%s1 + $0x270] sm:$0xff]
  %v114 = vld [vmem:[%s1 + $0x278] sm:$0xff]
  %v115 = vld [vmem:[%s1 + $0x280] sm:$0xff]
  %v116 = vld [vmem:[%s1 + $0x288] sm:$0xff]
  %v117 = vld [vmem:[%s1 + $0x290] sm:$0xff]
  %v118 = vld [vmem:[%s1 + $0x298] sm:$0xff]
  %v119 = vld [vmem:[%s1 + $0x2a0] sm:$0xff]
  %v120 = vld [vmem:[%s1 + $0x2a8] sm:$0xff]
  %v121 = vld [vmem:[%s1 + $0x2b0] sm:$0xff]
  %v122 = vld [vmem:[%s1 + $0x2b8] sm:$0xff]
  %v123 = vld [vmem:[%s1 + $0x2c0] sm:$0xff]
  %v124 = vld [vmem:[%s1 + $0x2c8] sm:$0xff]
  %v125 = vld [vmem:[%s1 + $0x2d0] sm:$0xff]
  %v126 = vld [vmem:[%s1 + $0x2d8] sm:$0xff]
  %v127 = vld [vmem:[%s1 + $0x2e0] sm:$0xff]
  %v128 = vld [vmem:[%s1 + $0x2e8] sm:$0xff]
  %v129 = vld [vmem:[%s1 + $0x2f0] sm:$0xff]
  %v130 = vld [vmem:[%s1 + $0x2f8] sm:$0xff]
  %v131 = vld [vmem:[%s1 + $0x300] sm:$0xff]
  %v132 = vld [vmem:[%s1 + $0x308] sm:$0xff]
  %v133 = vld [vmem:[%s1 + $0x310] sm:$0xff]
  %v134 = vld [vmem:[%s1 + $0x318] sm:$0xff]
  %v135 = vld [vmem:[%s1 + $0x320] sm:$0xff]
  %v136 = vld [vmem:[%s1 + $0x328] sm:$0xff]
  %v137 = vld [vmem:[%s1 + $0x330] sm:$0xff]
  %v138 = vld [vmem:[%s1 + $0x338] sm:$0xff]
  %v139 = vld [vmem:[%s1 + $0x340] sm:$0xff]
  %v140 = vld [vmem:[%s1 + $0x348] sm:$0xff]
  %v141 = vld [vmem:[%s1 + $0x350] sm:$0xff]
  %v142 = vld [vmem:[%s1 + $0x358] sm:$0xff]
  %v143 = vld [vmem:[%s1 + $0x360] sm:$0xff]
  %v144 = vld [vmem:[%s1 + $0x368] sm:$0xff]
  %v145 = vld [vmem:[%s1 + $0x370] sm:$0xff]
  %v146 = vld [vmem:[%s1 + $0x378] sm:$0xff]
  %v147 = vld [vmem:[%s1 + $0x380] sm:$0xff]
  %v148 = vld [vmem:[%s1 + $0x388] sm:$0xff]
  %v149 = vld [vmem:[%s1 + $0x390] sm:$0xff]
  %v150 = vld [vmem:[%s1 + $0x398] sm:$0xff]
  %v151 = vld [vmem:[%s1 + $0x3a0] sm:$0xff]
  %v152 = vld [vmem:[%s1 + $0x3a8] sm:$0xff]
  %v153 = vld [vmem:[%s1 + $0x3b0] sm:$0xff]
  %v154 = vld [vmem:[%s1 + $0x3b8] sm:$0xff]
  %v155 = vld [vmem:[%s1 + $0x3c0] sm:$0xff]
  %v156 = vld [vmem:[%s1 + $0x3c8] sm:$0xff]
  %v157 = vld [vmem:[%s1 + $0x3d0] sm:$0xff]
  %v158 = vld [vmem:[%s1 + $0x3d8] sm:$0xff]
  %v159 = vld [vmem:[%s1 + $0x3e0] sm:$0xff]
  %v160 = vld [vmem:[%s1 + $0x3e8] sm:$0xff]
  %v161 = vld [vmem:[%s1 + $0x3f0] sm:$0xff]
  %v162 = vld [vmem:[%s1 + $0x3f8] sm:$0xff]
  %v163 = vld [vmem:[%s1 + $0x400] sm:$0xff]
  %v164 = vld [vmem:[%s1 + $0x408] sm:$0xff]
  %v165 = vld [vmem:[%s1 + $0x410] sm:$0xff]
  %v166 = vld [vmem:[%s1 + $0x418] sm:$0xff]
  %v167 = vld [vmem:[%s1 + $0x420] sm:$0xff]
  %v168 = vld [vmem:[%s1 + $0x428] sm:$0xff]
  %v169 = vld [vmem:[%s1 + $0x430] sm:$0xff]
  %v170 = vld [vmem:[%s1 + $0x438] sm:$0xff]
  %v171 = vld [vmem:[%s1 + $0x440] sm:$0xff]
  %v172 = vld [vmem:[%s1 + $0x448] sm:$0xff]
  %v173 = vld [vmem:[%s1 + $0x450] sm:$0xff]
  %v174 = vld [vmem:[%s1 + $0x458] sm:$0xff]
  %v175 = vld [vmem:[%s1 + $0x460] sm:$0xff]
  %v176 = vld [vmem:[%s1 + $0x468] sm:$0xff]
  %v177 = vld [vmem:[%s1 + $0x470] sm:$0xff]
  %v178 = vld [vmem:[%s1 + $0x478] sm:$0xff]
  %v179 = vld [vmem:[%s1 + $0x480] sm:$0xff]
  %v180 = vld [vmem:[%s1 + $0x488] sm:$0xff]
  %v181 = vld [vmem:[%s1 + $0x490] sm:$0xff]
  %v182 = vld [vmem:[%s1 + $0x498] sm:$0xff]
  %v183 = vld [vmem:[%s1 + $0x4a0] sm:$0xff]
  %v184 = vld [vmem:[%s1 + $0x4a8] sm:$0xff]
  %v185 = vld [vmem:[%s1 + $0x4b0] sm:$0xff]
  %v186 = vld [vmem:[%s1 + $0x4b8] sm:$0xff]
  %v187 = vld [vmem:[%s1 + $0x4c0] sm:$0xff]
  %v188 = vld [vmem:[%s1 + $0x4c8] sm:$0xff]
  %v189 = vld [vmem:[%s1 + $0x4d0] sm:$0xff]
  %v190 = vld [vmem:[%s1 + $0x4d8] sm:$0xff]
  %v191 = vld [vmem:[%s1 + $0x4e0] sm:$0xff]
  %v192 = vld [vmem:[%s1 + $0x4e8] sm:$0xff]
  %v193 = vld [vmem:[%s1 + $0x4f0] sm:$0xff]
  %v194 = vld [vmem:[%s1 + $0x4f8] sm:$0xff]
  %v195 = vld [vmem:[%s1 + $0x500] sm:$0xff]
  %v196 = vld [vmem:[%s1 + $0x508] sm:$0xff]
  %v197 = vld [vmem:[%s1 + $0x510] sm:$0xff]
  %v198 = vld [vmem:[%s1 + $0x518] sm:$0xff]
  %v199 = vld [vmem:[%s1 + $0x520] sm:$0xff]
  %v200 = vld [vmem:[%s1 + $0x528] sm:$0xff]
  %v201 = vld [vmem:[%s1 + $0x530] sm:$0xff]
  %v202 = vld [vmem:[%s1 + $0x538] sm:$0xff]
  %v203 = vld [vmem:[%s1 + $0x540] sm:$0xff]
  %v204 = vld [vmem:[%s1 + $0x548] sm:$0xff]
  %v205 = vld [vmem:[%s1 + $0x550] sm:$0xff]
  %v206 = vld [vmem:[%s1 + $0x558] sm:$0xff]
  %v207 = vld [vmem:[%s1 + $0x560] sm:$0xff]
  %v208 = vld [vmem:[%s1 + $0x568] sm:$0xff]
  %v209 = vld [vmem:[%s1 + $0x570] sm:$0xff]
  %v210 = vld [vmem:[%s1 + $0x578] sm:$0xff]
  %v211 = vld [vmem:[%s1 + $0x580] sm:$0xff]
  %v212 = vld [vmem:[%s1 + $0x588] sm:$0xff]
  %v213 = vld [vmem:[%s1 + $0x590] sm:$0xff]
  %v214 = vld [vmem:[%s1 + $0x598] sm:$0xff]
  %v215 = vld [vmem:[%s1 + $0x5a0] sm:$0xff]
  %v216 = vld [vmem:[%s1 + $0x5a8] sm:$0xff]
  %v217 = vld [vmem:[%s1 + $0x5b0] sm:$0xff]
  %v218 = vld [vmem:[%s1 + $0x5b8] sm:$0xff]
  %v219 = vld [vmem:[%s1 + $0x5c0] sm:$0xff]
  %v220 = vld [vmem:[%s1 + $0x5c8] sm:$0xff]
  %v221 = vld [vmem:[%s1 + $0x5d0] sm:$0xff]
  %v222 = vld [vmem:[%s1 + $0x5d8] sm:$0xff]
  %v223 = vld [vmem:[%s1 + $0x5e0] sm:$0xff]
  %v224 = vld [vmem:[%s1 + $0x5e8] sm:$0xff]
  %v225 = vld [vmem:[%s1 + $0x5f0] sm:$0xff]
  %v226 = vld [vmem:[%s1 + $0x5f8] sm:$0xff]
  %v227 = vld [vmem:[%s1 + $0x600] sm:$0xff]
  %v228 = vld [vmem:[%s1 + $0x608] sm:$0xff]
  %v229 = vld [vmem:[%s1 + $0x610] sm:$0xff]
  %v230 = vld [vmem:[%s1 + $0x618] sm:$0xff]
  %v231 = vld [vmem:[%s1 + $0x620] sm:$0xff]
  %v232 = vld [vmem:[%s1 + $0x628] sm:$0xff]
  %v233 = vld [vmem:[%s1 + $0x630] sm:$0xff]
  %v234 = vld [vmem:[%s1 + $0x638] sm:$0xff]
  %v235 = vld [vmem:[%s1 + $0x640] sm:$0xff]
  %v236 = vld [vmem:[%s1 + $0x648] sm:$0xff]
  %v237 = vld [vmem:[%s1 + $0x650] sm:$0xff]
  %v238 = vld [vmem:[%s1 + $0x658] sm:$0xff]
  %v239 = vld [vmem:[%s1 + $0x660] sm:$0xff]
  %v240 = vld [vmem:[%s1 + $0x668] sm:$0xff]
  %v241 = vld [vmem:[%s1 + $0x670] sm:$0xff]
  %v242 = vld [vmem:[%s1 + $0x678] sm:$0xff]
  %v243 = vld [vmem:[%s1 + $0x680] sm:$0xff]
  %v244 = vld [vmem:[%s1 + $0x688] sm:$0xff]
  %v245 = vld [vmem:[%s1 + $0x690] sm:$0xff]
  %v246 = vld [vmem:[%s1 + $0x698] sm:$0xff]
  %v247 = vld [vmem:[%s1 + $0x6a0] sm:$0xff]
  %v248 = vld [vmem:[%s1 + $0x6a8] sm:$0xff]
  %v249 = vld [vmem:[%s1 + $0x6b0] sm:$0xff]
  %v250 = vld [vmem:[%s1 + $0x6b8] sm:$0xff]
  %v251 = vld [vmem:[%s1 + $0x6c0] sm:$0xff]
  %v252 = vld [vmem:[%s1 + $0x6c8] sm:$0xff]
  %v253 = vld [vmem:[%s1 + $0x6d0] sm:$0xff]
  %v254 = vld [vmem:[%s1 + $0x6d8] sm:$0xff]
  %v255 = vld [vmem:[%s1 + $0x6e0] sm:$0xff]
  %v256 = vld [vmem:[%s1 + $0x6e8] sm:$0xff]
  %v257 = vld [vmem:[%s1 + $0x6f0] sm:$0xff]
  %v258 = vld [vmem:[%s1 + $0x6f8] sm:$0xff]
  %v259 = vld [vmem:[%s1 + $0x700] sm:$0xff]
  %v260 = vld [vmem:[%s1 + $0x708] sm:$0xff]
  %v261 = vld [vmem:[%s1 + $0x710] sm:$0xff]
  %v262 = vld [vmem:[%s1 + $0x718] sm:$0xff]
  %v263 = vld [vmem:[%s1 + $0x720] sm:$0xff]
  %v264 = vld [vmem:[%s1 + $0x728] sm:$0xff]
  %v265 = vld [vmem:[%s1 + $0x730] sm:$0xff]
  %v266 = vld [vmem:[%s1 + $0x738] sm:$0xff]
  %v267 = vld [vmem:[%s1 + $0x740] sm:$0xff]
  %v268 = vld [vmem:[%s1 + $0x748] sm:$0xff]
  %v269 = vld [vmem:[%s1 + $0x750] sm:$0xff]
  %v270 = vld [vmem:[%s1 + $0x758] sm:$0xff]
  %v271 = vld [vmem:[%s1 + $0x760] sm:$0xff]
  %v272 = vld [vmem:[%s1 + $0x768] sm:$0xff]
  %v273 = vld [vmem:[%s1 + $0x770] sm:$0xff]
  %v274 = vld [vmem:[%s1 + $0x778] sm:$0xff]
  %v275 = vld [vmem:[%s1 + $0x780] sm:$0xff]
  %v276 = vld [vmem:[%s1 + $0x788] sm:$0xff]
  %v277 = vld [vmem:[%s1 + $0x790] sm:$0xff]
  %v278 = vld [vmem:[%s1 + $0x798] sm:$0xff]
  %v279 = vld [vmem:[%s1 + $0x7a0] sm:$0xff]
  %v280 = vld [vmem:[%s1 + $0x7a8] sm:$0xff]
  %v281 = vld [vmem:[%s1 + $0x7b0] sm:$0xff]
  %v282 = vld [vmem:[%s1 + $0x7b8] sm:$0xff]
  %v283 = vld [vmem:[%s1 + $0x7c0] sm:$0xff]
  %v284 = vld [vmem:[%s1 + $0x7c8] sm:$0xff]
  %v285 = vld [vmem:[%s1 + $0x7d0] sm:$0xff]
  %v286 = vld [vmem:[%s1 + $0x7d8] sm:$0xff]
  %v287 = vld [vmem:[%s1 + $0x7e0] sm:$0xff]
  %v288 = vld [vmem:[%s1 + $0x7e8] sm:$0xff]
  %v289 = vld [vmem:[%s1 + $0x7f0] sm:$0xff]
  %v290 = vld [vmem:[%s1 + $0x7f8] sm:$0xff]
  %v291 = vld [vmem:[%s1 + $0x800] sm:$0xff]
  %v292 = vld [vmem:[%s1 + $0x808] sm:$0xff]
  %v293 = vld [vmem:[%s1 + $0x810] sm:$0xff]
  %v294 = vld [vmem:[%s1 + $0x818] sm:$0xff]
  %v295 = vld [vmem:[%s1 + $0x820] sm:$0xff]
  %v296 = vld [vmem:[%s1 + $0x828] sm:$0xff]
  %v297 = vld [vmem:[%s1 + $0x830] sm:$0xff]
  %v298 = vld [vmem:[%s1 + $0x838] sm:$0xff]
  %v299 = vld [vmem:[%s1 + $0x840] sm:$0xff]
  %v300 = vld [vmem:[%s1 + $0x848] sm:$0xff]
  %v301 = vld [vmem:[%s1 + $0x850] sm:$0xff]
  %v302 = vld [vmem:[%s1 + $0x858] sm:$0xff]
  %v303 = vld [vmem:[%s1 + $0x860] sm:$0xff]
  %v304 = vld [vmem:[%s1 + $0x868] sm:$0xff]
  %v305 = vld [vmem:[%s1 + $0x870] sm:$0xff]
  %v306 = vld [vmem:[%s1 + $0x878] sm:$0xff]
  %v307 = vld [vmem:[%s1 + $0x880] sm:$0xff]
  %v308 = vld [vmem:[%s1 + $0x888] sm:$0xff]
  %v309 = vld [vmem:[%s1 + $0x890] sm:$0xff]
  %v310 = vld [vmem:[%s1 + $0x898] sm:$0xff]
  %v311 = vld [vmem:[%s1 + $0x8a0] sm:$0xff]
  %v312 = vld [vmem:[%s1 + $0x8a8] sm:$0xff]
  %v313 = vld [vmem:[%s1 + $0x8b0] sm:$0xff]
  %v314 = vld [vmem:[%s1 + $0x8b8] sm:$0xff]
  %v315 = vld [vmem:[%s1 + $0x8c0] sm:$0xff]
  %v316 = vld [vmem:[%s1 + $0x8c8] sm:$0xff]
  %v317 = vld [vmem:[%s1 + $0x8d0] sm:$0xff]
  %v318 = vld [vmem:[%s1 + $0x8d8] sm:$0xff]
  %v319 = vld [vmem:[%s1 + $0x8e0] sm:$0xff]
  %v320 = vld [vmem:[%s1 + $0x8e8] sm:$0xff]
  %v321 = vld [vmem:[%s1 + $0x8f0] sm:$0xff]
  %v322 = vld [vmem:[%s1 + $0x8f8] sm:$0xff]
  %v323 = vld [vmem:[%s1 + $0x900] sm:$0xff]
  %v324 = vld [vmem:[%s1 + $0x908] sm:$0xff]
  %v325 = vld [vmem:[%s1 + $0x910] sm:$0xff]
  %v326 = vld [vmem:[%s1 + $0x918] sm:$0xff]
  %v327 = vld [vmem:[%s1 + $0x920] sm:$0xff]
  %v328 = vld [vmem:[%s1 + $0x928] sm:$0xff]
  %v329 = vld [vmem:[%s1 + $0x930] sm:$0xff]
  %v330 = vld [vmem:[%s1 + $0x938] sm:$0xff]
  %v331 = vld [vmem:[%s1 + $0x940] sm:$0xff]
  %v332 = vld [vmem:[%s1 + $0x948] sm:$0xff]
  %v333 = vld [vmem:[%s1 + $0x950] sm:$0xff]
  %v334 = vld [vmem:[%s1 + $0x958] sm:$0xff]
  %v335 = vld [vmem:[%s1 + $0x960] sm:$0xff]
  %v336 = vld [vmem:[%s1 + $0x968] sm:$0xff]
  %v337 = vld [vmem:[%s1 + $0x970] sm:$0xff]
  %v338 = vld [vmem:[%s1 + $0x978] sm:$0xff]
  %v339 = vld [vmem:[%s1 + $0x980] sm:$0xff]
  %v340 = vld [vmem:[%s1 + $0x988] sm:$0xff]
  %v341 = vld [vmem:[%s1 + $0x990] sm:$0xff]
  %v342 = vld [vmem:[%s1 + $0x998] sm:$0xff]
  %v343 = vld [vmem:[%s1 + $0x9a0] sm:$0xff]
  %v344 = vld [vmem:[%s1 + $0x9a8] sm:$0xff]
  %v345 = vld [vmem:[%s1 + $0x9b0] sm:$0xff]
  %v346 = vld [vmem:[%s1 + $0x9b8] sm:$0xff]
  %v347 = vld [vmem:[%s1 + $0x9c0] sm:$0xff]
  %v348 = vld [vmem:[%s1 + $0x9c8] sm:$0xff]
  %v349 = vld [vmem:[%s1 + $0x9d0] sm:$0xff]
  %v350 = vld [vmem:[%s1 + $0x9d8] sm:$0xff]
  %v351 = vld [vmem:[%s1 + $0x9e0] sm:$0xff]
  %v352 = vld [vmem:[%s1 + $0x9e8] sm:$0xff]
  %v353 = vld [vmem:[%s1 + $0x9f0] sm:$0xff]
  %v354 = vld [vmem:[%s1 + $0x9f8] sm:$0xff]
  %v355 = vld [vmem:[%s1 + $0xa00] sm:$0xff]
  %v356 = vld [vmem:[%s1 + $0xa08] sm:$0xff]
  %v357 = vld [vmem:[%s1 + $0xa10] sm:$0xff]
  %v358 = vld [vmem:[%s1 + $0xa18] sm:$0xff]
  %v359 = vld [vmem:[%s1 + $0xa20] sm:$0xff]
  %v360 = vld [vmem:[%s1 + $0xa28] sm:$0xff]
  %v361 = vld [vmem:[%s1 + $0xa30] sm:$0xff]
  %v362 = vld [vmem:[%s1 + $0xa38] sm:$0xff]
  %v363 = vld [vmem:[%s1 + $0xa40] sm:$0xff]
  %v364 = vld [vmem:[%s1 + $0xa48] sm:$0xff]
  %v365 = vld [vmem:[%s1 + $0xa50] sm:$0xff]
  %v366 = vld [vmem:[%s1 + $0xa58] sm:$0xff]
  %v367 = vld [vmem:[%s1 + $0xa60] sm:$0xff]
  %v368 = vld [vmem:[%s1 + $0xa68] sm:$0xff]
  %v369 = vld [vmem:[%s1 + $0xa70] sm:$0xff]
  %v370 = vld [vmem:[%s1 + $0xa78] sm:$0xff]
  %v371 = vld [vmem:[%s1 + $0xa80] sm:$0xff]
  %v372 = vld [vmem:[%s1 + $0xa88] sm:$0xff]
  %v373 = vld [vmem:[%s1 + $0xa90] sm:$0xff]
  %v374 = vld [vmem:[%s1 + $0xa98] sm:$0xff]
  %v375 = vld [vmem:[%s1 + $0xaa0] sm:$0xff]
  %v376 = vld [vmem:[%s1 + $0xaa8] sm:$0xff]
  %v377 = vld [vmem:[%s1 + $0xab0] sm:$0xff]
  %v378 = vld [vmem:[%s1 + $0xab8] sm:$0xff]
  %v379 = vld [vmem:[%s1 + $0xac0] sm:$0xff]
  %v380 = vld [vmem:[%s1 + $0xac8] sm:$0xff]
  %v381 = vld [vmem:[%s1 + $0xad0] sm:$0xff]
  %v382 = vld [vmem:[%s1 + $0xad8] sm:$0xff]
  %v383 = vld [vmem:[%s1 + $0xae0] sm:$0xff]
  %v384 = vld [vmem:[%s1 + $0xae8] sm:$0xff]
  %v385 = vld [vmem:[%s1 + $0xaf0] sm:$0xff]
  %v386 = vld [vmem:[%s1 + $0xaf8] sm:$0xff]
  %v387 = vld [vmem:[%s1 + $0xb00] sm:$0xff]
  %v388 = vld [vmem:[%s1 + $0xb08] sm:$0xff]
  %v389 = vld [vmem:[%s1 + $0xb10] sm:$0xff]
  %v390 = vld [vmem:[%s1 + $0xb18] sm:$0xff]
  %v391 = vld [vmem:[%s1 + $0xb20] sm:$0xff]
  %v392 = vld [vmem:[%s1 + $0xb28] sm:$0xff]
  %v393 = vld [vmem:[%s1 + $0xb30] sm:$0xff]
  %v394 = vld [vmem:[%s1 + $0xb38] sm:$0xff]
  %v395 = vld [vmem:[%s1 + $0xb40] sm:$0xff]
  %v396 = vld [vmem:[%s1 + $0xb48] sm:$0xff]
  %v397 = vld [vmem:[%s1 + $0xb50] sm:$0xff]
  %v398 = vld [vmem:[%s1 + $0xb58] sm:$0xff]
  %v399 = vld [vmem:[%s1 + $0xb60] sm:$0xff]
  %v400 = vld [vmem:[%s1 + $0xb68] sm:$0xff]
  %v401 = vld [vmem:[%s1 + $0xb70] sm:$0xff]
  %v402 = vld [vmem:[%s1 + $0xb78] sm:$0xff]
  %v403 = vld [vmem:[%s1 + $0xb80] sm:$0xff]
  %v404 = vld [vmem:[%s1 + $0xb88] sm:$0xff]
  %v405 = vld [vmem:[%s1 + $0xb90] sm:$0xff]
  %v406 = vld [vmem:[%s1 + $0xb98] sm:$0xff]
  %v407 = vld [vmem:[%s1 + $0xba0] sm:$0xff]
  %v408 = vld [vmem:[%s1 + $0xba8] sm:$0xff]
  %v409 = vld [vmem:[%s1 + $0xbb0] sm:$0xff]
  %v410 = vld [vmem:[%s1 + $0xbb8] sm:$0xff]
  %v411 = vld [vmem:[%s1 + $0xbc0] sm:$0xff]
  %v412 = vld [vmem:[%s1 + $0xbc8] sm:$0xff]
  %v413 = vld [vmem:[%s1 + $0xbd0] sm:$0xff]
  %v414 = vld [vmem:[%s1 + $0xbd8] sm:$0xff]
  %v415 = vld [vmem:[%s1 + $0xbe0] sm:$0xff]
  %v416 = vld [vmem:[%s1 + $0xbe8] sm:$0xff]
  %v417 = vld [vmem:[%s1 + $0xbf0] sm:$0xff]
  %v418 = vld [vmem:[%s1 + $0xbf8] sm:$0xff]
  %v419 = vld [vmem:[%s1 + $0xc00] sm:$0xff]
  %v420 = vld [vmem:[%s1 + $0xc08] sm:$0xff]
  %v421 = vld [vmem:[%s1 + $0xc10] sm:$0xff]
  %v422 = vld [vmem:[%s1 + $0xc18] sm:$0xff]
  %v423 = vld [vmem:[%s1 + $0xc20] sm:$0xff]
  %v424 = vld [vmem:[%s1 + $0xc28] sm:$0xff]
  %v425 = vld [vmem:[%s1 + $0xc30] sm:$0xff]
  %v426 = vld [vmem:[%s1 + $0xc38] sm:$0xff]
  %v427 = vld [vmem:[%s2] sm:$0xf]
  %v429 = vperm.slane %v427, 0
  %v430 = vperm.slane %v427, 1
  %v431 = vperm.slane %v427, 2
  %v432 = vperm.slane %v427, 3
  %v451 = vunpack.c.l.b16 %v21
  %v452 = vunpack.c.h.b16 %v21
  %v453 = vunpack.c.l.b16 %v22
  %v454 = vunpack.c.h.b16 %v22
  %v455 = vunpack.c.l.b16 %v23
  %v456 = vunpack.c.h.b16 %v23
  %v457 = vunpack.c.l.b16 %v24
  %v458 = vunpack.c.h.b16 %v24
  %v459 = vunpack.c.l.b16 %v25
  %v460 = vunpack.c.h.b16 %v25
  %v461 = vunpack.c.l.b16 %v26
  %v462 = vunpack.c.h.b16 %v26
  %v463 = vunpack.c.l.b16 %v27
  %v464 = vunpack.c.l.b16 %v28
  %v465 = vunpack.c.h.b16 %v28
  %v466 = vunpack.c.l.b16 %v29
  %v467 = vunpack.c.h.b16 %v29
  %v468 = vunpack.c.l.b16 %v30
  %v469 = vunpack.c.h.b16 %v30
  %v470 = vunpack.c.l.b16 %v31
  %v471 = vunpack.c.h.b16 %v31
  %v472 = vunpack.c.l.b16 %v32
  %v473 = vunpack.c.h.b16 %v32
  %v474 = vunpack.c.l.b16 %v33
  %v475 = vunpack.c.h.b16 %v33
  %v476 = vunpack.c.l.b16 %v34
  %v477 = vpack.c.b16 %v464, %v451
  %v478 = vpack.c.b16 %v465, %v452
  %v479 = vpack.c.b16 %v466, %v453
  %v480 = vpack.c.b16 %v467, %v454
  %v481 = vpack.c.b16 %v468, %v455
  %v482 = vpack.c.b16 %v469, %v456
  %v483 = vpack.c.b16 %v470, %v457
  %v484 = vpack.c.b16 %v471, %v458
  %v485 = vpack.c.b16 %v472, %v459
  %v486 = vpack.c.b16 %v473, %v460
  %v487 = vpack.c.b16 %v474, %v461
  %v488 = vpack.c.b16 %v475, %v462
  %v489 = vpack.c.b16 %v476, %v463
  %v894 = vunpack.c.l.b16 %v35
  %v895 = vunpack.c.h.b16 %v35
  %v896 = vunpack.c.l.b16 %v36
  %v897 = vunpack.c.h.b16 %v36
  %v898 = vunpack.c.l.b16 %v37
  %v899 = vunpack.c.h.b16 %v37
  %v900 = vunpack.c.l.b16 %v38
  %v901 = vunpack.c.h.b16 %v38
  %v902 = vunpack.c.l.b16 %v39
  %v903 = vunpack.c.h.b16 %v39
  %v904 = vunpack.c.l.b16 %v40
  %v905 = vunpack.c.h.b16 %v40
  %v906 = vunpack.c.l.b16 %v41
  %v907 = vunpack.c.h.b16 %v41
  %v908 = vunpack.c.l.b16 %v42
  %v909 = vunpack.c.h.b16 %v42
  %v910 = vunpack.c.l.b16 %v43
  %v911 = vunpack.c.h.b16 %v43
  %v912 = vunpack.c.l.b16 %v44
  %v913 = vunpack.c.h.b16 %v44
  %v914 = vunpack.c.l.b16 %v45
  %v915 = vunpack.c.h.b16 %v45
  %v916 = vunpack.c.l.b16 %v46
  %v917 = vunpack.c.h.b16 %v46
  %v918 = vunpack.c.l.b16 %v47
  %v919 = vunpack.c.h.b16 %v47
  %v920 = vunpack.c.l.b16 %v48
  %v921 = vunpack.c.h.b16 %v48
  %v922 = vunpack.c.l.b16 %v49
  %v923 = vunpack.c.h.b16 %v49
  %v924 = vunpack.c.l.b16 %v50
  %v925 = vunpack.c.h.b16 %v50
  %v926 = vunpack.c.l.b16 %v51
  %v927 = vunpack.c.h.b16 %v51
  %v928 = vunpack.c.l.b16 %v52
  %v929 = vunpack.c.h.b16 %v52
  %v930 = vunpack.c.l.b16 %v53
  %v931 = vunpack.c.h.b16 %v53
  %v932 = vunpack.c.l.b16 %v54
  %v933 = vunpack.c.h.b16 %v54
  %v934 = vunpack.c.l.b16 %v55
  %v935 = vunpack.c.h.b16 %v55
  %v936 = vunpack.c.l.b16 %v56
  %v937 = vunpack.c.h.b16 %v56
  %v938 = vunpack.c.l.b16 %v57
  %v939 = vunpack.c.h.b16 %v57
  %v940 = vunpack.c.l.b16 %v58
  %v941 = vunpack.c.h.b16 %v58
  %v942 = vunpack.c.l.b16 %v59
  %v943 = vunpack.c.h.b16 %v59
  %v944 = vunpack.c.l.b16 %v60
  %v945 = vunpack.c.h.b16 %v60
  %v946 = vunpack.c.l.b16 %v61
  %v947 = vunpack.c.h.b16 %v61
  %v948 = vunpack.c.l.b16 %v62
  %v949 = vunpack.c.h.b16 %v62
  %v950 = vunpack.c.l.b16 %v63
  %v951 = vunpack.c.h.b16 %v63
  %v952 = vunpack.c.l.b16 %v64
  %v953 = vunpack.c.h.b16 %v64
  %v954 = vunpack.c.l.b16 %v65
  %v955 = vunpack.c.h.b16 %v65
  %v956 = vunpack.c.l.b16 %v66
  %v957 = vunpack.c.h.b16 %v66
  %v958 = vunpack.c.l.b16 %v67
  %v959 = vunpack.c.h.b16 %v67
  %v960 = vunpack.c.l.b16 %v68
  %v961 = vunpack.c.h.b16 %v68
  %v962 = vunpack.c.l.b16 %v69
  %v963 = vunpack.c.h.b16 %v69
  %v964 = vunpack.c.l.b16 %v70
  %v965 = vunpack.c.h.b16 %v70
  %v966 = vunpack.c.l.b16 %v71
  %v967 = vunpack.c.h.b16 %v71
  %v968 = vunpack.c.l.b16 %v72
  %v969 = vunpack.c.h.b16 %v72
  %v970 = vunpack.c.l.b16 %v73
  %v971 = vunpack.c.h.b16 %v73
  %v972 = vunpack.c.l.b16 %v74
  %v973 = vunpack.c.h.b16 %v74
  %v974 = vunpack.c.l.b16 %v75
  %v975 = vunpack.c.h.b16 %v75
  %v976 = vunpack.c.l.b16 %v76
  %v977 = vunpack.c.h.b16 %v76
  %v978 = vunpack.c.l.b16 %v77
  %v979 = vunpack.c.h.b16 %v77
  %v980 = vunpack.c.l.b16 %v78
  %v981 = vunpack.c.h.b16 %v78
  %v982 = vunpack.c.l.b16 %v79
  %v983 = vunpack.c.h.b16 %v79
  %v984 = vunpack.c.l.b16 %v80
  %v985 = vunpack.c.h.b16 %v80
  %v986 = vunpack.c.l.b16 %v81
  %v987 = vunpack.c.h.b16 %v81
  %v988 = vunpack.c.l.b16 %v82
  %v989 = vunpack.c.h.b16 %v82
  %v990 = vunpack.c.l.b16 %v83
  %v991 = vunpack.c.h.b16 %v83
  %v992 = vunpack.c.l.b16 %v84
  %v993 = vunpack.c.h.b16 %v84
  %v994 = vunpack.c.l.b16 %v85
  %v995 = vunpack.c.h.b16 %v85
  %v996 = vunpack.c.l.b16 %v86
  %v997 = vunpack.c.h.b16 %v86
  %v998 = vunpack.c.l.b16 %v87
  %v999 = vunpack.c.h.b16 %v87
  %v1000 = vunpack.c.l.b16 %v88
  %v1001 = vunpack.c.h.b16 %v88
  %v1002 = vunpack.c.l.b16 %v89
  %v1003 = vunpack.c.h.b16 %v89
  %v1004 = vunpack.c.l.b16 %v90
  %v1005 = vunpack.c.h.b16 %v90
  %v1006 = vunpack.c.l.b16 %v91
  %v1007 = vunpack.c.h.b16 %v91
  %v1008 = vunpack.c.l.b16 %v92
  %v1009 = vunpack.c.h.b16 %v92
  %v1010 = vunpack.c.l.b16 %v93
  %v1011 = vunpack.c.h.b16 %v93
  %v1012 = vunpack.c.l.b16 %v94
  %v1013 = vunpack.c.h.b16 %v94
  %v1014 = vunpack.c.l.b16 %v95
  %v1015 = vunpack.c.h.b16 %v95
  %v1016 = vunpack.c.l.b16 %v96
  %v1017 = vunpack.c.h.b16 %v96
  %v1018 = vunpack.c.l.b16 %v97
  %v1019 = vunpack.c.h.b16 %v97
  %v1020 = vunpack.c.l.b16 %v98
  %v1021 = vunpack.c.h.b16 %v98
  %v1022 = vunpack.c.l.b16 %v99
  %v1023 = vunpack.c.h.b16 %v99
  %v1024 = vunpack.c.l.b16 %v100
  %v1025 = vunpack.c.h.b16 %v100
  %v1026 = vunpack.c.l.b16 %v101
  %v1027 = vunpack.c.h.b16 %v101
  %v1028 = vunpack.c.l.b16 %v102
  %v1029 = vunpack.c.h.b16 %v102
  %v1030 = vunpack.c.l.b16 %v103
  %v1031 = vunpack.c.h.b16 %v103
  %v1032 = vunpack.c.l.b16 %v104
  %v1033 = vunpack.c.h.b16 %v104
  %v1034 = vunpack.c.l.b16 %v105
  %v1035 = vunpack.c.h.b16 %v105
  %v1036 = vunpack.c.l.b16 %v106
  %v1037 = vunpack.c.h.b16 %v106
  %v1038 = vunpack.c.l.b16 %v107
  %v1039 = vunpack.c.h.b16 %v107
  %v1040 = vunpack.c.l.b16 %v108
  %v1041 = vunpack.c.h.b16 %v108
  %v1042 = vunpack.c.l.b16 %v109
  %v1043 = vunpack.c.h.b16 %v109
  %v1044 = vunpack.c.l.b16 %v110
  %v1045 = vunpack.c.h.b16 %v110
  %v1046 = vunpack.c.l.b16 %v111
  %v1047 = vunpack.c.h.b16 %v111
  %v1048 = vunpack.c.l.b16 %v112
  %v1049 = vunpack.c.h.b16 %v112
  %v1050 = vunpack.c.l.b16 %v113
  %v1051 = vunpack.c.h.b16 %v113
  %v1052 = vunpack.c.l.b16 %v114
  %v1053 = vunpack.c.h.b16 %v114
  %v1054 = vunpack.c.l.b16 %v115
  %v1055 = vunpack.c.h.b16 %v115
  %v1056 = vunpack.c.l.b16 %v116
  %v1057 = vunpack.c.h.b16 %v116
  %v1058 = vunpack.c.l.b16 %v117
  %v1059 = vunpack.c.h.b16 %v117
  %v1060 = vunpack.c.l.b16 %v118
  %v1061 = vunpack.c.h.b16 %v118
  %v1062 = vunpack.c.l.b16 %v119
  %v1063 = vunpack.c.h.b16 %v119
  %v1064 = vunpack.c.l.b16 %v120
  %v1065 = vunpack.c.h.b16 %v120
  %v1066 = vunpack.c.l.b16 %v121
  %v1067 = vunpack.c.h.b16 %v121
  %v1068 = vunpack.c.l.b16 %v122
  %v1069 = vunpack.c.h.b16 %v122
  %v1070 = vunpack.c.l.b16 %v123
  %v1071 = vunpack.c.h.b16 %v123
  %v1072 = vunpack.c.l.b16 %v124
  %v1073 = vunpack.c.h.b16 %v124
  %v1074 = vunpack.c.l.b16 %v125
  %v1075 = vunpack.c.h.b16 %v125
  %v1076 = vunpack.c.l.b16 %v126
  %v1077 = vunpack.c.h.b16 %v126
  %v1078 = vunpack.c.l.b16 %v127
  %v1079 = vunpack.c.h.b16 %v127
  %v1080 = vunpack.c.l.b16 %v128
  %v1081 = vunpack.c.h.b16 %v128
  %v1082 = vunpack.c.l.b16 %v129
  %v1083 = vunpack.c.h.b16 %v129
  %v1084 = vunpack.c.l.b16 %v130
  %v1085 = vunpack.c.h.b16 %v130
  %v1086 = vunpack.c.l.b16 %v131
  %v1087 = vunpack.c.h.b16 %v131
  %v1088 = vunpack.c.l.b16 %v132
  %v1089 = vunpack.c.h.b16 %v132
  %v1090 = vunpack.c.l.b16 %v133
  %v1091 = vunpack.c.h.b16 %v133
  %v1092 = vunpack.c.l.b16 %v134
  %v1093 = vunpack.c.h.b16 %v134
  %v1094 = vunpack.c.l.b16 %v135
  %v1095 = vunpack.c.h.b16 %v135
  %v1096 = vunpack.c.l.b16 %v136
  %v1097 = vunpack.c.h.b16 %v136
  %v1098 = vunpack.c.l.b16 %v137
  %v1099 = vunpack.c.h.b16 %v137
  %v1100 = vunpack.c.l.b16 %v138
  %v1101 = vunpack.c.h.b16 %v138
  %v1102 = vunpack.c.l.b16 %v139
  %v1103 = vunpack.c.h.b16 %v139
  %v1104 = vunpack.c.l.b16 %v140
  %v1105 = vunpack.c.h.b16 %v140
  %v1106 = vunpack.c.l.b16 %v141
  %v1107 = vunpack.c.h.b16 %v141
  %v1108 = vunpack.c.l.b16 %v142
  %v1109 = vunpack.c.h.b16 %v142
  %v1110 = vunpack.c.l.b16 %v143
  %v1111 = vunpack.c.h.b16 %v143
  %v1112 = vunpack.c.l.b16 %v144
  %v1113 = vunpack.c.h.b16 %v144
  %v1114 = vunpack.c.l.b16 %v145
  %v1115 = vunpack.c.h.b16 %v145
  %v1116 = vunpack.c.l.b16 %v146
  %v1117 = vunpack.c.h.b16 %v146
  %v1118 = vunpack.c.l.b16 %v147
  %v1119 = vunpack.c.h.b16 %v147
  %v1120 = vunpack.c.l.b16 %v148
  %v1121 = vunpack.c.h.b16 %v148
  %v1122 = vunpack.c.l.b16 %v149
  %v1123 = vunpack.c.h.b16 %v149
  %v1124 = vunpack.c.l.b16 %v150
  %v1125 = vunpack.c.h.b16 %v150
  %v1126 = vunpack.c.l.b16 %v151
  %v1127 = vunpack.c.h.b16 %v151
  %v1128 = vunpack.c.l.b16 %v152
  %v1129 = vunpack.c.h.b16 %v152
  %v1130 = vunpack.c.l.b16 %v153
  %v1131 = vunpack.c.h.b16 %v153
  %v1132 = vunpack.c.l.b16 %v154
  %v1133 = vunpack.c.h.b16 %v154
  %v1134 = vunpack.c.l.b16 %v155
  %v1135 = vunpack.c.h.b16 %v155
  %v1136 = vunpack.c.l.b16 %v156
  %v1137 = vunpack.c.h.b16 %v156
  %v1138 = vunpack.c.l.b16 %v157
  %v1139 = vunpack.c.h.b16 %v157
  %v1140 = vunpack.c.l.b16 %v158
  %v1141 = vunpack.c.h.b16 %v158
  %v1142 = vunpack.c.l.b16 %v159
  %v1143 = vunpack.c.h.b16 %v159
  %v1144 = vunpack.c.l.b16 %v160
  %v1145 = vunpack.c.h.b16 %v160
  %v1146 = vunpack.c.l.b16 %v161
  %v1147 = vunpack.c.h.b16 %v161
  %v1148 = vunpack.c.l.b16 %v162
  %v1149 = vunpack.c.h.b16 %v162
  %v1150 = vunpack.c.l.b16 %v163
  %v1151 = vunpack.c.h.b16 %v163
  %v1152 = vunpack.c.l.b16 %v164
  %v1153 = vunpack.c.h.b16 %v164
  %v1154 = vunpack.c.l.b16 %v165
  %v1155 = vunpack.c.h.b16 %v165
  %v1156 = vunpack.c.l.b16 %v166
  %v1157 = vunpack.c.h.b16 %v166
  %v1158 = vunpack.c.l.b16 %v167
  %v1159 = vunpack.c.h.b16 %v167
  %v1160 = vunpack.c.l.b16 %v168
  %v1161 = vunpack.c.h.b16 %v168
  %v1162 = vunpack.c.l.b16 %v169
  %v1163 = vunpack.c.h.b16 %v169
  %v1164 = vunpack.c.l.b16 %v170
  %v1165 = vunpack.c.h.b16 %v170
  %v1166 = vunpack.c.l.b16 %v171
  %v1167 = vunpack.c.h.b16 %v171
  %v1168 = vunpack.c.l.b16 %v172
  %v1169 = vunpack.c.h.b16 %v172
  %v1170 = vunpack.c.l.b16 %v173
  %v1171 = vunpack.c.h.b16 %v173
  %v1172 = vunpack.c.l.b16 %v174
  %v1173 = vunpack.c.h.b16 %v174
  %v1174 = vunpack.c.l.b16 %v175
  %v1175 = vunpack.c.h.b16 %v175
  %v1176 = vunpack.c.l.b16 %v176
  %v1177 = vunpack.c.h.b16 %v176
  %v1178 = vunpack.c.l.b16 %v177
  %v1179 = vunpack.c.h.b16 %v177
  %v1180 = vunpack.c.l.b16 %v178
  %v1181 = vunpack.c.h.b16 %v178
  %v1182 = vunpack.c.l.b16 %v179
  %v1183 = vunpack.c.h.b16 %v179
  %v1184 = vunpack.c.l.b16 %v180
  %v1185 = vunpack.c.h.b16 %v180
  %v1186 = vunpack.c.l.b16 %v181
  %v1187 = vunpack.c.h.b16 %v181
  %v1188 = vunpack.c.l.b16 %v182
  %v1189 = vunpack.c.h.b16 %v182
  %v1190 = vunpack.c.l.b16 %v183
  %v1191 = vunpack.c.h.b16 %v183
  %v1192 = vunpack.c.l.b16 %v184
  %v1193 = vunpack.c.h.b16 %v184
  %v1194 = vunpack.c.l.b16 %v185
  %v1195 = vunpack.c.h.b16 %v185
  %v1196 = vunpack.c.l.b16 %v186
  %v1197 = vunpack.c.h.b16 %v186
  %v1198 = vunpack.c.l.b16 %v187
  %v1199 = vunpack.c.h.b16 %v187
  %v1200 = vunpack.c.l.b16 %v188
  %v1201 = vunpack.c.h.b16 %v188
  %v1202 = vunpack.c.l.b16 %v189
  %v1203 = vunpack.c.h.b16 %v189
  %v1204 = vunpack.c.l.b16 %v190
  %v1205 = vunpack.c.h.b16 %v190
  %v1206 = vunpack.c.l.b16 %v191
  %v1207 = vunpack.c.h.b16 %v191
  %v1208 = vunpack.c.l.b16 %v192
  %v1209 = vunpack.c.h.b16 %v192
  %v1210 = vunpack.c.l.b16 %v193
  %v1211 = vunpack.c.h.b16 %v193
  %v1212 = vunpack.c.l.b16 %v194
  %v1213 = vunpack.c.h.b16 %v194
  %v1214 = vunpack.c.l.b16 %v195
  %v1215 = vunpack.c.h.b16 %v195
  %v1216 = vunpack.c.l.b16 %v196
  %v1217 = vunpack.c.h.b16 %v196
  %v1218 = vunpack.c.l.b16 %v197
  %v1219 = vunpack.c.h.b16 %v197
  %v1220 = vunpack.c.l.b16 %v198
  %v1221 = vunpack.c.h.b16 %v198
  %v1222 = vunpack.c.l.b16 %v199
  %v1223 = vunpack.c.h.b16 %v199
  %v1224 = vunpack.c.l.b16 %v200
  %v1225 = vunpack.c.h.b16 %v200
  %v1226 = vunpack.c.l.b16 %v201
  %v1227 = vunpack.c.h.b16 %v201
  %v1228 = vunpack.c.l.b16 %v202
  %v1229 = vunpack.c.h.b16 %v202
  %v1230 = vunpack.c.l.b16 %v203
  %v1231 = vunpack.c.h.b16 %v203
  %v1232 = vunpack.c.l.b16 %v204
  %v1233 = vunpack.c.h.b16 %v204
  %v1234 = vunpack.c.l.b16 %v205
  %v1235 = vunpack.c.h.b16 %v205
  %v1236 = vunpack.c.l.b16 %v206
  %v1237 = vunpack.c.h.b16 %v206
  %v1238 = vunpack.c.l.b16 %v207
  %v1239 = vunpack.c.h.b16 %v207
  %v1240 = vunpack.c.l.b16 %v208
  %v1241 = vunpack.c.h.b16 %v208
  %v1242 = vunpack.c.l.b16 %v209
  %v1243 = vunpack.c.h.b16 %v209
  %v1244 = vunpack.c.l.b16 %v210
  %v1245 = vunpack.c.h.b16 %v210
  %v1246 = vunpack.c.l.b16 %v211
  %v1247 = vunpack.c.h.b16 %v211
  %v1248 = vunpack.c.l.b16 %v212
  %v1249 = vunpack.c.h.b16 %v212
  %v1250 = vunpack.c.l.b16 %v213
  %v1251 = vunpack.c.h.b16 %v213
  %v1252 = vunpack.c.l.b16 %v214
  %v1253 = vunpack.c.h.b16 %v214
  %v1254 = vunpack.c.l.b16 %v215
  %v1255 = vunpack.c.h.b16 %v215
  %v1256 = vunpack.c.l.b16 %v216
  %v1257 = vunpack.c.h.b16 %v216
  %v1258 = vunpack.c.l.b16 %v217
  %v1259 = vunpack.c.h.b16 %v217
  %v1260 = vunpack.c.l.b16 %v218
  %v1261 = vunpack.c.h.b16 %v218
  %v1262 = vunpack.c.l.b16 %v219
  %v1263 = vunpack.c.h.b16 %v219
  %v1264 = vunpack.c.l.b16 %v220
  %v1265 = vunpack.c.h.b16 %v220
  %v1266 = vunpack.c.l.b16 %v221
  %v1267 = vunpack.c.h.b16 %v221
  %v1268 = vunpack.c.l.b16 %v222
  %v1269 = vunpack.c.h.b16 %v222
  %v1270 = vunpack.c.l.b16 %v223
  %v1271 = vunpack.c.h.b16 %v223
  %v1272 = vunpack.c.l.b16 %v224
  %v1273 = vunpack.c.h.b16 %v224
  %v1274 = vunpack.c.l.b16 %v225
  %v1275 = vunpack.c.h.b16 %v225
  %v1276 = vunpack.c.l.b16 %v226
  %v1277 = vunpack.c.h.b16 %v226
  %v1278 = vunpack.c.l.b16 %v227
  %v1279 = vunpack.c.h.b16 %v227
  %v1280 = vunpack.c.l.b16 %v228
  %v1281 = vunpack.c.h.b16 %v228
  %v1282 = vunpack.c.l.b16 %v229
  %v1283 = vunpack.c.h.b16 %v229
  %v1284 = vunpack.c.l.b16 %v230
  %v1285 = vunpack.c.h.b16 %v230
  %v1286 = vunpack.c.l.b16 %v231
  %v1287 = vunpack.c.h.b16 %v231
  %v1288 = vunpack.c.l.b16 %v232
  %v1289 = vunpack.c.h.b16 %v232
  %v1290 = vunpack.c.l.b16 %v233
  %v1291 = vunpack.c.h.b16 %v233
  %v1292 = vunpack.c.l.b16 %v234
  %v1293 = vunpack.c.h.b16 %v234
  %v1294 = vunpack.c.l.b16 %v235
  %v1295 = vunpack.c.h.b16 %v235
  %v1296 = vunpack.c.l.b16 %v236
  %v1297 = vunpack.c.h.b16 %v236
  %v1298 = vunpack.c.l.b16 %v237
  %v1299 = vunpack.c.h.b16 %v237
  %v1300 = vunpack.c.l.b16 %v238
  %v1301 = vunpack.c.h.b16 %v238
  %v1302 = vunpack.c.l.b16 %v239
  %v1303 = vunpack.c.h.b16 %v239
  %v1304 = vunpack.c.l.b16 %v240
  %v1305 = vunpack.c.h.b16 %v240
  %v1306 = vunpack.c.l.b16 %v241
  %v1307 = vunpack.c.h.b16 %v241
  %v1308 = vunpack.c.l.b16 %v242
  %v1309 = vunpack.c.h.b16 %v242
  %v1310 = vunpack.c.l.b16 %v243
  %v1311 = vunpack.c.h.b16 %v243
  %v1312 = vunpack.c.l.b16 %v244
  %v1313 = vunpack.c.h.b16 %v244
  %v1314 = vunpack.c.l.b16 %v245
  %v1315 = vunpack.c.h.b16 %v245
  %v1316 = vunpack.c.l.b16 %v246
  %v1317 = vunpack.c.h.b16 %v246
  %v1318 = vunpack.c.l.b16 %v247
  %v1319 = vunpack.c.h.b16 %v247
  %v1320 = vunpack.c.l.b16 %v248
  %v1321 = vunpack.c.h.b16 %v248
  %v1322 = vunpack.c.l.b16 %v249
  %v1323 = vunpack.c.h.b16 %v249
  %v1324 = vunpack.c.l.b16 %v250
  %v1325 = vunpack.c.h.b16 %v250
  %v1326 = vunpack.c.l.b16 %v251
  %v1327 = vunpack.c.h.b16 %v251
  %v1328 = vunpack.c.l.b16 %v252
  %v1329 = vunpack.c.h.b16 %v252
  %v1330 = vunpack.c.l.b16 %v253
  %v1331 = vunpack.c.h.b16 %v253
  %v1332 = vunpack.c.l.b16 %v254
  %v1333 = vunpack.c.h.b16 %v254
  %v1334 = vunpack.c.l.b16 %v255
  %v1335 = vunpack.c.h.b16 %v255
  %v1336 = vunpack.c.l.b16 %v256
  %v1337 = vunpack.c.h.b16 %v256
  %v1338 = vunpack.c.l.b16 %v257
  %v1339 = vunpack.c.h.b16 %v257
  %v1340 = vunpack.c.l.b16 %v258
  %v1341 = vunpack.c.h.b16 %v258
  %v1342 = vunpack.c.l.b16 %v259
  %v1343 = vunpack.c.h.b16 %v259
  %v1344 = vunpack.c.l.b16 %v260
  %v1345 = vunpack.c.h.b16 %v260
  %v1346 = vunpack.c.l.b16 %v261
  %v1347 = vunpack.c.h.b16 %v261
  %v1348 = vunpack.c.l.b16 %v262
  %v1349 = vunpack.c.h.b16 %v262
  %v1350 = vunpack.c.l.b16 %v263
  %v1351 = vunpack.c.h.b16 %v263
  %v1352 = vunpack.c.l.b16 %v264
  %v1353 = vunpack.c.h.b16 %v264
  %v1354 = vunpack.c.l.b16 %v265
  %v1355 = vunpack.c.h.b16 %v265
  %v1356 = vunpack.c.l.b16 %v266
  %v1357 = vunpack.c.h.b16 %v266
  %v1358 = vunpack.c.l.b16 %v267
  %v1359 = vunpack.c.h.b16 %v267
  %v1360 = vunpack.c.l.b16 %v268
  %v1361 = vunpack.c.h.b16 %v268
  %v1362 = vunpack.c.l.b16 %v269
  %v1363 = vunpack.c.h.b16 %v269
  %v1364 = vunpack.c.l.b16 %v270
  %v1365 = vunpack.c.h.b16 %v270
  %v1366 = vunpack.c.l.b16 %v271
  %v1367 = vunpack.c.h.b16 %v271
  %v1368 = vunpack.c.l.b16 %v272
  %v1369 = vunpack.c.h.b16 %v272
  %v1370 = vunpack.c.l.b16 %v273
  %v1371 = vunpack.c.h.b16 %v273
  %v1372 = vunpack.c.l.b16 %v274
  %v1373 = vunpack.c.h.b16 %v274
  %v1374 = vunpack.c.l.b16 %v275
  %v1375 = vunpack.c.h.b16 %v275
  %v1376 = vunpack.c.l.b16 %v276
  %v1377 = vunpack.c.h.b16 %v276
  %v1378 = vunpack.c.l.b16 %v277
  %v1379 = vunpack.c.h.b16 %v277
  %v1380 = vunpack.c.l.b16 %v278
  %v1381 = vunpack.c.h.b16 %v278
  %v1382 = vunpack.c.l.b16 %v279
  %v1383 = vunpack.c.h.b16 %v279
  %v1384 = vunpack.c.l.b16 %v280
  %v1385 = vunpack.c.h.b16 %v280
  %v1386 = vunpack.c.l.b16 %v281
  %v1387 = vunpack.c.h.b16 %v281
  %v1388 = vunpack.c.l.b16 %v282
  %v1389 = vunpack.c.h.b16 %v282
  %v1390 = vunpack.c.l.b16 %v283
  %v1391 = vunpack.c.h.b16 %v283
  %v1392 = vunpack.c.l.b16 %v284
  %v1393 = vunpack.c.h.b16 %v284
  %v1394 = vunpack.c.l.b16 %v285
  %v1395 = vunpack.c.h.b16 %v285
  %v1396 = vunpack.c.l.b16 %v286
  %v1397 = vunpack.c.h.b16 %v286
  %v1398 = vunpack.c.l.b16 %v287
  %v1399 = vunpack.c.h.b16 %v287
  %v1400 = vunpack.c.l.b16 %v288
  %v1401 = vunpack.c.h.b16 %v288
  %v1402 = vunpack.c.l.b16 %v289
  %v1403 = vunpack.c.h.b16 %v289
  %v1404 = vunpack.c.l.b16 %v290
  %v1405 = vunpack.c.h.b16 %v290
  %v1406 = vunpack.c.l.b16 %v291
  %v1407 = vunpack.c.h.b16 %v291
  %v1408 = vunpack.c.l.b16 %v292
  %v1409 = vunpack.c.h.b16 %v292
  %v1410 = vunpack.c.l.b16 %v293
  %v1411 = vunpack.c.h.b16 %v293
  %v1412 = vunpack.c.l.b16 %v294
  %v1413 = vunpack.c.h.b16 %v294
  %v1414 = vunpack.c.l.b16 %v295
  %v1415 = vunpack.c.h.b16 %v295
  %v1416 = vunpack.c.l.b16 %v296
  %v1417 = vunpack.c.h.b16 %v296
  %v1418 = vunpack.c.l.b16 %v297
  %v1419 = vunpack.c.h.b16 %v297
  %v1420 = vunpack.c.l.b16 %v298
  %v1421 = vunpack.c.h.b16 %v298
  %v1422 = vunpack.c.l.b16 %v299
  %v1423 = vunpack.c.h.b16 %v299
  %v1424 = vunpack.c.l.b16 %v300
  %v1425 = vunpack.c.h.b16 %v300
  %v1426 = vunpack.c.l.b16 %v301
  %v1427 = vunpack.c.h.b16 %v301
  %v1428 = vunpack.c.l.b16 %v302
  %v1429 = vunpack.c.h.b16 %v302
  %v1430 = vunpack.c.l.b16 %v303
  %v1431 = vunpack.c.h.b16 %v303
  %v1432 = vunpack.c.l.b16 %v304
  %v1433 = vunpack.c.h.b16 %v304
  %v1434 = vunpack.c.l.b16 %v305
  %v1435 = vunpack.c.h.b16 %v305
  %v1436 = vunpack.c.l.b16 %v306
  %v1437 = vunpack.c.h.b16 %v306
  %v1438 = vunpack.c.l.b16 %v307
  %v1439 = vunpack.c.h.b16 %v307
  %v1440 = vunpack.c.l.b16 %v308
  %v1441 = vunpack.c.h.b16 %v308
  %v1442 = vunpack.c.l.b16 %v309
  %v1443 = vunpack.c.h.b16 %v309
  %v1444 = vunpack.c.l.b16 %v310
  %v1445 = vunpack.c.h.b16 %v310
  %v1446 = vunpack.c.l.b16 %v311
  %v1447 = vunpack.c.h.b16 %v311
  %v1448 = vunpack.c.l.b16 %v312
  %v1449 = vunpack.c.h.b16 %v312
  %v1450 = vunpack.c.l.b16 %v313
  %v1451 = vunpack.c.h.b16 %v313
  %v1452 = vunpack.c.l.b16 %v314
  %v1453 = vunpack.c.h.b16 %v314
  %v1454 = vunpack.c.l.b16 %v315
  %v1455 = vunpack.c.h.b16 %v315
  %v1456 = vunpack.c.l.b16 %v316
  %v1457 = vunpack.c.h.b16 %v316
  %v1458 = vunpack.c.l.b16 %v317
  %v1459 = vunpack.c.h.b16 %v317
  %v1460 = vunpack.c.l.b16 %v318
  %v1461 = vunpack.c.h.b16 %v318
  %v1462 = vunpack.c.l.b16 %v319
  %v1463 = vunpack.c.h.b16 %v319
  %v1464 = vunpack.c.l.b16 %v320
  %v1465 = vunpack.c.h.b16 %v320
  %v1466 = vunpack.c.l.b16 %v321
  %v1467 = vunpack.c.h.b16 %v321
  %v1468 = vunpack.c.l.b16 %v322
  %v1469 = vunpack.c.h.b16 %v322
  %v1470 = vunpack.c.l.b16 %v323
  %v1471 = vunpack.c.h.b16 %v323
  %v1472 = vunpack.c.l.b16 %v324
  %v1473 = vunpack.c.h.b16 %v324
  %v1474 = vunpack.c.l.b16 %v325
  %v1475 = vunpack.c.h.b16 %v325
  %v1476 = vunpack.c.l.b16 %v326
  %v1477 = vunpack.c.h.b16 %v326
  %v1478 = vunpack.c.l.b16 %v327
  %v1479 = vunpack.c.h.b16 %v327
  %v1480 = vunpack.c.l.b16 %v328
  %v1481 = vunpack.c.h.b16 %v328
  %v1482 = vunpack.c.l.b16 %v329
  %v1483 = vunpack.c.h.b16 %v329
  %v1484 = vunpack.c.l.b16 %v330
  %v1485 = vunpack.c.h.b16 %v330
  %v1486 = vunpack.c.l.b16 %v331
  %v1487 = vunpack.c.h.b16 %v331
  %v1488 = vunpack.c.l.b16 %v332
  %v1489 = vunpack.c.h.b16 %v332
  %v1490 = vunpack.c.l.b16 %v333
  %v1491 = vunpack.c.h.b16 %v333
  %v1492 = vunpack.c.l.b16 %v334
  %v1493 = vunpack.c.h.b16 %v334
  %v1494 = vunpack.c.l.b16 %v335
  %v1495 = vunpack.c.h.b16 %v335
  %v1496 = vunpack.c.l.b16 %v336
  %v1497 = vunpack.c.h.b16 %v336
  %v1498 = vunpack.c.l.b16 %v337
  %v1499 = vunpack.c.h.b16 %v337
  %v1500 = vunpack.c.l.b16 %v338
  %v1501 = vunpack.c.h.b16 %v338
  %v1502 = vunpack.c.l.b16 %v339
  %v1503 = vunpack.c.h.b16 %v339
  %v1504 = vunpack.c.l.b16 %v340
  %v1505 = vunpack.c.h.b16 %v340
  %v1506 = vunpack.c.l.b16 %v341
  %v1507 = vunpack.c.h.b16 %v341
  %v1508 = vunpack.c.l.b16 %v342
  %v1509 = vunpack.c.h.b16 %v342
  %v1510 = vunpack.c.l.b16 %v343
  %v1511 = vunpack.c.h.b16 %v343
  %v1512 = vunpack.c.l.b16 %v344
  %v1513 = vunpack.c.h.b16 %v344
  %v1514 = vunpack.c.l.b16 %v345
  %v1515 = vunpack.c.h.b16 %v345
  %v1516 = vunpack.c.l.b16 %v346
  %v1517 = vunpack.c.h.b16 %v346
  %v1518 = vunpack.c.l.b16 %v347
  %v1519 = vunpack.c.h.b16 %v347
  %v1520 = vunpack.c.l.b16 %v348
  %v1521 = vunpack.c.h.b16 %v348
  %v1522 = vunpack.c.l.b16 %v349
  %v1523 = vunpack.c.h.b16 %v349
  %v1524 = vunpack.c.l.b16 %v350
  %v1525 = vunpack.c.h.b16 %v350
  %v1526 = vunpack.c.l.b16 %v351
  %v1527 = vunpack.c.h.b16 %v351
  %v1528 = vunpack.c.l.b16 %v352
  %v1529 = vunpack.c.h.b16 %v352
  %v1530 = vunpack.c.l.b16 %v353
  %v1531 = vunpack.c.h.b16 %v353
  %v1532 = vunpack.c.l.b16 %v354
  %v1533 = vunpack.c.h.b16 %v354
  %v1534 = vunpack.c.l.b16 %v355
  %v1535 = vunpack.c.h.b16 %v355
  %v1536 = vunpack.c.l.b16 %v356
  %v1537 = vunpack.c.h.b16 %v356
  %v1538 = vunpack.c.l.b16 %v357
  %v1539 = vunpack.c.h.b16 %v357
  %v1540 = vunpack.c.l.b16 %v358
  %v1541 = vunpack.c.h.b16 %v358
  %v1542 = vunpack.c.l.b16 %v359
  %v1543 = vunpack.c.h.b16 %v359
  %v1544 = vunpack.c.l.b16 %v360
  %v1545 = vunpack.c.h.b16 %v360
  %v1546 = vunpack.c.l.b16 %v361
  %v1547 = vunpack.c.h.b16 %v361
  %v1548 = vunpack.c.l.b16 %v362
  %v1549 = vunpack.c.h.b16 %v362
  %v1550 = vunpack.c.l.b16 %v363
  %v1551 = vunpack.c.h.b16 %v363
  %v1552 = vunpack.c.l.b16 %v364
  %v1553 = vunpack.c.h.b16 %v364
  %v1554 = vunpack.c.l.b16 %v365
  %v1555 = vunpack.c.h.b16 %v365
  %v1556 = vunpack.c.l.b16 %v366
  %v1557 = vunpack.c.h.b16 %v366
  %v1558 = vunpack.c.l.b16 %v367
  %v1559 = vunpack.c.h.b16 %v367
  %v1560 = vunpack.c.l.b16 %v368
  %v1561 = vunpack.c.h.b16 %v368
  %v1562 = vunpack.c.l.b16 %v369
  %v1563 = vunpack.c.h.b16 %v369
  %v1564 = vunpack.c.l.b16 %v370
  %v1565 = vunpack.c.h.b16 %v370
  %v1566 = vunpack.c.l.b16 %v371
  %v1567 = vunpack.c.h.b16 %v371
  %v1568 = vunpack.c.l.b16 %v372
  %v1569 = vunpack.c.h.b16 %v372
  %v1570 = vunpack.c.l.b16 %v373
  %v1571 = vunpack.c.h.b16 %v373
  %v1572 = vunpack.c.l.b16 %v374
  %v1573 = vunpack.c.h.b16 %v374
  %v1574 = vunpack.c.l.b16 %v375
  %v1575 = vunpack.c.h.b16 %v375
  %v1576 = vunpack.c.l.b16 %v376
  %v1577 = vunpack.c.h.b16 %v376
  %v1578 = vunpack.c.l.b16 %v377
  %v1579 = vunpack.c.h.b16 %v377
  %v1580 = vunpack.c.l.b16 %v378
  %v1581 = vunpack.c.h.b16 %v378
  %v1582 = vunpack.c.l.b16 %v379
  %v1583 = vunpack.c.h.b16 %v379
  %v1584 = vunpack.c.l.b16 %v380
  %v1585 = vunpack.c.h.b16 %v380
  %v1586 = vunpack.c.l.b16 %v381
  %v1587 = vunpack.c.h.b16 %v381
  %v1588 = vunpack.c.l.b16 %v382
  %v1589 = vunpack.c.h.b16 %v382
  %v1590 = vunpack.c.l.b16 %v383
  %v1591 = vunpack.c.h.b16 %v383
  %v1592 = vunpack.c.l.b16 %v384
  %v1593 = vunpack.c.h.b16 %v384
  %v1594 = vunpack.c.l.b16 %v385
  %v1595 = vunpack.c.h.b16 %v385
  %v1596 = vunpack.c.l.b16 %v386
  %v1597 = vunpack.c.h.b16 %v386
  %v1598 = vunpack.c.l.b16 %v387
  %v1599 = vunpack.c.h.b16 %v387
  %v1600 = vunpack.c.l.b16 %v388
  %v1601 = vunpack.c.h.b16 %v388
  %v1602 = vunpack.c.l.b16 %v389
  %v1603 = vunpack.c.h.b16 %v389
  %v1604 = vunpack.c.l.b16 %v390
  %v1605 = vunpack.c.h.b16 %v390
  %v1606 = vunpack.c.l.b16 %v391
  %v1607 = vunpack.c.h.b16 %v391
  %v1608 = vunpack.c.l.b16 %v392
  %v1609 = vunpack.c.h.b16 %v392
  %v1610 = vunpack.c.l.b16 %v393
  %v1611 = vunpack.c.h.b16 %v393
  %v1612 = vunpack.c.l.b16 %v394
  %v1613 = vunpack.c.h.b16 %v394
  %v1614 = vunpack.c.l.b16 %v395
  %v1615 = vunpack.c.h.b16 %v395
  %v1616 = vunpack.c.l.b16 %v396
  %v1617 = vunpack.c.h.b16 %v396
  %v1618 = vunpack.c.l.b16 %v397
  %v1619 = vunpack.c.h.b16 %v397
  %v1620 = vunpack.c.l.b16 %v398
  %v1621 = vunpack.c.h.b16 %v398
  %v1622 = vunpack.c.l.b16 %v399
  %v1623 = vunpack.c.h.b16 %v399
  %v1624 = vunpack.c.l.b16 %v400
  %v1625 = vunpack.c.h.b16 %v400
  %v1626 = vunpack.c.l.b16 %v401
  %v1627 = vunpack.c.h.b16 %v401
  %v1628 = vunpack.c.l.b16 %v402
  %v1629 = vunpack.c.h.b16 %v402
  %v1630 = vunpack.c.l.b16 %v403
  %v1631 = vunpack.c.h.b16 %v403
  %v1632 = vunpack.c.l.b16 %v404
  %v1633 = vunpack.c.h.b16 %v404
  %v1634 = vunpack.c.l.b16 %v405
  %v1635 = vunpack.c.h.b16 %v405
  %v1636 = vunpack.c.l.b16 %v406
  %v1637 = vunpack.c.h.b16 %v406
  %v1638 = vunpack.c.l.b16 %v407
  %v1639 = vunpack.c.h.b16 %v407
  %v1640 = vunpack.c.l.b16 %v408
  %v1641 = vunpack.c.h.b16 %v408
  %v1642 = vunpack.c.l.b16 %v409
  %v1643 = vunpack.c.h.b16 %v409
  %v1644 = vunpack.c.l.b16 %v410
  %v1645 = vunpack.c.h.b16 %v410
  %v1646 = vunpack.c.l.b16 %v411
  %v1647 = vunpack.c.h.b16 %v411
  %v1648 = vunpack.c.l.b16 %v412
  %v1649 = vunpack.c.h.b16 %v412
  %v1650 = vunpack.c.l.b16 %v413
  %v1651 = vunpack.c.h.b16 %v413
  %v1652 = vunpack.c.l.b16 %v414
  %v1653 = vunpack.c.h.b16 %v414
  %v1654 = vunpack.c.l.b16 %v415
  %v1655 = vunpack.c.h.b16 %v415
  %v1656 = vunpack.c.l.b16 %v416
  %v1657 = vunpack.c.h.b16 %v416
  %v1658 = vunpack.c.l.b16 %v417
  %v1659 = vunpack.c.h.b16 %v417
  %v1660 = vunpack.c.l.b16 %v418
  %v1661 = vunpack.c.h.b16 %v418
  %v1662 = vunpack.c.l.b16 %v419
  %v1663 = vunpack.c.h.b16 %v419
  %v1664 = vunpack.c.l.b16 %v420
  %v1665 = vunpack.c.h.b16 %v420
  %v1666 = vunpack.c.l.b16 %v421
  %v1667 = vunpack.c.h.b16 %v421
  %v1668 = vunpack.c.l.b16 %v422
  %v1669 = vunpack.c.h.b16 %v422
  %v1670 = vunpack.c.l.b16 %v423
  %v1671 = vunpack.c.h.b16 %v423
  %v1672 = vunpack.c.l.b16 %v424
  %v1673 = vunpack.c.h.b16 %v424
  %v1674 = vunpack.c.l.b16 %v425
  %v1675 = vunpack.c.h.b16 %v425
  %v1676 = vunpack.c.l.b16 %v426
  %v1677 = vunpack.c.h.b16 %v426
  %v1678 = vpack.c.b16 %v898, %v894
  %v1679 = vpack.c.b16 %v899, %v895
  %v1680 = vpack.c.b16 %v900, %v896
  %v1681 = vpack.c.b16 %v901, %v897
  %v1682 = vpack.c.b16 %v906, %v902
  %v1683 = vpack.c.b16 %v907, %v903
  %v1684 = vpack.c.b16 %v908, %v904
  %v1685 = vpack.c.b16 %v909, %v905
  %v1686 = vpack.c.b16 %v914, %v910
  %v1687 = vpack.c.b16 %v915, %v911
  %v1688 = vpack.c.b16 %v916, %v912
  %v1689 = vpack.c.b16 %v917, %v913
  %v1690 = vpack.c.b16 %v922, %v918
  %v1691 = vpack.c.b16 %v923, %v919
  %v1692 = vpack.c.b16 %v924, %v920
  %v1693 = vpack.c.b16 %v925, %v921
  %v1694 = vpack.c.b16 %v930, %v926
  %v1695 = vpack.c.b16 %v931, %v927
  %v1696 = vpack.c.b16 %v932, %v928
  %v1697 = vpack.c.b16 %v933, %v929
  %v1698 = vpack.c.b16 %v938, %v934
  %v1699 = vpack.c.b16 %v939, %v935
  %v1700 = vpack.c.b16 %v940, %v936
  %v1701 = vpack.c.b16 %v941, %v937
  %v1702 = vpack.c.b16 %v946, %v942
  %v1703 = vpack.c.b16 %v947, %v943
  %v1704 = vpack.c.b16 %v948, %v944
  %v1705 = vpack.c.b16 %v949, %v945
  %v1706 = vpack.c.b16 %v954, %v950
  %v1707 = vpack.c.b16 %v955, %v951
  %v1708 = vpack.c.b16 %v956, %v952
  %v1709 = vpack.c.b16 %v957, %v953
  %v1710 = vpack.c.b16 %v962, %v958
  %v1711 = vpack.c.b16 %v963, %v959
  %v1712 = vpack.c.b16 %v964, %v960
  %v1713 = vpack.c.b16 %v965, %v961
  %v1714 = vpack.c.b16 %v970, %v966
  %v1715 = vpack.c.b16 %v971, %v967
  %v1716 = vpack.c.b16 %v972, %v968
  %v1717 = vpack.c.b16 %v973, %v969
  %v1718 = vpack.c.b16 %v978, %v974
  %v1719 = vpack.c.b16 %v979, %v975
  %v1720 = vpack.c.b16 %v980, %v976
  %v1721 = vpack.c.b16 %v981, %v977
  %v1722 = vpack.c.b16 %v986, %v982
  %v1723 = vpack.c.b16 %v987, %v983
  %v1724 = vpack.c.b16 %v988, %v984
  %v1725 = vpack.c.b16 %v989, %v985
  %v1726 = vpack.c.b16 %v994, %v990
  %v1727 = vpack.c.b16 %v995, %v991
  %v1728 = vpack.c.b16 %v996, %v992
  %v1729 = vpack.c.b16 %v997, %v993
  %v1730 = vpack.c.b16 %v1002, %v998
  %v1731 = vpack.c.b16 %v1003, %v999
  %v1732 = vpack.c.b16 %v1004, %v1000
  %v1733 = vpack.c.b16 %v1005, %v1001
  %v1734 = vpack.c.b16 %v1010, %v1006
  %v1735 = vpack.c.b16 %v1011, %v1007
  %v1736 = vpack.c.b16 %v1012, %v1008
  %v1737 = vpack.c.b16 %v1013, %v1009
  %v1738 = vpack.c.b16 %v1018, %v1014
  %v1739 = vpack.c.b16 %v1019, %v1015
  %v1740 = vpack.c.b16 %v1020, %v1016
  %v1741 = vpack.c.b16 %v1021, %v1017
  %v1742 = vpack.c.b16 %v1026, %v1022
  %v1743 = vpack.c.b16 %v1027, %v1023
  %v1744 = vpack.c.b16 %v1028, %v1024
  %v1745 = vpack.c.b16 %v1029, %v1025
  %v1746 = vpack.c.b16 %v1034, %v1030
  %v1747 = vpack.c.b16 %v1035, %v1031
  %v1748 = vpack.c.b16 %v1036, %v1032
  %v1749 = vpack.c.b16 %v1037, %v1033
  %v1750 = vpack.c.b16 %v1042, %v1038
  %v1751 = vpack.c.b16 %v1043, %v1039
  %v1752 = vpack.c.b16 %v1044, %v1040
  %v1753 = vpack.c.b16 %v1045, %v1041
  %v1754 = vpack.c.b16 %v1050, %v1046
  %v1755 = vpack.c.b16 %v1051, %v1047
  %v1756 = vpack.c.b16 %v1052, %v1048
  %v1757 = vpack.c.b16 %v1053, %v1049
  %v1758 = vpack.c.b16 %v1058, %v1054
  %v1759 = vpack.c.b16 %v1059, %v1055
  %v1760 = vpack.c.b16 %v1060, %v1056
  %v1761 = vpack.c.b16 %v1061, %v1057
  %v1762 = vpack.c.b16 %v1066, %v1062
  %v1763 = vpack.c.b16 %v1067, %v1063
  %v1764 = vpack.c.b16 %v1068, %v1064
  %v1765 = vpack.c.b16 %v1069, %v1065
  %v1766 = vpack.c.b16 %v1074, %v1070
  %v1767 = vpack.c.b16 %v1075, %v1071
  %v1768 = vpack.c.b16 %v1076, %v1072
  %v1769 = vpack.c.b16 %v1077, %v1073
  %v1770 = vpack.c.b16 %v1082, %v1078
  %v1771 = vpack.c.b16 %v1083, %v1079
  %v1772 = vpack.c.b16 %v1084, %v1080
  %v1773 = vpack.c.b16 %v1085, %v1081
  %v1774 = vpack.c.b16 %v1090, %v1086
  %v1775 = vpack.c.b16 %v1091, %v1087
  %v1776 = vpack.c.b16 %v1092, %v1088
  %v1777 = vpack.c.b16 %v1093, %v1089
  %v1778 = vpack.c.b16 %v1098, %v1094
  %v1779 = vpack.c.b16 %v1099, %v1095
  %v1780 = vpack.c.b16 %v1100, %v1096
  %v1781 = vpack.c.b16 %v1101, %v1097
  %v1782 = vpack.c.b16 %v1106, %v1102
  %v1783 = vpack.c.b16 %v1107, %v1103
  %v1784 = vpack.c.b16 %v1108, %v1104
  %v1785 = vpack.c.b16 %v1109, %v1105
  %v1786 = vpack.c.b16 %v1114, %v1110
  %v1787 = vpack.c.b16 %v1115, %v1111
  %v1788 = vpack.c.b16 %v1116, %v1112
  %v1789 = vpack.c.b16 %v1117, %v1113
  %v1790 = vpack.c.b16 %v1122, %v1118
  %v1791 = vpack.c.b16 %v1123, %v1119
  %v1792 = vpack.c.b16 %v1124, %v1120
  %v1793 = vpack.c.b16 %v1125, %v1121
  %v1794 = vpack.c.b16 %v1130, %v1126
  %v1795 = vpack.c.b16 %v1131, %v1127
  %v1796 = vpack.c.b16 %v1132, %v1128
  %v1797 = vpack.c.b16 %v1133, %v1129
  %v1798 = vpack.c.b16 %v1138, %v1134
  %v1799 = vpack.c.b16 %v1139, %v1135
  %v1800 = vpack.c.b16 %v1140, %v1136
  %v1801 = vpack.c.b16 %v1141, %v1137
  %v1802 = vpack.c.b16 %v1146, %v1142
  %v1803 = vpack.c.b16 %v1147, %v1143
  %v1804 = vpack.c.b16 %v1148, %v1144
  %v1805 = vpack.c.b16 %v1149, %v1145
  %v1806 = vpack.c.b16 %v1154, %v1150
  %v1807 = vpack.c.b16 %v1155, %v1151
  %v1808 = vpack.c.b16 %v1156, %v1152
  %v1809 = vpack.c.b16 %v1157, %v1153
  %v1810 = vpack.c.b16 %v1162, %v1158
  %v1811 = vpack.c.b16 %v1163, %v1159
  %v1812 = vpack.c.b16 %v1164, %v1160
  %v1813 = vpack.c.b16 %v1165, %v1161
  %v1814 = vpack.c.b16 %v1170, %v1166
  %v1815 = vpack.c.b16 %v1171, %v1167
  %v1816 = vpack.c.b16 %v1172, %v1168
  %v1817 = vpack.c.b16 %v1173, %v1169
  %v1818 = vpack.c.b16 %v1178, %v1174
  %v1819 = vpack.c.b16 %v1179, %v1175
  %v1820 = vpack.c.b16 %v1180, %v1176
  %v1821 = vpack.c.b16 %v1181, %v1177
  %v1822 = vpack.c.b16 %v1186, %v1182
  %v1823 = vpack.c.b16 %v1187, %v1183
  %v1824 = vpack.c.b16 %v1188, %v1184
  %v1825 = vpack.c.b16 %v1189, %v1185
  %v1826 = vpack.c.b16 %v1194, %v1190
  %v1827 = vpack.c.b16 %v1195, %v1191
  %v1828 = vpack.c.b16 %v1196, %v1192
  %v1829 = vpack.c.b16 %v1197, %v1193
  %v1830 = vpack.c.b16 %v1202, %v1198
  %v1831 = vpack.c.b16 %v1203, %v1199
  %v1832 = vpack.c.b16 %v1204, %v1200
  %v1833 = vpack.c.b16 %v1205, %v1201
  %v1834 = vpack.c.b16 %v1210, %v1206
  %v1835 = vpack.c.b16 %v1211, %v1207
  %v1836 = vpack.c.b16 %v1212, %v1208
  %v1837 = vpack.c.b16 %v1213, %v1209
  %v1838 = vpack.c.b16 %v1218, %v1214
  %v1839 = vpack.c.b16 %v1219, %v1215
  %v1840 = vpack.c.b16 %v1220, %v1216
  %v1841 = vpack.c.b16 %v1221, %v1217
  %v1842 = vpack.c.b16 %v1226, %v1222
  %v1843 = vpack.c.b16 %v1227, %v1223
  %v1844 = vpack.c.b16 %v1228, %v1224
  %v1845 = vpack.c.b16 %v1229, %v1225
  %v1846 = vpack.c.b16 %v1234, %v1230
  %v1847 = vpack.c.b16 %v1235, %v1231
  %v1848 = vpack.c.b16 %v1236, %v1232
  %v1849 = vpack.c.b16 %v1237, %v1233
  %v1850 = vpack.c.b16 %v1242, %v1238
  %v1851 = vpack.c.b16 %v1243, %v1239
  %v1852 = vpack.c.b16 %v1244, %v1240
  %v1853 = vpack.c.b16 %v1245, %v1241
  %v1854 = vpack.c.b16 %v1250, %v1246
  %v1855 = vpack.c.b16 %v1251, %v1247
  %v1856 = vpack.c.b16 %v1252, %v1248
  %v1857 = vpack.c.b16 %v1253, %v1249
  %v1858 = vpack.c.b16 %v1258, %v1254
  %v1859 = vpack.c.b16 %v1259, %v1255
  %v1860 = vpack.c.b16 %v1260, %v1256
  %v1861 = vpack.c.b16 %v1261, %v1257
  %v1862 = vpack.c.b16 %v1266, %v1262
  %v1863 = vpack.c.b16 %v1267, %v1263
  %v1864 = vpack.c.b16 %v1268, %v1264
  %v1865 = vpack.c.b16 %v1269, %v1265
  %v1866 = vpack.c.b16 %v1274, %v1270
  %v1867 = vpack.c.b16 %v1275, %v1271
  %v1868 = vpack.c.b16 %v1276, %v1272
  %v1869 = vpack.c.b16 %v1277, %v1273
  %v1870 = vpack.c.b16 %v1282, %v1278
  %v1871 = vpack.c.b16 %v1283, %v1279
  %v1872 = vpack.c.b16 %v1284, %v1280
  %v1873 = vpack.c.b16 %v1285, %v1281
  %v1874 = vpack.c.b16 %v1290, %v1286
  %v1875 = vpack.c.b16 %v1291, %v1287
  %v1876 = vpack.c.b16 %v1292, %v1288
  %v1877 = vpack.c.b16 %v1293, %v1289
  %v1878 = vpack.c.b16 %v1298, %v1294
  %v1879 = vpack.c.b16 %v1299, %v1295
  %v1880 = vpack.c.b16 %v1300, %v1296
  %v1881 = vpack.c.b16 %v1301, %v1297
  %v1882 = vpack.c.b16 %v1306, %v1302
  %v1883 = vpack.c.b16 %v1307, %v1303
  %v1884 = vpack.c.b16 %v1308, %v1304
  %v1885 = vpack.c.b16 %v1309, %v1305
  %v1886 = vpack.c.b16 %v1314, %v1310
  %v1887 = vpack.c.b16 %v1315, %v1311
  %v1888 = vpack.c.b16 %v1316, %v1312
  %v1889 = vpack.c.b16 %v1317, %v1313
  %v1890 = vpack.c.b16 %v1322, %v1318
  %v1891 = vpack.c.b16 %v1323, %v1319
  %v1892 = vpack.c.b16 %v1324, %v1320
  %v1893 = vpack.c.b16 %v1325, %v1321
  %v1894 = vpack.c.b16 %v1330, %v1326
  %v1895 = vpack.c.b16 %v1331, %v1327
  %v1896 = vpack.c.b16 %v1332, %v1328
  %v1897 = vpack.c.b16 %v1333, %v1329
  %v1898 = vpack.c.b16 %v1338, %v1334
  %v1899 = vpack.c.b16 %v1339, %v1335
  %v1900 = vpack.c.b16 %v1340, %v1336
  %v1901 = vpack.c.b16 %v1341, %v1337
  %v1902 = vpack.c.b16 %v1346, %v1342
  %v1903 = vpack.c.b16 %v1347, %v1343
  %v1904 = vpack.c.b16 %v1348, %v1344
  %v1905 = vpack.c.b16 %v1349, %v1345
  %v1906 = vpack.c.b16 %v1354, %v1350
  %v1907 = vpack.c.b16 %v1355, %v1351
  %v1908 = vpack.c.b16 %v1356, %v1352
  %v1909 = vpack.c.b16 %v1357, %v1353
  %v1910 = vpack.c.b16 %v1362, %v1358
  %v1911 = vpack.c.b16 %v1363, %v1359
  %v1912 = vpack.c.b16 %v1364, %v1360
  %v1913 = vpack.c.b16 %v1365, %v1361
  %v1914 = vpack.c.b16 %v1370, %v1366
  %v1915 = vpack.c.b16 %v1371, %v1367
  %v1916 = vpack.c.b16 %v1372, %v1368
  %v1917 = vpack.c.b16 %v1373, %v1369
  %v1918 = vpack.c.b16 %v1378, %v1374
  %v1919 = vpack.c.b16 %v1379, %v1375
  %v1920 = vpack.c.b16 %v1380, %v1376
  %v1921 = vpack.c.b16 %v1381, %v1377
  %v1922 = vpack.c.b16 %v1386, %v1382
  %v1923 = vpack.c.b16 %v1387, %v1383
  %v1924 = vpack.c.b16 %v1388, %v1384
  %v1925 = vpack.c.b16 %v1389, %v1385
  %v1926 = vpack.c.b16 %v1394, %v1390
  %v1927 = vpack.c.b16 %v1395, %v1391
  %v1928 = vpack.c.b16 %v1396, %v1392
  %v1929 = vpack.c.b16 %v1397, %v1393
  %v1930 = vpack.c.b16 %v1402, %v1398
  %v1931 = vpack.c.b16 %v1403, %v1399
  %v1932 = vpack.c.b16 %v1404, %v1400
  %v1933 = vpack.c.b16 %v1405, %v1401
  %v1934 = vpack.c.b16 %v1410, %v1406
  %v1935 = vpack.c.b16 %v1411, %v1407
  %v1936 = vpack.c.b16 %v1412, %v1408
  %v1937 = vpack.c.b16 %v1413, %v1409
  %v1938 = vpack.c.b16 %v1418, %v1414
  %v1939 = vpack.c.b16 %v1419, %v1415
  %v1940 = vpack.c.b16 %v1420, %v1416
  %v1941 = vpack.c.b16 %v1421, %v1417
  %v1942 = vpack.c.b16 %v1426, %v1422
  %v1943 = vpack.c.b16 %v1427, %v1423
  %v1944 = vpack.c.b16 %v1428, %v1424
  %v1945 = vpack.c.b16 %v1429, %v1425
  %v1946 = vpack.c.b16 %v1434, %v1430
  %v1947 = vpack.c.b16 %v1435, %v1431
  %v1948 = vpack.c.b16 %v1436, %v1432
  %v1949 = vpack.c.b16 %v1437, %v1433
  %v1950 = vpack.c.b16 %v1442, %v1438
  %v1951 = vpack.c.b16 %v1443, %v1439
  %v1952 = vpack.c.b16 %v1444, %v1440
  %v1953 = vpack.c.b16 %v1445, %v1441
  %v1954 = vpack.c.b16 %v1450, %v1446
  %v1955 = vpack.c.b16 %v1451, %v1447
  %v1956 = vpack.c.b16 %v1452, %v1448
  %v1957 = vpack.c.b16 %v1453, %v1449
  %v1958 = vpack.c.b16 %v1458, %v1454
  %v1959 = vpack.c.b16 %v1459, %v1455
  %v1960 = vpack.c.b16 %v1460, %v1456
  %v1961 = vpack.c.b16 %v1461, %v1457
  %v1962 = vpack.c.b16 %v1466, %v1462
  %v1963 = vpack.c.b16 %v1467, %v1463
  %v1964 = vpack.c.b16 %v1468, %v1464
  %v1965 = vpack.c.b16 %v1469, %v1465
  %v1966 = vpack.c.b16 %v1474, %v1470
  %v1967 = vpack.c.b16 %v1475, %v1471
  %v1968 = vpack.c.b16 %v1476, %v1472
  %v1969 = vpack.c.b16 %v1477, %v1473
  %v1970 = vpack.c.b16 %v1482, %v1478
  %v1971 = vpack.c.b16 %v1483, %v1479
  %v1972 = vpack.c.b16 %v1484, %v1480
  %v1973 = vpack.c.b16 %v1485, %v1481
  %v1974 = vpack.c.b16 %v1490, %v1486
  %v1975 = vpack.c.b16 %v1491, %v1487
  %v1976 = vpack.c.b16 %v1492, %v1488
  %v1977 = vpack.c.b16 %v1493, %v1489
  %v1978 = vpack.c.b16 %v1498, %v1494
  %v1979 = vpack.c.b16 %v1499, %v1495
  %v1980 = vpack.c.b16 %v1500, %v1496
  %v1981 = vpack.c.b16 %v1501, %v1497
  %v1982 = vpack.c.b16 %v1506, %v1502
  %v1983 = vpack.c.b16 %v1507, %v1503
  %v1984 = vpack.c.b16 %v1508, %v1504
  %v1985 = vpack.c.b16 %v1509, %v1505
  %v1986 = vpack.c.b16 %v1514, %v1510
  %v1987 = vpack.c.b16 %v1515, %v1511
  %v1988 = vpack.c.b16 %v1516, %v1512
  %v1989 = vpack.c.b16 %v1517, %v1513
  %v1990 = vpack.c.b16 %v1522, %v1518
  %v1991 = vpack.c.b16 %v1523, %v1519
  %v1992 = vpack.c.b16 %v1524, %v1520
  %v1993 = vpack.c.b16 %v1525, %v1521
  %v1994 = vpack.c.b16 %v1530, %v1526
  %v1995 = vpack.c.b16 %v1531, %v1527
  %v1996 = vpack.c.b16 %v1532, %v1528
  %v1997 = vpack.c.b16 %v1533, %v1529
  %v1998 = vpack.c.b16 %v1538, %v1534
  %v1999 = vpack.c.b16 %v1539, %v1535
  %v2000 = vpack.c.b16 %v1540, %v1536
  %v2001 = vpack.c.b16 %v1541, %v1537
  %v2002 = vpack.c.b16 %v1546, %v1542
  %v2003 = vpack.c.b16 %v1547, %v1543
  %v2004 = vpack.c.b16 %v1548, %v1544
  %v2005 = vpack.c.b16 %v1549, %v1545
  %v2006 = vpack.c.b16 %v1554, %v1550
  %v2007 = vpack.c.b16 %v1555, %v1551
  %v2008 = vpack.c.b16 %v1556, %v1552
  %v2009 = vpack.c.b16 %v1557, %v1553
  %v2010 = vpack.c.b16 %v1562, %v1558
  %v2011 = vpack.c.b16 %v1563, %v1559
  %v2012 = vpack.c.b16 %v1564, %v1560
  %v2013 = vpack.c.b16 %v1565, %v1561
  %v2014 = vpack.c.b16 %v1570, %v1566
  %v2015 = vpack.c.b16 %v1571, %v1567
  %v2016 = vpack.c.b16 %v1572, %v1568
  %v2017 = vpack.c.b16 %v1573, %v1569
  %v2018 = vpack.c.b16 %v1578, %v1574
  %v2019 = vpack.c.b16 %v1579, %v1575
  %v2020 = vpack.c.b16 %v1580, %v1576
  %v2021 = vpack.c.b16 %v1581, %v1577
  %v2022 = vpack.c.b16 %v1586, %v1582
  %v2023 = vpack.c.b16 %v1587, %v1583
  %v2024 = vpack.c.b16 %v1588, %v1584
  %v2025 = vpack.c.b16 %v1589, %v1585
  %v2026 = vpack.c.b16 %v1594, %v1590
  %v2027 = vpack.c.b16 %v1595, %v1591
  %v2028 = vpack.c.b16 %v1596, %v1592
  %v2029 = vpack.c.b16 %v1597, %v1593
  %v2030 = vpack.c.b16 %v1602, %v1598
  %v2031 = vpack.c.b16 %v1603, %v1599
  %v2032 = vpack.c.b16 %v1604, %v1600
  %v2033 = vpack.c.b16 %v1605, %v1601
  %v2034 = vpack.c.b16 %v1610, %v1606
  %v2035 = vpack.c.b16 %v1611, %v1607
  %v2036 = vpack.c.b16 %v1612, %v1608
  %v2037 = vpack.c.b16 %v1613, %v1609
  %v2038 = vpack.c.b16 %v1618, %v1614
  %v2039 = vpack.c.b16 %v1619, %v1615
  %v2040 = vpack.c.b16 %v1620, %v1616
  %v2041 = vpack.c.b16 %v1621, %v1617
  %v2042 = vpack.c.b16 %v1626, %v1622
  %v2043 = vpack.c.b16 %v1627, %v1623
  %v2044 = vpack.c.b16 %v1628, %v1624
  %v2045 = vpack.c.b16 %v1629, %v1625
  %v2046 = vpack.c.b16 %v1634, %v1630
  %v2047 = vpack.c.b16 %v1635, %v1631
  %v2048 = vpack.c.b16 %v1636, %v1632
  %v2049 = vpack.c.b16 %v1637, %v1633
  %v2050 = vpack.c.b16 %v1642, %v1638
  %v2051 = vpack.c.b16 %v1643, %v1639
  %v2052 = vpack.c.b16 %v1644, %v1640
  %v2053 = vpack.c.b16 %v1645, %v1641
  %v2054 = vpack.c.b16 %v1650, %v1646
  %v2055 = vpack.c.b16 %v1651, %v1647
  %v2056 = vpack.c.b16 %v1652, %v1648
  %v2057 = vpack.c.b16 %v1653, %v1649
  %v2058 = vpack.c.b16 %v1658, %v1654
  %v2059 = vpack.c.b16 %v1659, %v1655
  %v2060 = vpack.c.b16 %v1660, %v1656
  %v2061 = vpack.c.b16 %v1661, %v1657
  %v2062 = vpack.c.b16 %v1666, %v1662
  %v2063 = vpack.c.b16 %v1667, %v1663
  %v2064 = vpack.c.b16 %v1668, %v1664
  %v2065 = vpack.c.b16 %v1669, %v1665
  %v2066 = vpack.c.b16 %v1674, %v1670
  %v2067 = vpack.c.b16 %v1675, %v1671
  %v2068 = vpack.c.b16 %v1676, %v1672
  %v2069 = vpack.c.b16 %v1677, %v1673
  %vm2462 = vcmask 261120
  %v2464 = vsel %vm2462, %v489, 0
  %2466 = vmatpush.bf16.msra.mxu0 %v1706
  %2467 = vmatpush.bf16.msra.mxu0 %v1702
  %2468 = vmatpush.bf16.msra.mxu0 %v1698
  %2469 = vmatpush.bf16.msra.mxu0 %v1694
  %2470 = vmatpush.bf16.msra.mxu0 %v1690
  %2471 = vmatpush.bf16.msra.mxu0 %v1686
  %2472 = vmatpush.bf16.msra.mxu0 %v1682
  %2473 = vmatpush.bf16.msra.mxu0 %v1678
  %2474 = vmatmul.bf16.gmra.mxu0 %v477
  %v2475 = vpop.f32.mrf.mxu0
  %v2476 = vadd.f32 %v429, %v2475
  %v2477 = vpop.f32.mrf.mxu0
  %v2478 = vadd.f32 %v429, %v2477
  %2479 = vdwg.mxu0
  %2480 = vmatpush.bf16.msra.mxu0 %v1738
  %2481 = vmatpush.bf16.msra.mxu0 %v1734
  %2482 = vmatpush.bf16.msra.mxu0 %v1730
  %2483 = vmatpush.bf16.msra.mxu0 %v1726
  %2484 = vmatpush.bf16.msra.mxu0 %v1722
  %2485 = vmatpush.bf16.msra.mxu0 %v1718
  %2486 = vmatpush.bf16.msra.mxu0 %v1714
  %2487 = vmatpush.bf16.msra.mxu0 %v1710
  %2488 = vmatmul.bf16.gmra.mxu0 %v478
  %v2489 = vpop.f32.mrf.mxu0
  %v2490 = vadd.f32 %v2476, %v2489
  %v2491 = vpop.f32.mrf.mxu0
  %v2492 = vadd.f32 %v2478, %v2491
  %2493 = vdwg.mxu0
  %2494 = vmatpush.bf16.msra.mxu0 %v1770
  %2495 = vmatpush.bf16.msra.mxu0 %v1766
  %2496 = vmatpush.bf16.msra.mxu0 %v1762
  %2497 = vmatpush.bf16.msra.mxu0 %v1758
  %2498 = vmatpush.bf16.msra.mxu0 %v1754
  %2499 = vmatpush.bf16.msra.mxu0 %v1750
  %2500 = vmatpush.bf16.msra.mxu0 %v1746
  %2501 = vmatpush.bf16.msra.mxu0 %v1742
  %2502 = vmatmul.bf16.gmra.mxu0 %v479
  %v2503 = vpop.f32.mrf.mxu0
  %v2504 = vadd.f32 %v2490, %v2503
  %v2505 = vpop.f32.mrf.mxu0
  %v2506 = vadd.f32 %v2492, %v2505
  %2507 = vdwg.mxu0
  %2508 = vmatpush.bf16.msra.mxu0 %v1802
  %2509 = vmatpush.bf16.msra.mxu0 %v1798
  %2510 = vmatpush.bf16.msra.mxu0 %v1794
  %2511 = vmatpush.bf16.msra.mxu0 %v1790
  %2512 = vmatpush.bf16.msra.mxu0 %v1786
  %2513 = vmatpush.bf16.msra.mxu0 %v1782
  %2514 = vmatpush.bf16.msra.mxu0 %v1778
  %2515 = vmatpush.bf16.msra.mxu0 %v1774
  %2516 = vmatmul.bf16.gmra.mxu0 %v480
  %v2517 = vpop.f32.mrf.mxu0
  %v2518 = vadd.f32 %v2504, %v2517
  %v2519 = vpop.f32.mrf.mxu0
  %v2520 = vadd.f32 %v2506, %v2519
  %2521 = vdwg.mxu0
  %2522 = vmatpush.bf16.msra.mxu0 %v1834
  %2523 = vmatpush.bf16.msra.mxu0 %v1830
  %2524 = vmatpush.bf16.msra.mxu0 %v1826
  %2525 = vmatpush.bf16.msra.mxu0 %v1822
  %2526 = vmatpush.bf16.msra.mxu0 %v1818
  %2527 = vmatpush.bf16.msra.mxu0 %v1814
  %2528 = vmatpush.bf16.msra.mxu0 %v1810
  %2529 = vmatpush.bf16.msra.mxu0 %v1806
  %2530 = vmatmul.bf16.gmra.mxu0 %v481
  %v2531 = vpop.f32.mrf.mxu0
  %v2532 = vadd.f32 %v2518, %v2531
  %v2533 = vpop.f32.mrf.mxu0
  %v2534 = vadd.f32 %v2520, %v2533
  %2535 = vdwg.mxu0
  %2536 = vmatpush.bf16.msra.mxu0 %v1866
  %2537 = vmatpush.bf16.msra.mxu0 %v1862
  %2538 = vmatpush.bf16.msra.mxu0 %v1858
  %2539 = vmatpush.bf16.msra.mxu0 %v1854
  %2540 = vmatpush.bf16.msra.mxu0 %v1850
  %2541 = vmatpush.bf16.msra.mxu0 %v1846
  %2542 = vmatpush.bf16.msra.mxu0 %v1842
  %2543 = vmatpush.bf16.msra.mxu0 %v1838
  %2544 = vmatmul.bf16.gmra.mxu0 %v482
  %v2545 = vpop.f32.mrf.mxu0
  %v2546 = vadd.f32 %v2532, %v2545
  %v2547 = vpop.f32.mrf.mxu0
  %v2548 = vadd.f32 %v2534, %v2547
  %2549 = vdwg.mxu0
  %2550 = vmatpush.bf16.msra.mxu0 %v1898
  %2551 = vmatpush.bf16.msra.mxu0 %v1894
  %2552 = vmatpush.bf16.msra.mxu0 %v1890
  %2553 = vmatpush.bf16.msra.mxu0 %v1886
  %2554 = vmatpush.bf16.msra.mxu0 %v1882
  %2555 = vmatpush.bf16.msra.mxu0 %v1878
  %2556 = vmatpush.bf16.msra.mxu0 %v1874
  %2557 = vmatpush.bf16.msra.mxu0 %v1870
  %2558 = vmatmul.bf16.gmra.mxu0 %v483
  %v2559 = vpop.f32.mrf.mxu0
  %v2560 = vadd.f32 %v2546, %v2559
  %v2561 = vpop.f32.mrf.mxu0
  %v2562 = vadd.f32 %v2548, %v2561
  %2563 = vdwg.mxu0
  %2564 = vmatpush.bf16.msra.mxu0 %v1930
  %2565 = vmatpush.bf16.msra.mxu0 %v1926
  %2566 = vmatpush.bf16.msra.mxu0 %v1922
  %2567 = vmatpush.bf16.msra.mxu0 %v1918
  %2568 = vmatpush.bf16.msra.mxu0 %v1914
  %2569 = vmatpush.bf16.msra.mxu0 %v1910
  %2570 = vmatpush.bf16.msra.mxu0 %v1906
  %2571 = vmatpush.bf16.msra.mxu0 %v1902
  %2572 = vmatmul.bf16.gmra.mxu0 %v484
  %v2573 = vpop.f32.mrf.mxu0
  %v2574 = vadd.f32 %v2560, %v2573
  %v2575 = vpop.f32.mrf.mxu0
  %v2576 = vadd.f32 %v2562, %v2575
  %2577 = vdwg.mxu0
  %2578 = vmatpush.bf16.msra.mxu0 %v1962
  %2579 = vmatpush.bf16.msra.mxu0 %v1958
  %2580 = vmatpush.bf16.msra.mxu0 %v1954
  %2581 = vmatpush.bf16.msra.mxu0 %v1950
  %2582 = vmatpush.bf16.msra.mxu0 %v1946
  %2583 = vmatpush.bf16.msra.mxu0 %v1942
  %2584 = vmatpush.bf16.msra.mxu0 %v1938
  %2585 = vmatpush.bf16.msra.mxu0 %v1934
  %2586 = vmatmul.bf16.gmra.mxu0 %v485
  %v2587 = vpop.f32.mrf.mxu0
  %v2588 = vadd.f32 %v2574, %v2587
  %v2589 = vpop.f32.mrf.mxu0
  %v2590 = vadd.f32 %v2576, %v2589
  %2591 = vdwg.mxu0
  %2592 = vmatpush.bf16.msra.mxu0 %v1994
  %2593 = vmatpush.bf16.msra.mxu0 %v1990
  %2594 = vmatpush.bf16.msra.mxu0 %v1986
  %2595 = vmatpush.bf16.msra.mxu0 %v1982
  %2596 = vmatpush.bf16.msra.mxu0 %v1978
  %2597 = vmatpush.bf16.msra.mxu0 %v1974
  %2598 = vmatpush.bf16.msra.mxu0 %v1970
  %2599 = vmatpush.bf16.msra.mxu0 %v1966
  %2600 = vmatmul.bf16.gmra.mxu0 %v486
  %v2601 = vpop.f32.mrf.mxu0
  %v2602 = vadd.f32 %v2588, %v2601
  %v2603 = vpop.f32.mrf.mxu0
  %v2604 = vadd.f32 %v2590, %v2603
  %2605 = vdwg.mxu0
  %2606 = vmatpush.bf16.msra.mxu0 %v2026
  %2607 = vmatpush.bf16.msra.mxu0 %v2022
  %2608 = vmatpush.bf16.msra.mxu0 %v2018
  %2609 = vmatpush.bf16.msra.mxu0 %v2014
  %2610 = vmatpush.bf16.msra.mxu0 %v2010
  %2611 = vmatpush.bf16.msra.mxu0 %v2006
  %2612 = vmatpush.bf16.msra.mxu0 %v2002
  %2613 = vmatpush.bf16.msra.mxu0 %v1998
  %2614 = vmatmul.bf16.gmra.mxu0 %v487
  %v2615 = vpop.f32.mrf.mxu0
  %v2616 = vadd.f32 %v2602, %v2615
  %v2617 = vpop.f32.mrf.mxu0
  %v2618 = vadd.f32 %v2604, %v2617
  %2619 = vdwg.mxu0
  %2620 = vmatpush.bf16.msra.mxu0 %v2058
  %2621 = vmatpush.bf16.msra.mxu0 %v2054
  %2622 = vmatpush.bf16.msra.mxu0 %v2050
  %2623 = vmatpush.bf16.msra.mxu0 %v2046
  %2624 = vmatpush.bf16.msra.mxu0 %v2042
  %2625 = vmatpush.bf16.msra.mxu0 %v2038
  %2626 = vmatpush.bf16.msra.mxu0 %v2034
  %2627 = vmatpush.bf16.msra.mxu0 %v2030
  %2628 = vmatmul.bf16.gmra.mxu0 %v488
  %v2629 = vpop.f32.mrf.mxu0
  %v2630 = vadd.f32 %v2616, %v2629
  %v2631 = vpop.f32.mrf.mxu0
  %v2632 = vadd.f32 %v2618, %v2631
  %2633 = vdwg.mxu0
  %2634 = vmatpush.bf16.msra.mxu0 0
  %2635 = vmatpush.bf16.msra.mxu0 0
  %2636 = vmatpush.bf16.msra.mxu0 0
  %2637 = vmatpush.bf16.msra.mxu0 0
  %2638 = vmatpush.bf16.msra.mxu0 0
  %2639 = vmatpush.bf16.msra.mxu0 0
  %2640 = vmatpush.bf16.msra.mxu0 %v2066
  %2641 = vmatpush.bf16.msra.mxu0 %v2062
  %2642 = vmatmul.bf16.gmra.mxu0 %v2464
  %v2643 = vpop.f32.mrf.mxu0
  %v2644 = vadd.f32 %v2630, %v2643
  %v2645 = vpop.f32.mrf.mxu0
  %v2646 = vadd.f32 %v2632, %v2645
  %2647 = vdwg.mxu0
  %2648 = vmatpush.bf16.msra.mxu0 %v1707
  %2649 = vmatpush.bf16.msra.mxu0 %v1703
  %2650 = vmatpush.bf16.msra.mxu0 %v1699
  %2651 = vmatpush.bf16.msra.mxu0 %v1695
  %2652 = vmatpush.bf16.msra.mxu0 %v1691
  %2653 = vmatpush.bf16.msra.mxu0 %v1687
  %2654 = vmatpush.bf16.msra.mxu0 %v1683
  %2655 = vmatpush.bf16.msra.mxu0 %v1679
  %2656 = vmatmul.bf16.gmra.mxu0 %v477
  %v2657 = vpop.f32.mrf.mxu0
  %v2658 = vadd.f32 %v430, %v2657
  %v2659 = vpop.f32.mrf.mxu0
  %v2660 = vadd.f32 %v430, %v2659
  %2661 = vdwg.mxu0
  %2662 = vmatpush.bf16.msra.mxu0 %v1739
  %2663 = vmatpush.bf16.msra.mxu0 %v1735
  %2664 = vmatpush.bf16.msra.mxu0 %v1731
  %2665 = vmatpush.bf16.msra.mxu0 %v1727
  %2666 = vmatpush.bf16.msra.mxu0 %v1723
  %2667 = vmatpush.bf16.msra.mxu0 %v1719
  %2668 = vmatpush.bf16.msra.mxu0 %v1715
  %2669 = vmatpush.bf16.msra.mxu0 %v1711
  %2670 = vmatmul.bf16.gmra.mxu0 %v478
  %v2671 = vpop.f32.mrf.mxu0
  %v2672 = vadd.f32 %v2658, %v2671
  %v2673 = vpop.f32.mrf.mxu0
  %v2674 = vadd.f32 %v2660, %v2673
  %2675 = vdwg.mxu0
  %2676 = vmatpush.bf16.msra.mxu0 %v1771
  %2677 = vmatpush.bf16.msra.mxu0 %v1767
  %2678 = vmatpush.bf16.msra.mxu0 %v1763
  %2679 = vmatpush.bf16.msra.mxu0 %v1759
  %2680 = vmatpush.bf16.msra.mxu0 %v1755
  %2681 = vmatpush.bf16.msra.mxu0 %v1751
  %2682 = vmatpush.bf16.msra.mxu0 %v1747
  %2683 = vmatpush.bf16.msra.mxu0 %v1743
  %2684 = vmatmul.bf16.gmra.mxu0 %v479
  %v2685 = vpop.f32.mrf.mxu0
  %v2686 = vadd.f32 %v2672, %v2685
  %v2687 = vpop.f32.mrf.mxu0
  %v2688 = vadd.f32 %v2674, %v2687
  %2689 = vdwg.mxu0
  %2690 = vmatpush.bf16.msra.mxu0 %v1803
  %2691 = vmatpush.bf16.msra.mxu0 %v1799
  %2692 = vmatpush.bf16.msra.mxu0 %v1795
  %2693 = vmatpush.bf16.msra.mxu0 %v1791
  %2694 = vmatpush.bf16.msra.mxu0 %v1787
  %2695 = vmatpush.bf16.msra.mxu0 %v1783
  %2696 = vmatpush.bf16.msra.mxu0 %v1779
  %2697 = vmatpush.bf16.msra.mxu0 %v1775
  %2698 = vmatmul.bf16.gmra.mxu0 %v480
  %v2699 = vpop.f32.mrf.mxu0
  %v2700 = vadd.f32 %v2686, %v2699
  %v2701 = vpop.f32.mrf.mxu0
  %v2702 = vadd.f32 %v2688, %v2701
  %2703 = vdwg.mxu0
  %2704 = vmatpush.bf16.msra.mxu0 %v1835
  %2705 = vmatpush.bf16.msra.mxu0 %v1831
  %2706 = vmatpush.bf16.msra.mxu0 %v1827
  %2707 = vmatpush.bf16.msra.mxu0 %v1823
  %2708 = vmatpush.bf16.msra.mxu0 %v1819
  %2709 = vmatpush.bf16.msra.mxu0 %v1815
  %2710 = vmatpush.bf16.msra.mxu0 %v1811
  %2711 = vmatpush.bf16.msra.mxu0 %v1807
  %2712 = vmatmul.bf16.gmra.mxu0 %v481
  %v2713 = vpop.f32.mrf.mxu0
  %v2714 = vadd.f32 %v2700, %v2713
  %v2715 = vpop.f32.mrf.mxu0
  %v2716 = vadd.f32 %v2702, %v2715
  %2717 = vdwg.mxu0
  %2718 = vmatpush.bf16.msra.mxu0 %v1867
  %2719 = vmatpush.bf16.msra.mxu0 %v1863
  %2720 = vmatpush.bf16.msra.mxu0 %v1859
  %2721 = vmatpush.bf16.msra.mxu0 %v1855
  %2722 = vmatpush.bf16.msra.mxu0 %v1851
  %2723 = vmatpush.bf16.msra.mxu0 %v1847
  %2724 = vmatpush.bf16.msra.mxu0 %v1843
  %2725 = vmatpush.bf16.msra.mxu0 %v1839
  %2726 = vmatmul.bf16.gmra.mxu0 %v482
  %v2727 = vpop.f32.mrf.mxu0
  %v2728 = vadd.f32 %v2714, %v2727
  %v2729 = vpop.f32.mrf.mxu0
  %v2730 = vadd.f32 %v2716, %v2729
  %2731 = vdwg.mxu0
  %2732 = vmatpush.bf16.msra.mxu0 %v1899
  %2733 = vmatpush.bf16.msra.mxu0 %v1895
  %2734 = vmatpush.bf16.msra.mxu0 %v1891
  %2735 = vmatpush.bf16.msra.mxu0 %v1887
  %2736 = vmatpush.bf16.msra.mxu0 %v1883
  %2737 = vmatpush.bf16.msra.mxu0 %v1879
  %2738 = vmatpush.bf16.msra.mxu0 %v1875
  %2739 = vmatpush.bf16.msra.mxu0 %v1871
  %2740 = vmatmul.bf16.gmra.mxu0 %v483
  %v2741 = vpop.f32.mrf.mxu0
  %v2742 = vadd.f32 %v2728, %v2741
  %v2743 = vpop.f32.mrf.mxu0
  %v2744 = vadd.f32 %v2730, %v2743
  %2745 = vdwg.mxu0
  %2746 = vmatpush.bf16.msra.mxu0 %v1931
  %2747 = vmatpush.bf16.msra.mxu0 %v1927
  %2748 = vmatpush.bf16.msra.mxu0 %v1923
  %2749 = vmatpush.bf16.msra.mxu0 %v1919
  %2750 = vmatpush.bf16.msra.mxu0 %v1915
  %2751 = vmatpush.bf16.msra.mxu0 %v1911
  %2752 = vmatpush.bf16.msra.mxu0 %v1907
  %2753 = vmatpush.bf16.msra.mxu0 %v1903
  %2754 = vmatmul.bf16.gmra.mxu0 %v484
  %v2755 = vpop.f32.mrf.mxu0
  %v2756 = vadd.f32 %v2742, %v2755
  %v2757 = vpop.f32.mrf.mxu0
  %v2758 = vadd.f32 %v2744, %v2757
  %2759 = vdwg.mxu0
  %2760 = vmatpush.bf16.msra.mxu0 %v1963
  %2761 = vmatpush.bf16.msra.mxu0 %v1959
  %2762 = vmatpush.bf16.msra.mxu0 %v1955
  %2763 = vmatpush.bf16.msra.mxu0 %v1951
  %2764 = vmatpush.bf16.msra.mxu0 %v1947
  %2765 = vmatpush.bf16.msra.mxu0 %v1943
  %2766 = vmatpush.bf16.msra.mxu0 %v1939
  %2767 = vmatpush.bf16.msra.mxu0 %v1935
  %2768 = vmatmul.bf16.gmra.mxu0 %v485
  %v2769 = vpop.f32.mrf.mxu0
  %v2770 = vadd.f32 %v2756, %v2769
  %v2771 = vpop.f32.mrf.mxu0
  %v2772 = vadd.f32 %v2758, %v2771
  %2773 = vdwg.mxu0
  %2774 = vmatpush.bf16.msra.mxu0 %v1995
  %2775 = vmatpush.bf16.msra.mxu0 %v1991
  %2776 = vmatpush.bf16.msra.mxu0 %v1987
  %2777 = vmatpush.bf16.msra.mxu0 %v1983
  %2778 = vmatpush.bf16.msra.mxu0 %v1979
  %2779 = vmatpush.bf16.msra.mxu0 %v1975
  %2780 = vmatpush.bf16.msra.mxu0 %v1971
  %2781 = vmatpush.bf16.msra.mxu0 %v1967
  %2782 = vmatmul.bf16.gmra.mxu0 %v486
  %v2783 = vpop.f32.mrf.mxu0
  %v2784 = vadd.f32 %v2770, %v2783
  %v2785 = vpop.f32.mrf.mxu0
  %v2786 = vadd.f32 %v2772, %v2785
  %2787 = vdwg.mxu0
  %2788 = vmatpush.bf16.msra.mxu0 %v2027
  %2789 = vmatpush.bf16.msra.mxu0 %v2023
  %2790 = vmatpush.bf16.msra.mxu0 %v2019
  %2791 = vmatpush.bf16.msra.mxu0 %v2015
  %2792 = vmatpush.bf16.msra.mxu0 %v2011
  %2793 = vmatpush.bf16.msra.mxu0 %v2007
  %2794 = vmatpush.bf16.msra.mxu0 %v2003
  %2795 = vmatpush.bf16.msra.mxu0 %v1999
  %2796 = vmatmul.bf16.gmra.mxu0 %v487
  %v2797 = vpop.f32.mrf.mxu0
  %v2798 = vadd.f32 %v2784, %v2797
  %v2799 = vpop.f32.mrf.mxu0
  %v2800 = vadd.f32 %v2786, %v2799
  %2801 = vdwg.mxu0
  %2802 = vmatpush.bf16.msra.mxu0 %v2059
  %2803 = vmatpush.bf16.msra.mxu0 %v2055
  %2804 = vmatpush.bf16.msra.mxu0 %v2051
  %2805 = vmatpush.bf16.msra.mxu0 %v2047
  %2806 = vmatpush.bf16.msra.mxu0 %v2043
  %2807 = vmatpush.bf16.msra.mxu0 %v2039
  %2808 = vmatpush.bf16.msra.mxu0 %v2035
  %2809 = vmatpush.bf16.msra.mxu0 %v2031
  %2810 = vmatmul.bf16.gmra.mxu0 %v488
  %v2811 = vpop.f32.mrf.mxu0
  %v2812 = vadd.f32 %v2798, %v2811
  %v2813 = vpop.f32.mrf.mxu0
  %v2814 = vadd.f32 %v2800, %v2813
  %2815 = vdwg.mxu0
  %2816 = vmatpush.bf16.msra.mxu0 0
  %2817 = vmatpush.bf16.msra.mxu0 0
  %2818 = vmatpush.bf16.msra.mxu0 0
  %2819 = vmatpush.bf16.msra.mxu0 0
  %2820 = vmatpush.bf16.msra.mxu0 0
  %2821 = vmatpush.bf16.msra.mxu0 0
  %2822 = vmatpush.bf16.msra.mxu0 %v2067
  %2823 = vmatpush.bf16.msra.mxu0 %v2063
  %2824 = vmatmul.bf16.gmra.mxu0 %v2464
  %v2825 = vpop.f32.mrf.mxu0
  %v2826 = vadd.f32 %v2812, %v2825
  %v2827 = vpop.f32.mrf.mxu0
  %v2828 = vadd.f32 %v2814, %v2827
  %2829 = vdwg.mxu0
  %2830 = vmatpush.bf16.msra.mxu0 %v1708
  %2831 = vmatpush.bf16.msra.mxu0 %v1704
  %2832 = vmatpush.bf16.msra.mxu0 %v1700
  %2833 = vmatpush.bf16.msra.mxu0 %v1696
  %2834 = vmatpush.bf16.msra.mxu0 %v1692
  %2835 = vmatpush.bf16.msra.mxu0 %v1688
  %2836 = vmatpush.bf16.msra.mxu0 %v1684
  %2837 = vmatpush.bf16.msra.mxu0 %v1680
  %2838 = vmatmul.bf16.gmra.mxu0 %v477
  %v2839 = vpop.f32.mrf.mxu0
  %v2840 = vadd.f32 %v431, %v2839
  %v2841 = vpop.f32.mrf.mxu0
  %v2842 = vadd.f32 %v431, %v2841
  %2843 = vdwg.mxu0
  %2844 = vmatpush.bf16.msra.mxu0 %v1740
  %2845 = vmatpush.bf16.msra.mxu0 %v1736
  %2846 = vmatpush.bf16.msra.mxu0 %v1732
  %2847 = vmatpush.bf16.msra.mxu0 %v1728
  %2848 = vmatpush.bf16.msra.mxu0 %v1724
  %2849 = vmatpush.bf16.msra.mxu0 %v1720
  %2850 = vmatpush.bf16.msra.mxu0 %v1716
  %2851 = vmatpush.bf16.msra.mxu0 %v1712
  %2852 = vmatmul.bf16.gmra.mxu0 %v478
  %v2853 = vpop.f32.mrf.mxu0
  %v2854 = vadd.f32 %v2840, %v2853
  %v2855 = vpop.f32.mrf.mxu0
  %v2856 = vadd.f32 %v2842, %v2855
  %2857 = vdwg.mxu0
  %2858 = vmatpush.bf16.msra.mxu0 %v1772
  %2859 = vmatpush.bf16.msra.mxu0 %v1768
  %2860 = vmatpush.bf16.msra.mxu0 %v1764
  %2861 = vmatpush.bf16.msra.mxu0 %v1760
  %2862 = vmatpush.bf16.msra.mxu0 %v1756
  %2863 = vmatpush.bf16.msra.mxu0 %v1752
  %2864 = vmatpush.bf16.msra.mxu0 %v1748
  %2865 = vmatpush.bf16.msra.mxu0 %v1744
  %2866 = vmatmul.bf16.gmra.mxu0 %v479
  %v2867 = vpop.f32.mrf.mxu0
  %v2868 = vadd.f32 %v2854, %v2867
  %v2869 = vpop.f32.mrf.mxu0
  %v2870 = vadd.f32 %v2856, %v2869
  %2871 = vdwg.mxu0
  %2872 = vmatpush.bf16.msra.mxu0 %v1804
  %2873 = vmatpush.bf16.msra.mxu0 %v1800
  %2874 = vmatpush.bf16.msra.mxu0 %v1796
  %2875 = vmatpush.bf16.msra.mxu0 %v1792
  %2876 = vmatpush.bf16.msra.mxu0 %v1788
  %2877 = vmatpush.bf16.msra.mxu0 %v1784
  %2878 = vmatpush.bf16.msra.mxu0 %v1780
  %2879 = vmatpush.bf16.msra.mxu0 %v1776
  %2880 = vmatmul.bf16.gmra.mxu0 %v480
  %v2881 = vpop.f32.mrf.mxu0
  %v2882 = vadd.f32 %v2868, %v2881
  %v2883 = vpop.f32.mrf.mxu0
  %v2884 = vadd.f32 %v2870, %v2883
  %2885 = vdwg.mxu0
  %2886 = vmatpush.bf16.msra.mxu0 %v1836
  %2887 = vmatpush.bf16.msra.mxu0 %v1832
  %2888 = vmatpush.bf16.msra.mxu0 %v1828
  %2889 = vmatpush.bf16.msra.mxu0 %v1824
  %2890 = vmatpush.bf16.msra.mxu0 %v1820
  %2891 = vmatpush.bf16.msra.mxu0 %v1816
  %2892 = vmatpush.bf16.msra.mxu0 %v1812
  %2893 = vmatpush.bf16.msra.mxu0 %v1808
  %2894 = vmatmul.bf16.gmra.mxu0 %v481
  %v2895 = vpop.f32.mrf.mxu0
  %v2896 = vadd.f32 %v2882, %v2895
  %v2897 = vpop.f32.mrf.mxu0
  %v2898 = vadd.f32 %v2884, %v2897
  %2899 = vdwg.mxu0
  %2900 = vmatpush.bf16.msra.mxu0 %v1868
  %2901 = vmatpush.bf16.msra.mxu0 %v1864
  %2902 = vmatpush.bf16.msra.mxu0 %v1860
  %2903 = vmatpush.bf16.msra.mxu0 %v1856
  %2904 = vmatpush.bf16.msra.mxu0 %v1852
  %2905 = vmatpush.bf16.msra.mxu0 %v1848
  %2906 = vmatpush.bf16.msra.mxu0 %v1844
  %2907 = vmatpush.bf16.msra.mxu0 %v1840
  %2908 = vmatmul.bf16.gmra.mxu0 %v482
  %v2909 = vpop.f32.mrf.mxu0
  %v2910 = vadd.f32 %v2896, %v2909
  %v2911 = vpop.f32.mrf.mxu0
  %v2912 = vadd.f32 %v2898, %v2911
  %2913 = vdwg.mxu0
  %2914 = vmatpush.bf16.msra.mxu0 %v1900
  %2915 = vmatpush.bf16.msra.mxu0 %v1896
  %2916 = vmatpush.bf16.msra.mxu0 %v1892
  %2917 = vmatpush.bf16.msra.mxu0 %v1888
  %2918 = vmatpush.bf16.msra.mxu0 %v1884
  %2919 = vmatpush.bf16.msra.mxu0 %v1880
  %2920 = vmatpush.bf16.msra.mxu0 %v1876
  %2921 = vmatpush.bf16.msra.mxu0 %v1872
  %2922 = vmatmul.bf16.gmra.mxu0 %v483
  %v2923 = vpop.f32.mrf.mxu0
  %v2924 = vadd.f32 %v2910, %v2923
  %v2925 = vpop.f32.mrf.mxu0
  %v2926 = vadd.f32 %v2912, %v2925
  %2927 = vdwg.mxu0
  %2928 = vmatpush.bf16.msra.mxu0 %v1932
  %2929 = vmatpush.bf16.msra.mxu0 %v1928
  %2930 = vmatpush.bf16.msra.mxu0 %v1924
  %2931 = vmatpush.bf16.msra.mxu0 %v1920
  %2932 = vmatpush.bf16.msra.mxu0 %v1916
  %2933 = vmatpush.bf16.msra.mxu0 %v1912
  %2934 = vmatpush.bf16.msra.mxu0 %v1908
  %2935 = vmatpush.bf16.msra.mxu0 %v1904
  %2936 = vmatmul.bf16.gmra.mxu0 %v484
  %v2937 = vpop.f32.mrf.mxu0
  %v2938 = vadd.f32 %v2924, %v2937
  %v2939 = vpop.f32.mrf.mxu0
  %v2940 = vadd.f32 %v2926, %v2939
  %2941 = vdwg.mxu0
  %2942 = vmatpush.bf16.msra.mxu0 %v1964
  %2943 = vmatpush.bf16.msra.mxu0 %v1960
  %2944 = vmatpush.bf16.msra.mxu0 %v1956
  %2945 = vmatpush.bf16.msra.mxu0 %v1952
  %2946 = vmatpush.bf16.msra.mxu0 %v1948
  %2947 = vmatpush.bf16.msra.mxu0 %v1944
  %2948 = vmatpush.bf16.msra.mxu0 %v1940
  %2949 = vmatpush.bf16.msra.mxu0 %v1936
  %2950 = vmatmul.bf16.gmra.mxu0 %v485
  %v2951 = vpop.f32.mrf.mxu0
  %v2952 = vadd.f32 %v2938, %v2951
  %v2953 = vpop.f32.mrf.mxu0
  %v2954 = vadd.f32 %v2940, %v2953
  %2955 = vdwg.mxu0
  %2956 = vmatpush.bf16.msra.mxu0 %v1996
  %2957 = vmatpush.bf16.msra.mxu0 %v1992
  %2958 = vmatpush.bf16.msra.mxu0 %v1988
  %2959 = vmatpush.bf16.msra.mxu0 %v1984
  %2960 = vmatpush.bf16.msra.mxu0 %v1980
  %2961 = vmatpush.bf16.msra.mxu0 %v1976
  %2962 = vmatpush.bf16.msra.mxu0 %v1972
  %2963 = vmatpush.bf16.msra.mxu0 %v1968
  %2964 = vmatmul.bf16.gmra.mxu0 %v486
  %v2965 = vpop.f32.mrf.mxu0
  %v2966 = vadd.f32 %v2952, %v2965
  %v2967 = vpop.f32.mrf.mxu0
  %v2968 = vadd.f32 %v2954, %v2967
  %2969 = vdwg.mxu0
  %2970 = vmatpush.bf16.msra.mxu0 %v2028
  %2971 = vmatpush.bf16.msra.mxu0 %v2024
  %2972 = vmatpush.bf16.msra.mxu0 %v2020
  %2973 = vmatpush.bf16.msra.mxu0 %v2016
  %2974 = vmatpush.bf16.msra.mxu0 %v2012
  %2975 = vmatpush.bf16.msra.mxu0 %v2008
  %2976 = vmatpush.bf16.msra.mxu0 %v2004
  %2977 = vmatpush.bf16.msra.mxu0 %v2000
  %2978 = vmatmul.bf16.gmra.mxu0 %v487
  %v2979 = vpop.f32.mrf.mxu0
  %v2980 = vadd.f32 %v2966, %v2979
  %v2981 = vpop.f32.mrf.mxu0
  %v2982 = vadd.f32 %v2968, %v2981
  %2983 = vdwg.mxu0
  %2984 = vmatpush.bf16.msra.mxu0 %v2060
  %2985 = vmatpush.bf16.msra.mxu0 %v2056
  %2986 = vmatpush.bf16.msra.mxu0 %v2052
  %2987 = vmatpush.bf16.msra.mxu0 %v2048
  %2988 = vmatpush.bf16.msra.mxu0 %v2044
  %2989 = vmatpush.bf16.msra.mxu0 %v2040
  %2990 = vmatpush.bf16.msra.mxu0 %v2036
  %2991 = vmatpush.bf16.msra.mxu0 %v2032
  %2992 = vmatmul.bf16.gmra.mxu0 %v488
  %v2993 = vpop.f32.mrf.mxu0
  %v2994 = vadd.f32 %v2980, %v2993
  %v2995 = vpop.f32.mrf.mxu0
  %v2996 = vadd.f32 %v2982, %v2995
  %2997 = vdwg.mxu0
  %2998 = vmatpush.bf16.msra.mxu0 0
  %2999 = vmatpush.bf16.msra.mxu0 0
  %3000 = vmatpush.bf16.msra.mxu0 0
  %3001 = vmatpush.bf16.msra.mxu0 0
  %3002 = vmatpush.bf16.msra.mxu0 0
  %3003 = vmatpush.bf16.msra.mxu0 0
  %3004 = vmatpush.bf16.msra.mxu0 %v2068
  %3005 = vmatpush.bf16.msra.mxu0 %v2064
  %3006 = vmatmul.bf16.gmra.mxu0 %v2464
  %v3007 = vpop.f32.mrf.mxu0
  %v3008 = vadd.f32 %v2994, %v3007
  %v3009 = vpop.f32.mrf.mxu0
  %v3010 = vadd.f32 %v2996, %v3009
  %3011 = vdwg.mxu0
  %3012 = vmatpush.bf16.msra.mxu0 %v1709
  %3013 = vmatpush.bf16.msra.mxu0 %v1705
  %3014 = vmatpush.bf16.msra.mxu0 %v1701
  %3015 = vmatpush.bf16.msra.mxu0 %v1697
  %3016 = vmatpush.bf16.msra.mxu0 %v1693
  %3017 = vmatpush.bf16.msra.mxu0 %v1689
  %3018 = vmatpush.bf16.msra.mxu0 %v1685
  %3019 = vmatpush.bf16.msra.mxu0 %v1681
  %3020 = vmatmul.bf16.gmra.mxu0 %v477
  %v3021 = vpop.f32.mrf.mxu0
  %v3022 = vadd.f32 %v432, %v3021
  %v3023 = vpop.f32.mrf.mxu0
  %v3024 = vadd.f32 %v432, %v3023
  %3025 = vdwg.mxu0
  %3026 = vmatpush.bf16.msra.mxu0 %v1741
  %3027 = vmatpush.bf16.msra.mxu0 %v1737
  %3028 = vmatpush.bf16.msra.mxu0 %v1733
  %3029 = vmatpush.bf16.msra.mxu0 %v1729
  %3030 = vmatpush.bf16.msra.mxu0 %v1725
  %3031 = vmatpush.bf16.msra.mxu0 %v1721
  %3032 = vmatpush.bf16.msra.mxu0 %v1717
  %3033 = vmatpush.bf16.msra.mxu0 %v1713
  %3034 = vmatmul.bf16.gmra.mxu0 %v478
  %v3035 = vpop.f32.mrf.mxu0
  %v3036 = vadd.f32 %v3022, %v3035
  %v3037 = vpop.f32.mrf.mxu0
  %v3038 = vadd.f32 %v3024, %v3037
  %3039 = vdwg.mxu0
  %3040 = vmatpush.bf16.msra.mxu0 %v1773
  %3041 = vmatpush.bf16.msra.mxu0 %v1769
  %3042 = vmatpush.bf16.msra.mxu0 %v1765
  %3043 = vmatpush.bf16.msra.mxu0 %v1761
  %3044 = vmatpush.bf16.msra.mxu0 %v1757
  %3045 = vmatpush.bf16.msra.mxu0 %v1753
  %3046 = vmatpush.bf16.msra.mxu0 %v1749
  %3047 = vmatpush.bf16.msra.mxu0 %v1745
  %3048 = vmatmul.bf16.gmra.mxu0 %v479
  %v3049 = vpop.f32.mrf.mxu0
  %v3050 = vadd.f32 %v3036, %v3049
  %v3051 = vpop.f32.mrf.mxu0
  %v3052 = vadd.f32 %v3038, %v3051
  %3053 = vdwg.mxu0
  %3054 = vmatpush.bf16.msra.mxu0 %v1805
  %3055 = vmatpush.bf16.msra.mxu0 %v1801
  %3056 = vmatpush.bf16.msra.mxu0 %v1797
  %3057 = vmatpush.bf16.msra.mxu0 %v1793
  %3058 = vmatpush.bf16.msra.mxu0 %v1789
  %3059 = vmatpush.bf16.msra.mxu0 %v1785
  %3060 = vmatpush.bf16.msra.mxu0 %v1781
  %3061 = vmatpush.bf16.msra.mxu0 %v1777
  %3062 = vmatmul.bf16.gmra.mxu0 %v480
  %v3063 = vpop.f32.mrf.mxu0
  %v3064 = vadd.f32 %v3050, %v3063
  %v3065 = vpop.f32.mrf.mxu0
  %v3066 = vadd.f32 %v3052, %v3065
  %3067 = vdwg.mxu0
  %3068 = vmatpush.bf16.msra.mxu0 %v1837
  %3069 = vmatpush.bf16.msra.mxu0 %v1833
  %3070 = vmatpush.bf16.msra.mxu0 %v1829
  %3071 = vmatpush.bf16.msra.mxu0 %v1825
  %3072 = vmatpush.bf16.msra.mxu0 %v1821
  %3073 = vmatpush.bf16.msra.mxu0 %v1817
  %3074 = vmatpush.bf16.msra.mxu0 %v1813
  %3075 = vmatpush.bf16.msra.mxu0 %v1809
  %3076 = vmatmul.bf16.gmra.mxu0 %v481
  %v3077 = vpop.f32.mrf.mxu0
  %v3078 = vadd.f32 %v3064, %v3077
  %v3079 = vpop.f32.mrf.mxu0
  %v3080 = vadd.f32 %v3066, %v3079
  %3081 = vdwg.mxu0
  %3082 = vmatpush.bf16.msra.mxu0 %v1869
  %3083 = vmatpush.bf16.msra.mxu0 %v1865
  %3084 = vmatpush.bf16.msra.mxu0 %v1861
  %3085 = vmatpush.bf16.msra.mxu0 %v1857
  %3086 = vmatpush.bf16.msra.mxu0 %v1853
  %3087 = vmatpush.bf16.msra.mxu0 %v1849
  %3088 = vmatpush.bf16.msra.mxu0 %v1845
  %3089 = vmatpush.bf16.msra.mxu0 %v1841
  %3090 = vmatmul.bf16.gmra.mxu0 %v482
  %v3091 = vpop.f32.mrf.mxu0
  %v3092 = vadd.f32 %v3078, %v3091
  %v3093 = vpop.f32.mrf.mxu0
  %v3094 = vadd.f32 %v3080, %v3093
  %3095 = vdwg.mxu0
  %3096 = vmatpush.bf16.msra.mxu0 %v1901
  %3097 = vmatpush.bf16.msra.mxu0 %v1897
  %3098 = vmatpush.bf16.msra.mxu0 %v1893
  %3099 = vmatpush.bf16.msra.mxu0 %v1889
  %3100 = vmatpush.bf16.msra.mxu0 %v1885
  %3101 = vmatpush.bf16.msra.mxu0 %v1881
  %3102 = vmatpush.bf16.msra.mxu0 %v1877
  %3103 = vmatpush.bf16.msra.mxu0 %v1873
  %3104 = vmatmul.bf16.gmra.mxu0 %v483
  %v3105 = vpop.f32.mrf.mxu0
  %v3106 = vadd.f32 %v3092, %v3105
  %v3107 = vpop.f32.mrf.mxu0
  %v3108 = vadd.f32 %v3094, %v3107
  %3109 = vdwg.mxu0
  %3110 = vmatpush.bf16.msra.mxu0 %v1933
  %3111 = vmatpush.bf16.msra.mxu0 %v1929
  %3112 = vmatpush.bf16.msra.mxu0 %v1925
  %3113 = vmatpush.bf16.msra.mxu0 %v1921
  %3114 = vmatpush.bf16.msra.mxu0 %v1917
  %3115 = vmatpush.bf16.msra.mxu0 %v1913
  %3116 = vmatpush.bf16.msra.mxu0 %v1909
  %3117 = vmatpush.bf16.msra.mxu0 %v1905
  %3118 = vmatmul.bf16.gmra.mxu0 %v484
  %v3119 = vpop.f32.mrf.mxu0
  %v3120 = vadd.f32 %v3106, %v3119
  %v3121 = vpop.f32.mrf.mxu0
  %v3122 = vadd.f32 %v3108, %v3121
  %3123 = vdwg.mxu0
  %3124 = vmatpush.bf16.msra.mxu0 %v1965
  %3125 = vmatpush.bf16.msra.mxu0 %v1961
  %3126 = vmatpush.bf16.msra.mxu0 %v1957
  %3127 = vmatpush.bf16.msra.mxu0 %v1953
  %3128 = vmatpush.bf16.msra.mxu0 %v1949
  %3129 = vmatpush.bf16.msra.mxu0 %v1945
  %3130 = vmatpush.bf16.msra.mxu0 %v1941
  %3131 = vmatpush.bf16.msra.mxu0 %v1937
  %3132 = vmatmul.bf16.gmra.mxu0 %v485
  %v3133 = vpop.f32.mrf.mxu0
  %v3134 = vadd.f32 %v3120, %v3133
  %v3135 = vpop.f32.mrf.mxu0
  %v3136 = vadd.f32 %v3122, %v3135
  %3137 = vdwg.mxu0
  %3138 = vmatpush.bf16.msra.mxu0 %v1997
  %3139 = vmatpush.bf16.msra.mxu0 %v1993
  %3140 = vmatpush.bf16.msra.mxu0 %v1989
  %3141 = vmatpush.bf16.msra.mxu0 %v1985
  %3142 = vmatpush.bf16.msra.mxu0 %v1981
  %3143 = vmatpush.bf16.msra.mxu0 %v1977
  %3144 = vmatpush.bf16.msra.mxu0 %v1973
  %3145 = vmatpush.bf16.msra.mxu0 %v1969
  %3146 = vmatmul.bf16.gmra.mxu0 %v486
  %v3147 = vpop.f32.mrf.mxu0
  %v3148 = vadd.f32 %v3134, %v3147
  %v3149 = vpop.f32.mrf.mxu0
  %v3150 = vadd.f32 %v3136, %v3149
  %3151 = vdwg.mxu0
  %3152 = vmatpush.bf16.msra.mxu0 %v2029
  %3153 = vmatpush.bf16.msra.mxu0 %v2025
  %3154 = vmatpush.bf16.msra.mxu0 %v2021
  %3155 = vmatpush.bf16.msra.mxu0 %v2017
  %3156 = vmatpush.bf16.msra.mxu0 %v2013
  %3157 = vmatpush.bf16.msra.mxu0 %v2009
  %3158 = vmatpush.bf16.msra.mxu0 %v2005
  %3159 = vmatpush.bf16.msra.mxu0 %v2001
  %3160 = vmatmul.bf16.gmra.mxu0 %v487
  %v3161 = vpop.f32.mrf.mxu0
  %v3162 = vadd.f32 %v3148, %v3161
  %v3163 = vpop.f32.mrf.mxu0
  %v3164 = vadd.f32 %v3150, %v3163
  %3165 = vdwg.mxu0
  %3166 = vmatpush.bf16.msra.mxu0 %v2061
  %3167 = vmatpush.bf16.msra.mxu0 %v2057
  %3168 = vmatpush.bf16.msra.mxu0 %v2053
  %3169 = vmatpush.bf16.msra.mxu0 %v2049
  %3170 = vmatpush.bf16.msra.mxu0 %v2045
  %3171 = vmatpush.bf16.msra.mxu0 %v2041
  %3172 = vmatpush.bf16.msra.mxu0 %v2037
  %3173 = vmatpush.bf16.msra.mxu0 %v2033
  %3174 = vmatmul.bf16.gmra.mxu0 %v488
  %v3175 = vpop.f32.mrf.mxu0
  %v3176 = vadd.f32 %v3162, %v3175
  %v3177 = vpop.f32.mrf.mxu0
  %v3178 = vadd.f32 %v3164, %v3177
  %3179 = vdwg.mxu0
  %3180 = vmatpush.bf16.msra.mxu0 0
  %3181 = vmatpush.bf16.msra.mxu0 0
  %3182 = vmatpush.bf16.msra.mxu0 0
  %3183 = vmatpush.bf16.msra.mxu0 0
  %3184 = vmatpush.bf16.msra.mxu0 0
  %3185 = vmatpush.bf16.msra.mxu0 0
  %3186 = vmatpush.bf16.msra.mxu0 %v2069
  %3187 = vmatpush.bf16.msra.mxu0 %v2065
  %3188 = vmatmul.bf16.gmra.mxu0 %v2464
  %v3189 = vpop.f32.mrf.mxu0
  %v3190 = vadd.f32 %v3176, %v3189
  %v3191 = vpop.f32.mrf.mxu0
  %v3192 = vadd.f32 %v3178, %v3191
  %3193 = vdwg.mxu0
  %v3194 = vmax.f32 %v2644, 0.0
  %v3195 = vmax.f32 %v2826, 0.0
  %v3196 = vmax.f32 %v3008, 0.0
  %v3197 = vmax.f32 %v3190, 0.0
  %v3198 = vmax.f32 %v2646, 0.0
  %v3199 = vmax.f32 %v2828, 0.0
  %v3200 = vmax.f32 %v3010, 0.0
  %v3201 = vmax.f32 %v3192, 0.0
  %v3202 = vpack.c.bf16 %v3198, %v3194
  %v3203 = vpack.c.bf16 %v3199, %v3195
  %v3204 = vpack.c.bf16 %v3200, %v3196
  %v3205 = vpack.c.bf16 %v3201, %v3197
  %v3206 = vld [vmem:[%s3] sm:$0xf]
  %v3207 = vld [vmem:[%s3 + $0x4] sm:$0xf]
  %v3208 = vld [vmem:[%s3 + $0x8] sm:$0xf]
  %v3209 = vld [vmem:[%s3 + $0xc] sm:$0xf]
  %v3210 = vld [vmem:[%s3 + $0x10] sm:$0xf]
  %v3211 = vld [vmem:[%s3 + $0x14] sm:$0xf]
  %v3212 = vld [vmem:[%s3 + $0x18] sm:$0xf]
  %v3213 = vld [vmem:[%s3 + $0x1c] sm:$0xf]
  %v3214 = vld [vmem:[%s3 + $0x20] sm:$0xf]
  %v3215 = vld [vmem:[%s3 + $0x24] sm:$0xf]
  %v3216 = vld [vmem:[%s3 + $0x28] sm:$0xf]
  %v3217 = vld [vmem:[%s3 + $0x2c] sm:$0xf]
  %v3218 = vld [vmem:[%s3 + $0x30] sm:$0xf]
  %v3219 = vld [vmem:[%s3 + $0x34] sm:$0xf]
  %v3220 = vld [vmem:[%s3 + $0x38] sm:$0xf]
  %v3221 = vld [vmem:[%s3 + $0x3c] sm:$0xf]
  %v3222 = vld [vmem:[%s3 + $0x40] sm:$0xf]
  %v3223 = vld [vmem:[%s3 + $0x44] sm:$0xf]
  %v3224 = vld [vmem:[%s3 + $0x48] sm:$0xf]
  %v3225 = vld [vmem:[%s3 + $0x4c] sm:$0xf]
  %v3226 = vld [vmem:[%s3 + $0x50] sm:$0xf]
  %v3227 = vld [vmem:[%s3 + $0x54] sm:$0xf]
  %v3228 = vld [vmem:[%s3 + $0x58] sm:$0xf]
  %v3229 = vld [vmem:[%s3 + $0x5c] sm:$0xf]
  %v3230 = vld [vmem:[%s3 + $0x60] sm:$0xf]
  %v3231 = vld [vmem:[%s3 + $0x64] sm:$0xf]
  %v3232 = vld [vmem:[%s3 + $0x68] sm:$0xf]
  %v3233 = vld [vmem:[%s3 + $0x6c] sm:$0xf]
  %v3234 = vld [vmem:[%s3 + $0x70] sm:$0xf]
  %v3235 = vld [vmem:[%s3 + $0x74] sm:$0xf]
  %v3236 = vld [vmem:[%s3 + $0x78] sm:$0xf]
  %v3237 = vld [vmem:[%s3 + $0x7c] sm:$0xf]
  %v3238 = vld [vmem:[%s3 + $0x80] sm:$0xf]
  %v3239 = vld [vmem:[%s3 + $0x84] sm:$0xf]
  %v3240 = vld [vmem:[%s3 + $0x88] sm:$0xf]
  %v3241 = vld [vmem:[%s3 + $0x8c] sm:$0xf]
  %v3242 = vld [vmem:[%s3 + $0x90] sm:$0xf]
  %v3243 = vld [vmem:[%s3 + $0x94] sm:$0xf]
  %v3244 = vld [vmem:[%s3 + $0x98] sm:$0xf]
  %v3245 = vld [vmem:[%s3 + $0x9c] sm:$0xf]
  %v3246 = vld [vmem:[%s3 + $0xa0] sm:$0xf]
  %v3247 = vld [vmem:[%s3 + $0xa4] sm:$0xf]
  %v3248 = vld [vmem:[%s3 + $0xa8] sm:$0xf]
  %v3249 = vld [vmem:[%s3 + $0xac] sm:$0xf]
  %v3250 = vld [vmem:[%s3 + $0xb0] sm:$0xf]
  %v3251 = vld [vmem:[%s3 + $0xb4] sm:$0xf]
  %v3252 = vld [vmem:[%s3 + $0xb8] sm:$0xf]
  %v3253 = vld [vmem:[%s3 + $0xbc] sm:$0xf]
  %v3254 = vld [vmem:[%s3 + $0xc0] sm:$0xf]
  %v3255 = vld [vmem:[%s3 + $0xc4] sm:$0xf]
  %v3256 = vld [vmem:[%s3 + $0xc8] sm:$0xf]
  %v3257 = vld [vmem:[%s3 + $0xcc] sm:$0xf]
  %v3258 = vld [vmem:[%s3 + $0xd0] sm:$0xf]
  %v3259 = vld [vmem:[%s3 + $0xd4] sm:$0xf]
  %v3260 = vld [vmem:[%s3 + $0xd8] sm:$0xf]
  %v3261 = vld [vmem:[%s3 + $0xdc] sm:$0xf]
  %v3262 = vld [vmem:[%s3 + $0xe0] sm:$0xf]
  %v3263 = vld [vmem:[%s3 + $0xe4] sm:$0xf]
  %v3264 = vld [vmem:[%s3 + $0xe8] sm:$0xf]
  %v3265 = vld [vmem:[%s3 + $0xec] sm:$0xf]
  %v3266 = vld [vmem:[%s3 + $0xf0] sm:$0xf]
  %v3267 = vld [vmem:[%s3 + $0xf4] sm:$0xf]
  %v3268 = vld [vmem:[%s3 + $0xf8] sm:$0xf]
  %v3269 = vld [vmem:[%s3 + $0xfc] sm:$0xf]
  %v3270 = vld [vmem:[%s4] sm:$0x1]
  %v3272 = vperm.slane %v3270, 0
  %v3338 = vunpack.c.l.b16 %v3206
  %v3339 = vunpack.c.l.b16 %v3207
  %v3340 = vunpack.c.l.b16 %v3208
  %v3341 = vunpack.c.l.b16 %v3209
  %v3342 = vunpack.c.l.b16 %v3210
  %v3343 = vunpack.c.l.b16 %v3211
  %v3344 = vunpack.c.l.b16 %v3212
  %v3345 = vunpack.c.l.b16 %v3213
  %v3346 = vunpack.c.l.b16 %v3214
  %v3347 = vunpack.c.l.b16 %v3215
  %v3348 = vunpack.c.l.b16 %v3216
  %v3349 = vunpack.c.l.b16 %v3217
  %v3350 = vunpack.c.l.b16 %v3218
  %v3351 = vunpack.c.l.b16 %v3219
  %v3352 = vunpack.c.l.b16 %v3220
  %v3353 = vunpack.c.l.b16 %v3221
  %v3354 = vunpack.c.l.b16 %v3222
  %v3355 = vunpack.c.l.b16 %v3223
  %v3356 = vunpack.c.l.b16 %v3224
  %v3357 = vunpack.c.l.b16 %v3225
  %v3358 = vunpack.c.l.b16 %v3226
  %v3359 = vunpack.c.l.b16 %v3227
  %v3360 = vunpack.c.l.b16 %v3228
  %v3361 = vunpack.c.l.b16 %v3229
  %v3362 = vunpack.c.l.b16 %v3230
  %v3363 = vunpack.c.l.b16 %v3231
  %v3364 = vunpack.c.l.b16 %v3232
  %v3365 = vunpack.c.l.b16 %v3233
  %v3366 = vunpack.c.l.b16 %v3234
  %v3367 = vunpack.c.l.b16 %v3235
  %v3368 = vunpack.c.l.b16 %v3236
  %v3369 = vunpack.c.l.b16 %v3237
  %v3370 = vunpack.c.l.b16 %v3238
  %v3371 = vunpack.c.l.b16 %v3239
  %v3372 = vunpack.c.l.b16 %v3240
  %v3373 = vunpack.c.l.b16 %v3241
  %v3374 = vunpack.c.l.b16 %v3242
  %v3375 = vunpack.c.l.b16 %v3243
  %v3376 = vunpack.c.l.b16 %v3244
  %v3377 = vunpack.c.l.b16 %v3245
  %v3378 = vunpack.c.l.b16 %v3246
  %v3379 = vunpack.c.l.b16 %v3247
  %v3380 = vunpack.c.l.b16 %v3248
  %v3381 = vunpack.c.l.b16 %v3249
  %v3382 = vunpack.c.l.b16 %v3250
  %v3383 = vunpack.c.l.b16 %v3251
  %v3384 = vunpack.c.l.b16 %v3252
  %v3385 = vunpack.c.l.b16 %v3253
  %v3386 = vunpack.c.l.b16 %v3254
  %v3387 = vunpack.c.l.b16 %v3255
  %v3388 = vunpack.c.l.b16 %v3256
  %v3389 = vunpack.c.l.b16 %v3257
  %v3390 = vunpack.c.l.b16 %v3258
  %v3391 = vunpack.c.l.b16 %v3259
  %v3392 = vunpack.c.l.b16 %v3260
  %v3393 = vunpack.c.l.b16 %v3261
  %v3394 = vunpack.c.l.b16 %v3262
  %v3395 = vunpack.c.l.b16 %v3263
  %v3396 = vunpack.c.l.b16 %v3264
  %v3397 = vunpack.c.l.b16 %v3265
  %v3398 = vunpack.c.l.b16 %v3266
  %v3399 = vunpack.c.l.b16 %v3267
  %v3400 = vunpack.c.l.b16 %v3268
  %v3401 = vunpack.c.l.b16 %v3269
  %v3402 = vpack.c.b16 %v3339, %v3338
  %v3403 = vpack.c.b16 %v3341, %v3340
  %v3404 = vpack.c.b16 %v3343, %v3342
  %v3405 = vpack.c.b16 %v3345, %v3344
  %v3406 = vpack.c.b16 %v3347, %v3346
  %v3407 = vpack.c.b16 %v3349, %v3348
  %v3408 = vpack.c.b16 %v3351, %v3350
  %v3409 = vpack.c.b16 %v3353, %v3352
  %v3410 = vpack.c.b16 %v3355, %v3354
  %v3411 = vpack.c.b16 %v3357, %v3356
  %v3412 = vpack.c.b16 %v3359, %v3358
  %v3413 = vpack.c.b16 %v3361, %v3360
  %v3414 = vpack.c.b16 %v3363, %v3362
  %v3415 = vpack.c.b16 %v3365, %v3364
  %v3416 = vpack.c.b16 %v3367, %v3366
  %v3417 = vpack.c.b16 %v3369, %v3368
  %v3418 = vpack.c.b16 %v3371, %v3370
  %v3419 = vpack.c.b16 %v3373, %v3372
  %v3420 = vpack.c.b16 %v3375, %v3374
  %v3421 = vpack.c.b16 %v3377, %v3376
  %v3422 = vpack.c.b16 %v3379, %v3378
  %v3423 = vpack.c.b16 %v3381, %v3380
  %v3424 = vpack.c.b16 %v3383, %v3382
  %v3425 = vpack.c.b16 %v3385, %v3384
  %v3426 = vpack.c.b16 %v3387, %v3386
  %v3427 = vpack.c.b16 %v3389, %v3388
  %v3428 = vpack.c.b16 %v3391, %v3390
  %v3429 = vpack.c.b16 %v3393, %v3392
  %v3430 = vpack.c.b16 %v3395, %v3394
  %v3431 = vpack.c.b16 %v3397, %v3396
  %v3432 = vpack.c.b16 %v3399, %v3398
  %v3433 = vpack.c.b16 %v3401, %v3400
  %3466 = vmatpush.bf16.msra.mxu0 %v3409
  %3467 = vmatpush.bf16.msra.mxu0 %v3408
  %3468 = vmatpush.bf16.msra.mxu0 %v3407
  %3469 = vmatpush.bf16.msra.mxu0 %v3406
  %3470 = vmatpush.bf16.msra.mxu0 %v3405
  %3471 = vmatpush.bf16.msra.mxu0 %v3404
  %3472 = vmatpush.bf16.msra.mxu0 %v3403
  %3473 = vmatpush.bf16.msra.mxu0 %v3402
  %3474 = vmatmul.bf16.gmra.mxu0 %v3202
  %v3475 = vpop.f32.mrf.mxu0
  %v3476 = vadd.f32 %v3272, %v3475
  %v3477 = vpop.f32.mrf.mxu0
  %v3478 = vadd.f32 %v3272, %v3477
  %3479 = vdwg.mxu0
  %3480 = vmatpush.bf16.msra.mxu0 %v3417
  %3481 = vmatpush.bf16.msra.mxu0 %v3416
  %3482 = vmatpush.bf16.msra.mxu0 %v3415
  %3483 = vmatpush.bf16.msra.mxu0 %v3414
  %3484 = vmatpush.bf16.msra.mxu0 %v3413
  %3485 = vmatpush.bf16.msra.mxu0 %v3412
  %3486 = vmatpush.bf16.msra.mxu0 %v3411
  %3487 = vmatpush.bf16.msra.mxu0 %v3410
  %3488 = vmatmul.bf16.gmra.mxu0 %v3203
  %v3489 = vpop.f32.mrf.mxu0
  %v3490 = vadd.f32 %v3476, %v3489
  %v3491 = vpop.f32.mrf.mxu0
  %v3492 = vadd.f32 %v3478, %v3491
  %3493 = vdwg.mxu0
  %3494 = vmatpush.bf16.msra.mxu0 %v3425
  %3495 = vmatpush.bf16.msra.mxu0 %v3424
  %3496 = vmatpush.bf16.msra.mxu0 %v3423
  %3497 = vmatpush.bf16.msra.mxu0 %v3422
  %3498 = vmatpush.bf16.msra.mxu0 %v3421
  %3499 = vmatpush.bf16.msra.mxu0 %v3420
  %3500 = vmatpush.bf16.msra.mxu0 %v3419
  %3501 = vmatpush.bf16.msra.mxu0 %v3418
  %3502 = vmatmul.bf16.gmra.mxu0 %v3204
  %v3503 = vpop.f32.mrf.mxu0
  %v3504 = vadd.f32 %v3490, %v3503
  %v3505 = vpop.f32.mrf.mxu0
  %v3506 = vadd.f32 %v3492, %v3505
  %3507 = vdwg.mxu0
  %3508 = vmatpush.bf16.msra.mxu0 %v3433
  %3509 = vmatpush.bf16.msra.mxu0 %v3432
  %3510 = vmatpush.bf16.msra.mxu0 %v3431
  %3511 = vmatpush.bf16.msra.mxu0 %v3430
  %3512 = vmatpush.bf16.msra.mxu0 %v3429
  %3513 = vmatpush.bf16.msra.mxu0 %v3428
  %3514 = vmatpush.bf16.msra.mxu0 %v3427
  %3515 = vmatpush.bf16.msra.mxu0 %v3426
  %3516 = vmatmul.bf16.gmra.mxu0 %v3205
  %v3517 = vpop.f32.mrf.mxu0
  %v3518 = vadd.f32 %v3504, %v3517
  %v3519 = vpop.f32.mrf.mxu0
  %v3520 = vadd.f32 %v3506, %v3519
  %3521 = vdwg.mxu0
  %v3522 = vlaneseq
  %v3523 = vand.u32 %v3522, 127
  %vm3524 = vcmp.lt.s32.totalorder %v3523, 6
  %v3525 = vsel %vm3524, %v3518, -1e+30
  %v3526 = vsel %vm3524, %v3520, -1e+30
  %3527 = vmax.xlane.f32.xlu0 %v3525
  %v3528 = vpop.xlane.xlu0 %3527
  %3529 = vmax.xlane.f32.xlu0 %v3526
  %v3530 = vpop.xlane.xlu0 %3529
  %v3531 = vsub.f32 %v3518, %v3528
  %v3532 = vsub.f32 %v3520, %v3530
  %v3533 = vmul.f32 %v3531, 1.442695
  %v3534 = vpow.pop %v3533
  %v3535 = vmul.f32 %v3532, 1.442695
  %v3536 = vpow.pop %v3535
  %v3537 = vsel %vm3524, %v3534, 0.0
  %v3538 = vsel %vm3524, %v3536, 0.0
  %3539 = vadd.xlane.f32.xlu0 %v3537
  %v3540 = vpop.xlane.xlu0 %3539
  %3541 = vadd.xlane.f32.xlu0 %v3538
  %v3542 = vpop.xlane.xlu0 %3541
  %v3543 = vrcp.pop %v3540
  %v3544 = vmul.f32 %v3540, %v3543
  %v3545 = vsub.f32 1.0, %v3544
  %v3546 = vmul.f32 %v3543, %v3545
  %v3547 = vadd.f32 %v3543, %v3546
  %vm3548 = vweird.f32 %v3540
  %vm3549 = vweird.f32 %v3543
  %vm3550 = vmor %vm3548, %vm3549
  %v3551 = vsel %vm3550, %v3543, %v3547
  %v3552 = vand.u32 2147483647, %v3540
  %vm3553 = vcmp.eq.f32.partialorder %v3552, 8.507059e+37
  %v3554 = vand.u32 %v3540, 2147483648
  %v3555 = vor.u32 1.1754944e-38, %v3554
  %v3556 = vsel %vm3553, %v3555, %v3551
  %v3557 = vmul.f32 %v3537, %v3556
  %v3558 = vrcp.pop %v3542
  %v3559 = vmul.f32 %v3542, %v3558
  %v3560 = vsub.f32 1.0, %v3559
  %v3561 = vmul.f32 %v3558, %v3560
  %v3562 = vadd.f32 %v3558, %v3561
  %vm3563 = vweird.f32 %v3542
  %vm3564 = vweird.f32 %v3558
  %vm3565 = vmor %vm3563, %vm3564
  %v3566 = vsel %vm3565, %v3558, %v3562
  %v3567 = vand.u32 2147483647, %v3542
  %vm3568 = vcmp.eq.f32.partialorder %v3567, 8.507059e+37
  %v3569 = vand.u32 %v3542, 2147483648
  %v3570 = vor.u32 1.1754944e-38, %v3569
  %v3571 = vsel %vm3568, %v3570, %v3566
  %v3572 = vmul.f32 %v3538, %v3571
  %vm3573 = vcmp.eq.s32.totalorder %v3523, 6
  %v3574 = vsel %vm3573, %v3518, 0.0
  %v3575 = vsel %vm3573, %v3520, 0.0
  %v3576 = vadd.f32 %v3557, %v3574
  %v3577 = vadd.f32 %v3572, %v3575
  %3578 = vst [vmem:[%s5] sm:$0xff] %v3576
  %3579 = vst [vmem:[%s5 + $0x8] sm:$0xff] %v3577
  // Predicated region
  $region22: #{actor_critic_forward.7} parent=0 // pred_check
    _
  $region23: #{actor_critic_forward.7} parent=0 // pred_check_branch
    %3581 = sbr.rel (0) target = $region25
  $region24: #{actor_critic_forward.7} parent=0 // pred_region
    _
  $region25: #{actor_critic_forward.7} parent=0 // pred_fallthru
    _
  // Predicated region
  $region26: #{actor_critic_forward.7} parent=0 // pred_check
    _
  $region27: #{actor_critic_forward.7} parent=0 // pred_check_branch
    %3583 = sbr.rel (0) target = $region29
  $region28: #{actor_critic_forward.7} parent=0 // pred_region
    _
  $region29: #{actor_critic_forward.7} parent=0 // pred_fallthru
    _

</llo_original>
